<compile_context>
chip_gen: v5e
topology: v5e:2x2
jax: 0.10.0
libtpu: 0.0.40
codegen_flags: <defaults>
</compile_context>

<pallas_src>
import jax
import jax.numpy as jnp
from jax.experimental import pallas as pl
from jax.experimental.pallas import tpu as pltpu

LANE = 128  # lane width; batch tile is always a multiple of this


def _round_up(x, m):
    return ((x + m - 1) // m) * m


def _pack_params(params):
    """Pack transposed weights (out, in) and biases (out, 1) into two padded slabs.

    Returns (w_pack [R, C] f32, b_pack [R, 1] f32, layout) where layout is a static
    list of (row_offset, n_out, n_out_padded, n_in) per layer; every row_offset and
    n_out_padded is a multiple of 8 so in-kernel slices stay sublane-aligned.
    """
    outs = [w.shape[1] for w, _ in params]
    ins = [w.shape[0] for w, _ in params]

    layout = []
    off = 0
    for o, i in zip(outs, ins):
        o_pad = _round_up(o, 8)
        layout.append((off, o, o_pad, i))
        off += o_pad
    total_rows = _round_up(off, 8)
    cols = _round_up(max(ins), LANE)

    w_pack = jnp.zeros((total_rows, cols), jnp.float32)
    b_pack = jnp.zeros((total_rows, 1), jnp.float32)
    for (roff, o, _, i), (w, b) in zip(layout, params):
        w_pack = w_pack.at[roff:roff + o, :i].set(w.T.astype(jnp.float32))
        b_pack = b_pack.at[roff:roff + o, 0].set(b.reshape(-1).astype(jnp.float32))
    return w_pack, b_pack, layout


def _make_kernel(layout):
    """Fused 6-layer MLP on one lane-dense (zDim, TB) batch tile (batch on lanes)."""

    def kernel(x_ref, wp_ref, bp_ref, o_ref):
        h = x_ref[...].astype(jnp.float32)                    # (zDim, TB), bf16 -> f32
        for roff, n_out, n_out_pad, n_in in layout:
            w = wp_ref[roff:roff + n_out_pad, 0:n_in]         # (out_pad, in)  f32
            b = bp_ref[roff:roff + n_out, 0:1]                # (out, 1)       f32
            z = jnp.dot(w, h,
                        preferred_element_type=jnp.float32,
                        precision=jax.lax.Precision.HIGHEST)  # (out_pad, TB)  f32, MXU
            if n_out_pad != n_out:
                z = z[:n_out, :]                              # drop zero pad rows
            h = jax.nn.sigmoid(z + b)                         # EUP; (out, TB)
        # final h is (1, TB): lane-dense output row for this batch tile
        o_ref[...] = h.reshape(o_ref.shape).astype(o_ref.dtype)

    return kernel


def regression_model_forward(x, params, *, tb=1024):
    """x: [B, zDim] float. params: list of (W, b) with W: [in, out], b: [1, out].

    Returns [B, 1] float32 = sigmoid(...sigmoid(x W1 + b1)... W6 + b6).
    """
    B, z_dim = x.shape
    w_pack, b_pack, layout = _pack_params(params)

    # Batch tile: multiple of 128 (lane-dense); keep >= 2 grid steps when the batch
    # allows it so v7x's two TensorCores both get work on the "parallel" batch axis.
    tb = min(tb, max(LANE, _round_up(pl.cdiv(B, 2), LANE)))
    padded_b = _round_up(B, tb)
    n_tiles = padded_b // tb

    # x -> bf16, transposed to (zDim, padded_b): batch lives on lanes everywhere.
    x_t = jnp.pad(x.astype(jnp.bfloat16).T, ((0, 0), (0, padded_b - B)))

    out = pl.pallas_call(
        _make_kernel(layout),
        grid=(n_tiles,),
        in_specs=[
            pl.BlockSpec((z_dim, tb), lambda i: (0, i)),
            # Packed params: full-array blocks, constant index -> stay VMEM-resident.
            pl.BlockSpec(w_pack.shape, lambda i: (0, 0)),
            pl.BlockSpec(b_pack.shape, lambda i: (0, 0)),
        ],
        out_specs=pl.BlockSpec((1, 1, tb), lambda i: (i, 0, 0)),
        out_shape=jax.ShapeDtypeStruct((n_tiles, 1, tb), jnp.float32),
        compiler_params=pltpu.CompilerParams(
            dimension_semantics=("parallel",)),
    )(x_t, w_pack, b_pack)

    # (n_tiles, 1, tb) -> flat padded batch -> drop pad rows -> [B, 1]
    return out.reshape(-1)[:B].reshape(B, 1)


def init_params(key, z_dim):
    """Deterministic init mirroring the torch module:
    weights ~ xavier_normal, biases ~ U(-1/sqrt(fan_in), 1/sqrt(fan_in))."""
    dims = [z_dim, 2 * z_dim, 4 * z_dim, 2 * z_dim, z_dim, z_dim // 2, 1]
    params = []
    for i in range(6):
        fan_in, fan_out = dims[i], dims[i + 1]
        key, kw, kb = jax.random.split(key, 3)
        std = (2.0 / (fan_in + fan_out)) ** 0.5  # xavier normal, gain=1
        w = std * jax.random.normal(kw, (fan_in, fan_out), dtype=jnp.float32)  # [in, out]
        bound = 1.0 / (fan_in ** 0.5)
        b = jax.random.uniform(kb, (1, fan_out), dtype=jnp.float32,
                               minval=-bound, maxval=bound)
        params.append((w, b))
    return params


def reference_forward_matched(x, params):
    """Reference mirroring the kernel numerics: bf16 input truncation, f32 HIGHEST matmuls."""
    h = x.astype(jnp.bfloat16).astype(jnp.float32)
    for (w, b) in params:
        z = jnp.dot(h, w, precision=jax.lax.Precision.HIGHEST,
                    preferred_element_type=jnp.float32) + b
        h = jax.nn.sigmoid(z)
    return h


def reference_forward_f32(x, params):
    """Pure f32 reference (the torch-module semantics, modulo f64->f32)."""
    h = x.astype(jnp.float32)
    for (w, b) in params:
        h = jax.nn.sigmoid(
            jnp.dot(h, w, precision=jax.lax.Precision.HIGHEST) + b)
    return h


if __name__ == "__main__":
    key = jax.random.PRNGKey(0)
    z_dim = 32

    kx1, kx2, kp = jax.random.split(key, 3)
    params = init_params(kp, z_dim)

    # Small batch (single tile).
    x_small = jax.random.normal(kx1, (8, z_dim), dtype=jnp.float32)
    out_small = jax.block_until_ready(regression_model_forward(x_small, params))
    assert out_small.shape == (8, 1), out_small.shape
    assert jnp.allclose(out_small, reference_forward_matched(x_small, params),
                        atol=1e-3, rtol=1e-3), "small-batch mismatch vs matched reference"
    assert jnp.allclose(out_small, reference_forward_f32(x_small, params),
                        atol=1e-2), "small-batch mismatch vs f32 reference"

    # Larger, non-tile-aligned batch (exercises the grid, padding and the >=2-step cap).
    x_big = jax.random.normal(kx2, (260, z_dim), dtype=jnp.float32)
    out_big = jax.block_until_ready(regression_model_forward(x_big, params, tb=1024))
    assert out_big.shape == (260, 1), out_big.shape
    assert jnp.allclose(out_big, reference_forward_matched(x_big, params),
                        atol=1e-3, rtol=1e-3), "large-batch mismatch vs matched reference"
    assert jnp.allclose(out_big, reference_forward_f32(x_big, params),
                        atol=1e-2), "large-batch mismatch vs f32 reference"

    print("KERNEL_OK")
</pallas_src>

<mosaic_0001>
module attributes {stable_mosaic.version = 11 : i64} {
  func.func @kernel(%arg0: i32, %arg1: memref<32x128xbf16, #tpu.memory_space<vmem>>, %arg2: memref<312x128xf32, #tpu.memory_space<vmem>>, %arg3: memref<312x1xf32, #tpu.memory_space<vmem>>, %arg4: memref<1x1x128xf32, #tpu.memory_space<vmem>>) attributes {dimension_semantics = [#tpu.dimension_semantics<parallel>], iteration_bounds = array<i64: 1>, scalar_prefetch = 0 : i64, scratch_operands = 0 : i64, tpu.core_type = #tpu.core_type<tc>, window_params = [{transform_indices = @transform_0, window_bounds = array<i64: 32, 128>}, {pipeline_mode = #tpu.pipeline_mode<synchronous>, transform_indices = @transform_1, window_bounds = array<i64: 312, 128>}, {pipeline_mode = #tpu.pipeline_mode<synchronous>, transform_indices = @transform_2, window_bounds = array<i64: 312, 1>}, {transform_indices = @transform_3, window_bounds = array<i64: 1, 1, 128>}]} {
    %c0 = arith.constant 0 : index
    %c0_0 = arith.constant 0 : index
    %0 = vector.load %arg1[%c0, %c0_0] : memref<32x128xbf16, #tpu.memory_space<vmem>>, vector<32x128xbf16>
    %1 = arith.extf %0 : vector<32x128xbf16> to vector<32x128xf32>
    %c0_1 = arith.constant 0 : index
    %c0_2 = arith.constant 0 : index
    %2 = vector.load %arg2[%c0_1, %c0_2] : memref<312x128xf32, #tpu.memory_space<vmem>>, vector<64x32xf32>
    %c0_3 = arith.constant 0 : index
    %c0_4 = arith.constant 0 : index
    %3 = vector.load %arg3[%c0_3, %c0_4] : memref<312x1xf32, #tpu.memory_space<vmem>>, vector<64x1xf32>
    %cst = arith.constant dense<0.000000e+00> : vector<64x128xf32>
    %4 = tpu.matmul %2, %1, %cst {dimension_numbers = #tpu.dot_dimension_numbers<[1], [0], [0], [1], [0, 0, 1, 1], [], []>, precision = #tpu.contract_precision<fp32>} : vector<64x32xf32>, vector<32x128xf32>, vector<64x128xf32> -> vector<64x128xf32>
    %5 = vector.broadcast %3 : vector<64x1xf32> to vector<64x128xf32>
    %6 = arith.addf %4, %5 : vector<64x128xf32>
    %7 = arith.negf %6 : vector<64x128xf32>
    %8 = math.exp %7 : vector<64x128xf32>
    %cst_5 = arith.constant 1.000000e+00 : f32
    %9 = vector.broadcast %cst_5 : f32 to vector<64x128xf32>
    %10 = arith.addf %9, %8 : vector<64x128xf32>
    %11 = arith.divf %9, %10 : vector<64x128xf32>
    %c64 = arith.constant 64 : index
    %c0_6 = arith.constant 0 : index
    %12 = vector.load %arg2[%c64, %c0_6] : memref<312x128xf32, #tpu.memory_space<vmem>>, vector<128x64xf32>
    %c64_7 = arith.constant 64 : index
    %c0_8 = arith.constant 0 : index
    %13 = vector.load %arg3[%c64_7, %c0_8] : memref<312x1xf32, #tpu.memory_space<vmem>>, vector<128x1xf32>
    %cst_9 = arith.constant dense<0.000000e+00> : vector<128x128xf32>
    %14 = tpu.matmul %12, %11, %cst_9 {dimension_numbers = #tpu.dot_dimension_numbers<[1], [0], [0], [1], [0, 0, 1, 1], [], []>, precision = #tpu.contract_precision<fp32>} : vector<128x64xf32>, vector<64x128xf32>, vector<128x128xf32> -> vector<128x128xf32>
    %15 = vector.broadcast %13 : vector<128x1xf32> to vector<128x128xf32>
    %16 = arith.addf %14, %15 : vector<128x128xf32>
    %17 = arith.negf %16 : vector<128x128xf32>
    %18 = math.exp %17 : vector<128x128xf32>
    %cst_10 = arith.constant 1.000000e+00 : f32
    %19 = vector.broadcast %cst_10 : f32 to vector<128x128xf32>
    %20 = arith.addf %19, %18 : vector<128x128xf32>
    %21 = arith.divf %19, %20 : vector<128x128xf32>
    %c192 = arith.constant 192 : index
    %c0_11 = arith.constant 0 : index
    %22 = vector.load %arg2[%c192, %c0_11] : memref<312x128xf32, #tpu.memory_space<vmem>>, vector<64x128xf32>
    %c192_12 = arith.constant 192 : index
    %c0_13 = arith.constant 0 : index
    %23 = vector.load %arg3[%c192_12, %c0_13] : memref<312x1xf32, #tpu.memory_space<vmem>>, vector<64x1xf32>
    %cst_14 = arith.constant dense<0.000000e+00> : vector<64x128xf32>
    %24 = tpu.matmul %22, %21, %cst_14 {dimension_numbers = #tpu.dot_dimension_numbers<[1], [0], [0], [1], [0, 0, 1, 1], [], []>, precision = #tpu.contract_precision<fp32>} : vector<64x128xf32>, vector<128x128xf32>, vector<64x128xf32> -> vector<64x128xf32>
    %25 = vector.broadcast %23 : vector<64x1xf32> to vector<64x128xf32>
    %26 = arith.addf %24, %25 : vector<64x128xf32>
    %27 = arith.negf %26 : vector<64x128xf32>
    %28 = math.exp %27 : vector<64x128xf32>
    %cst_15 = arith.constant 1.000000e+00 : f32
    %29 = vector.broadcast %cst_15 : f32 to vector<64x128xf32>
    %30 = arith.addf %29, %28 : vector<64x128xf32>
    %31 = arith.divf %29, %30 : vector<64x128xf32>
    %c256 = arith.constant 256 : index
    %c0_16 = arith.constant 0 : index
    %32 = vector.load %arg2[%c256, %c0_16] : memref<312x128xf32, #tpu.memory_space<vmem>>, vector<32x64xf32>
    %c256_17 = arith.constant 256 : index
    %c0_18 = arith.constant 0 : index
    %33 = vector.load %arg3[%c256_17, %c0_18] : memref<312x1xf32, #tpu.memory_space<vmem>>, vector<32x1xf32>
    %cst_19 = arith.constant dense<0.000000e+00> : vector<32x128xf32>
    %34 = tpu.matmul %32, %31, %cst_19 {dimension_numbers = #tpu.dot_dimension_numbers<[1], [0], [0], [1], [0, 0, 1, 1], [], []>, precision = #tpu.contract_precision<fp32>} : vector<32x64xf32>, vector<64x128xf32>, vector<32x128xf32> -> vector<32x128xf32>
    %35 = vector.broadcast %33 : vector<32x1xf32> to vector<32x128xf32>
    %36 = arith.addf %34, %35 : vector<32x128xf32>
    %37 = arith.negf %36 : vector<32x128xf32>
    %38 = math.exp %37 : vector<32x128xf32>
    %cst_20 = arith.constant 1.000000e+00 : f32
    %39 = vector.broadcast %cst_20 : f32 to vector<32x128xf32>
    %40 = arith.addf %39, %38 : vector<32x128xf32>
    %41 = arith.divf %39, %40 : vector<32x128xf32>
    %c288 = arith.constant 288 : index
    %c0_21 = arith.constant 0 : index
    %42 = vector.load %arg2[%c288, %c0_21] : memref<312x128xf32, #tpu.memory_space<vmem>>, vector<16x32xf32>
    %c288_22 = arith.constant 288 : index
    %c0_23 = arith.constant 0 : index
    %43 = vector.load %arg3[%c288_22, %c0_23] : memref<312x1xf32, #tpu.memory_space<vmem>>, vector<16x1xf32>
    %cst_24 = arith.constant dense<0.000000e+00> : vector<16x128xf32>
    %44 = tpu.matmul %42, %41, %cst_24 {dimension_numbers = #tpu.dot_dimension_numbers<[1], [0], [0], [1], [0, 0, 1, 1], [], []>, precision = #tpu.contract_precision<fp32>} : vector<16x32xf32>, vector<32x128xf32>, vector<16x128xf32> -> vector<16x128xf32>
    %45 = vector.broadcast %43 : vector<16x1xf32> to vector<16x128xf32>
    %46 = arith.addf %44, %45 : vector<16x128xf32>
    %47 = arith.negf %46 : vector<16x128xf32>
    %48 = math.exp %47 : vector<16x128xf32>
    %cst_25 = arith.constant 1.000000e+00 : f32
    %49 = vector.broadcast %cst_25 : f32 to vector<16x128xf32>
    %50 = arith.addf %49, %48 : vector<16x128xf32>
    %51 = arith.divf %49, %50 : vector<16x128xf32>
    %c304 = arith.constant 304 : index
    %c0_26 = arith.constant 0 : index
    %52 = vector.load %arg2[%c304, %c0_26] : memref<312x128xf32, #tpu.memory_space<vmem>>, vector<8x16xf32>
    %c304_27 = arith.constant 304 : index
    %c0_28 = arith.constant 0 : index
    %53 = vector.load %arg3[%c304_27, %c0_28] : memref<312x1xf32, #tpu.memory_space<vmem>>, vector<1x1xf32>
    %cst_29 = arith.constant dense<0.000000e+00> : vector<8x128xf32>
    %54 = tpu.matmul %52, %51, %cst_29 {dimension_numbers = #tpu.dot_dimension_numbers<[1], [0], [0], [1], [0, 0, 1, 1], [], []>, precision = #tpu.contract_precision<fp32>} : vector<8x16xf32>, vector<16x128xf32>, vector<8x128xf32> -> vector<8x128xf32>
    %55 = vector.extract_strided_slice %54 {offsets = [0, 0], sizes = [1, 128], strides = [1, 1]} : vector<8x128xf32> to vector<1x128xf32>
    %56 = vector.broadcast %53 : vector<1x1xf32> to vector<1x128xf32>
    %57 = arith.addf %55, %56 : vector<1x128xf32>
    %58 = arith.negf %57 : vector<1x128xf32>
    %59 = math.exp %58 : vector<1x128xf32>
    %cst_30 = arith.constant 1.000000e+00 : f32
    %60 = vector.broadcast %cst_30 : f32 to vector<1x128xf32>
    %61 = arith.addf %60, %59 : vector<1x128xf32>
    %62 = arith.divf %60, %61 : vector<1x128xf32>
    %63 = vector.shape_cast %62 : vector<1x128xf32> to vector<1x1x128xf32>
    %c0_31 = arith.constant 0 : index
    %c0_32 = arith.constant 0 : index
    %c0_33 = arith.constant 0 : index
    %64 = vector.load %arg4[%c0_31, %c0_32, %c0_33] : memref<1x1x128xf32, #tpu.memory_space<vmem>>, vector<1x1x128xf32>
    tpu.vector_store %arg4[%c0_31, %c0_32, %c0_33], %63 {strides = array<i32>} : memref<1x1x128xf32, #tpu.memory_space<vmem>>, vector<1x1x128xf32>,
    return
  }
  func.func @transform_0(%arg0: i32) -> (i32, i32) {
    %c0_i32 = arith.constant 0 : i32
    %c0_i32_0 = arith.constant 0 : i32
    return %c0_i32, %arg0 : i32, i32
  }
  func.func @transform_1(%arg0: i32) -> (i32, i32) {
    %c0_i32 = arith.constant 0 : i32
    %c0_i32_0 = arith.constant 0 : i32
    %c0_i32_1 = arith.constant 0 : i32
    return %c0_i32, %c0_i32_0 : i32, i32
  }
  func.func @transform_2(%arg0: i32) -> (i32, i32) {
    %c0_i32 = arith.constant 0 : i32
    %c0_i32_0 = arith.constant 0 : i32
    %c0_i32_1 = arith.constant 0 : i32
    return %c0_i32, %c0_i32_0 : i32, i32
  }
  func.func @transform_3(%arg0: i32) -> (i32, i32, i32) {
    %c0_i32 = arith.constant 0 : i32
    %c0_i32_0 = arith.constant 0 : i32
    %c0_i32_1 = arith.constant 0 : i32
    return %arg0, %c0_i32, %c0_i32_0 : i32, i32, i32
  }
}

</mosaic_0001>

<llo_original>
// kernel: tpu_custom_call.1
$region0: #{tpu_custom_call.1}
  #allocation0 [shape = 'u32[]', space=smem, size = 0x4, offset = 0x4, fixed_abs, tag = 'smem constant byte address 0x4 - core index']
  #allocation1 [shape = 'u32[72,128]{1,0:T(1,128)}', space=vmem, size = 0x9000, scoped, tag = 'internal scratch']
  %s0 = inlined_call_operand.hbm [shape: bf16[32,128], index: 0, kind: input, shape index: {}]
  %s1 = inlined_call_operand.vmem [shape: f32[312,128], index: 1, kind: input, shape index: {}]
  %s2 = inlined_call_operand.vmem [shape: f32[312,1], index: 2, kind: input, shape index: {}]
  %s3 = inlined_call_operand.hbm [shape: f32[1,1,128], index: 3, kind: output, shape index: {}]
  %s4 = sld [smem:[#allocation0]]
  $region26: #{tpu_custom_call.1} parent=0
    _
  %s6 = ssub.s32 1, %s4
  %s7 = scalar_select 0, %s6, %s4
  $region1: #{tpu_custom_call.1} parent=0
    #allocation2 [shape = 'u8[8192]{0}', space=vmem, size = 0x2000, scoped, tag = 'input window, operand 0, single buffered']
    #allocation3 [shape = 's32[1]{0}', space=sflag, size = 0x4, scoped, tag = 'scoped memory for tpu_custom_call.1']
    #allocation4 [shape = 's32[1]{0}', space=sflag, size = 0x4, scoped, tag = 'scoped memory for tpu_custom_call.1']
    #allocation5 [shape = 'u8[512]{0}', space=vmem, size = 0x400, scoped, tag = 'output window, operand 0, single buffered']
    %8 = vsyncpa [#allocation3], 0
    %9 = vsyncpa [#allocation4], 0
    // Predicated region
    $region2: #{tpu_custom_call.1} parent=1 // pred_check
      _
    $region3: #{tpu_custom_call.1} parent=1 // pred_check_branch
      %11 = sbr.rel (0) target = $region5
    $region4: #{tpu_custom_call.1} parent=1 // pred_region
      %13 = vsyncadd [#allocation3], 0
      %s14 = sshll.u32 %s0, 4
      %s15 = int_to_ptr.hbm [resolvable:$true] %s14
      %s16 = sshll.u32 [#allocation2], 4
      %s17 = int_to_ptr.vmem [resolvable:$true] %s16
      %22 = dma.hbm_to_vmem [thread:$0]  %s15, 256, %s17, [#allocation3], 64, 64, 4
    $region5: #{tpu_custom_call.1} parent=1 // pred_fallthru
      _
    // Predicated region
    $region6: #{tpu_custom_call.1} parent=1 // pred_check
      _
    $region7: #{tpu_custom_call.1} parent=1 // pred_check_branch
      %24 = sbr.rel (0) target = $region9
    $region8: #{tpu_custom_call.1} parent=1 // pred_region
      _
    $region9: #{tpu_custom_call.1} parent=1 // pred_fallthru
      _
    // Predicated region
    $region10: #{tpu_custom_call.1} parent=1 // pred_check
      _
    $region11: #{tpu_custom_call.1} parent=1 // pred_check_branch
      %26 = sbr.rel (0) target = $region13
    $region12: #{tpu_custom_call.1} parent=1 // pred_region
      _
    $region13: #{tpu_custom_call.1} parent=1 // pred_fallthru
      _
    // Predicated region
    $region14: #{tpu_custom_call.1} parent=1 // pred_check
      _
    $region15: #{tpu_custom_call.1} parent=1 // pred_check_branch
      %28 = sbr.rel (0) target = $region17
    $region16: #{tpu_custom_call.1} parent=1 // pred_region
      %30 = dma.done [#allocation3], 256
    $region17: #{tpu_custom_call.1} parent=1 // pred_fallthru
      _
    %v31 = vld [vmem:[#allocation2] sm:$0xf]
    %v32 = vld [vmem:[#allocation2 + $0x4] sm:$0xf]
    %v33 = vld [vmem:[#allocation2 + $0x8] sm:$0xf]
    %v34 = vld [vmem:[#allocation2 + $0xc] sm:$0xf]
    %v35 = vunpack.c.l.bf16 %v31
    %v36 = vunpack.c.l.bf16 %v32
    %v37 = vunpack.c.l.bf16 %v33
    %v38 = vunpack.c.l.bf16 %v34
    %v39 = vld [vmem:[%s1] sm:$0xff]
    %v40 = vld [vmem:[%s1 + $0x8] sm:$0xff]
    %v41 = vld [vmem:[%s1 + $0x10] sm:$0xff]
    %v42 = vld [vmem:[%s1 + $0x18] sm:$0xff]
    %v43 = vld [vmem:[%s1 + $0x20] sm:$0xff]
    %v44 = vld [vmem:[%s1 + $0x28] sm:$0xff]
    %v45 = vld [vmem:[%s1 + $0x30] sm:$0xff]
    %v46 = vld [vmem:[%s1 + $0x38] sm:$0xff]
    %v47 = vld [vmem:[%s2] sm:$0xff]
    %v48 = vld [vmem:[%s2 + $0x8] sm:$0xff]
    %v49 = vld [vmem:[%s2 + $0x10] sm:$0xff]
    %v50 = vld [vmem:[%s2 + $0x18] sm:$0xff]
    %v51 = vld [vmem:[%s2 + $0x20] sm:$0xff]
    %v52 = vld [vmem:[%s2 + $0x28] sm:$0xff]
    %v53 = vld [vmem:[%s2 + $0x30] sm:$0xff]
    %v54 = vld [vmem:[%s2 + $0x38] sm:$0xff]
    %56 = vset.pattern.permute.xlu0 0
    %57 = vperm.xlu0 %56, %v47
    %v58 = vpop.permute.xlu0 %57
    %61 = vset.pattern.permute.xlu0 0
    %62 = vperm.xlu0 %61, %v48
    %v63 = vpop.permute.xlu0 %62
    %66 = vset.pattern.permute.xlu0 0
    %67 = vperm.xlu0 %66, %v49
    %v68 = vpop.permute.xlu0 %67
    %71 = vset.pattern.permute.xlu0 0
    %72 = vperm.xlu0 %71, %v50
    %v73 = vpop.permute.xlu0 %72
    %76 = vset.pattern.permute.xlu0 0
    %77 = vperm.xlu0 %76, %v51
    %v78 = vpop.permute.xlu0 %77
    %81 = vset.pattern.permute.xlu0 0
    %82 = vperm.xlu0 %81, %v52
    %v83 = vpop.permute.xlu0 %82
    %86 = vset.pattern.permute.xlu0 0
    %87 = vperm.xlu0 %86, %v53
    %v88 = vpop.permute.xlu0 %87
    %91 = vset.pattern.permute.xlu0 0
    %92 = vperm.xlu0 %91, %v54
    %v93 = vpop.permute.xlu0 %92
    %vm95 = vcmask 261120
    %v97 = vsel %vm95, %v39, 0
    %v100 = vsel %vm95, %v40, 0
    %v103 = vsel %vm95, %v41, 0
    %v106 = vsel %vm95, %v42, 0
    %v109 = vsel %vm95, %v43, 0
    %v112 = vsel %vm95, %v44, 0
    %v115 = vsel %vm95, %v45, 0
    %v118 = vsel %vm95, %v46, 0
    %120 = vmatpush.msra.mxu0 0.0
    %121 = vmatpush.msra.mxu0 0.0
    %122 = vmatpush.msra.mxu0 0.0
    %123 = vmatpush.msra.mxu0 0.0
    %124 = vmatpush.msra.mxu0 0.0
    %125 = vmatpush.msra.mxu0 0.0
    %126 = vmatpush.msra.mxu0 0.0
    %127 = vmatpush.msra.mxu0 0.0
    %128 = vmatpush.msra.mxu0 0.0
    %129 = vmatpush.msra.mxu0 0.0
    %130 = vmatpush.msra.mxu0 0.0
    %131 = vmatpush.msra.mxu0 0.0
    %132 = vmatpush.msra.mxu0 %v38
    %133 = vmatpush.msra.mxu0 %v37
    %134 = vmatpush.msra.mxu0 %v36
    %135 = vmatpush.msra.mxu0 %v35
    %v136 = vand.u32 %v97, 4294901760
    %v137 = vsub.f32 %v97, %v136
    %v138 = vand.u32 %v137, 4294901760
    %v139 = vsub.f32 %v137, %v138
    %v140 = vand.u32 %v139, 4294901760
    %141 = vmatmul.f32.gmra.mxu0 %v140
    %v142 = vpop.f32.mrf.mxu0
    %v143 = vadd.f32 %v58, %v142
    %v144 = vand.u32 %v100, 4294901760
    %v145 = vsub.f32 %v100, %v144
    %v146 = vand.u32 %v145, 4294901760
    %v147 = vsub.f32 %v145, %v146
    %v148 = vand.u32 %v147, 4294901760
    %149 = vmatmul.f32.gmra.mxu0 %v148
    %v150 = vpop.f32.mrf.mxu0
    %v151 = vadd.f32 %v63, %v150
    %v152 = vand.u32 %v103, 4294901760
    %v153 = vsub.f32 %v103, %v152
    %v154 = vand.u32 %v153, 4294901760
    %v155 = vsub.f32 %v153, %v154
    %v156 = vand.u32 %v155, 4294901760
    %157 = vmatmul.f32.gmra.mxu0 %v156
    %v158 = vpop.f32.mrf.mxu0
    %v159 = vadd.f32 %v68, %v158
    %v160 = vand.u32 %v106, 4294901760
    %v161 = vsub.f32 %v106, %v160
    %v162 = vand.u32 %v161, 4294901760
    %v163 = vsub.f32 %v161, %v162
    %v164 = vand.u32 %v163, 4294901760
    %165 = vmatmul.f32.gmra.mxu0 %v164
    %v166 = vpop.f32.mrf.mxu0
    %v167 = vadd.f32 %v73, %v166
    %v168 = vand.u32 %v109, 4294901760
    %v169 = vsub.f32 %v109, %v168
    %v170 = vand.u32 %v169, 4294901760
    %v171 = vsub.f32 %v169, %v170
    %v172 = vand.u32 %v171, 4294901760
    %173 = vmatmul.f32.gmra.mxu0 %v172
    %v174 = vpop.f32.mrf.mxu0
    %v175 = vadd.f32 %v78, %v174
    %v176 = vand.u32 %v112, 4294901760
    %v177 = vsub.f32 %v112, %v176
    %v178 = vand.u32 %v177, 4294901760
    %v179 = vsub.f32 %v177, %v178
    %v180 = vand.u32 %v179, 4294901760
    %181 = vmatmul.f32.gmra.mxu0 %v180
    %v182 = vpop.f32.mrf.mxu0
    %v183 = vadd.f32 %v83, %v182
    %v184 = vand.u32 %v115, 4294901760
    %v185 = vsub.f32 %v115, %v184
    %v186 = vand.u32 %v185, 4294901760
    %v187 = vsub.f32 %v185, %v186
    %v188 = vand.u32 %v187, 4294901760
    %189 = vmatmul.f32.gmra.mxu0 %v188
    %v190 = vpop.f32.mrf.mxu0
    %v191 = vadd.f32 %v88, %v190
    %v192 = vand.u32 %v118, 4294901760
    %v193 = vsub.f32 %v118, %v192
    %v194 = vand.u32 %v193, 4294901760
    %v195 = vsub.f32 %v193, %v194
    %v196 = vand.u32 %v195, 4294901760
    %197 = vmatmul.f32.gmra.mxu0 %v196
    %v198 = vpop.f32.mrf.mxu0
    %v199 = vadd.f32 %v93, %v198
    %200 = vdwg.mxu0
    %201 = vmatpush.msra.mxu0 0.0
    %202 = vmatpush.msra.mxu0 0.0
    %203 = vmatpush.msra.mxu0 0.0
    %204 = vmatpush.msra.mxu0 0.0
    %205 = vmatpush.msra.mxu0 0.0
    %206 = vmatpush.msra.mxu0 0.0
    %207 = vmatpush.msra.mxu0 0.0
    %208 = vmatpush.msra.mxu0 0.0
    %209 = vmatpush.msra.mxu0 0.0
    %210 = vmatpush.msra.mxu0 0.0
    %211 = vmatpush.msra.mxu0 0.0
    %212 = vmatpush.msra.mxu0 0.0
    %v213 = vsub.f32 %v38, %v38
    %v214 = vand.u32 %v213, 4294901760
    %v215 = vsub.f32 %v213, %v214
    %v216 = vand.u32 %v215, 4294901760
    %217 = vmatpush.msra.mxu0 %v216
    %v218 = vsub.f32 %v37, %v37
    %v219 = vand.u32 %v218, 4294901760
    %v220 = vsub.f32 %v218, %v219
    %v221 = vand.u32 %v220, 4294901760
    %222 = vmatpush.msra.mxu0 %v221
    %v223 = vsub.f32 %v36, %v36
    %v224 = vand.u32 %v223, 4294901760
    %v225 = vsub.f32 %v223, %v224
    %v226 = vand.u32 %v225, 4294901760
    %227 = vmatpush.msra.mxu0 %v226
    %v228 = vsub.f32 %v35, %v35
    %v229 = vand.u32 %v228, 4294901760
    %v230 = vsub.f32 %v228, %v229
    %v231 = vand.u32 %v230, 4294901760
    %232 = vmatpush.msra.mxu0 %v231
    %v233 = vand.u32 %v97, 4294901760
    %234 = vmatmul.f32.gmra.mxu0 %v233
    %v235 = vpop.f32.mrf.mxu0
    %v236 = vadd.f32 %v143, %v235
    %v237 = vand.u32 %v100, 4294901760
    %238 = vmatmul.f32.gmra.mxu0 %v237
    %v239 = vpop.f32.mrf.mxu0
    %v240 = vadd.f32 %v151, %v239
    %v241 = vand.u32 %v103, 4294901760
    %242 = vmatmul.f32.gmra.mxu0 %v241
    %v243 = vpop.f32.mrf.mxu0
    %v244 = vadd.f32 %v159, %v243
    %v245 = vand.u32 %v106, 4294901760
    %246 = vmatmul.f32.gmra.mxu0 %v245
    %v247 = vpop.f32.mrf.mxu0
    %v248 = vadd.f32 %v167, %v247
    %v249 = vand.u32 %v109, 4294901760
    %250 = vmatmul.f32.gmra.mxu0 %v249
    %v251 = vpop.f32.mrf.mxu0
    %v252 = vadd.f32 %v175, %v251
    %v253 = vand.u32 %v112, 4294901760
    %254 = vmatmul.f32.gmra.mxu0 %v253
    %v255 = vpop.f32.mrf.mxu0
    %v256 = vadd.f32 %v183, %v255
    %v257 = vand.u32 %v115, 4294901760
    %258 = vmatmul.f32.gmra.mxu0 %v257
    %v259 = vpop.f32.mrf.mxu0
    %v260 = vadd.f32 %v191, %v259
    %v261 = vand.u32 %v118, 4294901760
    %262 = vmatmul.f32.gmra.mxu0 %v261
    %v263 = vpop.f32.mrf.mxu0
    %v264 = vadd.f32 %v199, %v263
    %265 = vdwg.mxu0
    %266 = vmatpush.msra.mxu0 0.0
    %267 = vmatpush.msra.mxu0 0.0
    %268 = vmatpush.msra.mxu0 0.0
    %269 = vmatpush.msra.mxu0 0.0
    %270 = vmatpush.msra.mxu0 0.0
    %271 = vmatpush.msra.mxu0 0.0
    %272 = vmatpush.msra.mxu0 0.0
    %273 = vmatpush.msra.mxu0 0.0
    %274 = vmatpush.msra.mxu0 0.0
    %275 = vmatpush.msra.mxu0 0.0
    %276 = vmatpush.msra.mxu0 0.0
    %277 = vmatpush.msra.mxu0 0.0
    %v278 = vsub.f32 %v38, %v38
    %279 = vmatpush.msra.mxu0 %v278
    %v280 = vsub.f32 %v37, %v37
    %281 = vmatpush.msra.mxu0 %v280
    %v282 = vsub.f32 %v36, %v36
    %283 = vmatpush.msra.mxu0 %v282
    %v284 = vsub.f32 %v35, %v35
    %285 = vmatpush.msra.mxu0 %v284
    %v286 = vand.u32 %v97, 4294901760
    %v287 = vsub.f32 %v97, %v286
    %288 = vmatmul.f32.gmra.mxu0 %v287
    %v289 = vpop.f32.mrf.mxu0
    %v290 = vadd.f32 %v236, %v289
    %v291 = vand.u32 %v100, 4294901760
    %v292 = vsub.f32 %v100, %v291
    %293 = vmatmul.f32.gmra.mxu0 %v292
    %v294 = vpop.f32.mrf.mxu0
    %v295 = vadd.f32 %v240, %v294
    %v296 = vand.u32 %v103, 4294901760
    %v297 = vsub.f32 %v103, %v296
    %298 = vmatmul.f32.gmra.mxu0 %v297
    %v299 = vpop.f32.mrf.mxu0
    %v300 = vadd.f32 %v244, %v299
    %v301 = vand.u32 %v106, 4294901760
    %v302 = vsub.f32 %v106, %v301
    %303 = vmatmul.f32.gmra.mxu0 %v302
    %v304 = vpop.f32.mrf.mxu0
    %v305 = vadd.f32 %v248, %v304
    %v306 = vand.u32 %v109, 4294901760
    %v307 = vsub.f32 %v109, %v306
    %308 = vmatmul.f32.gmra.mxu0 %v307
    %v309 = vpop.f32.mrf.mxu0
    %v310 = vadd.f32 %v252, %v309
    %v311 = vand.u32 %v112, 4294901760
    %v312 = vsub.f32 %v112, %v311
    %313 = vmatmul.f32.gmra.mxu0 %v312
    %v314 = vpop.f32.mrf.mxu0
    %v315 = vadd.f32 %v256, %v314
    %v316 = vand.u32 %v115, 4294901760
    %v317 = vsub.f32 %v115, %v316
    %318 = vmatmul.f32.gmra.mxu0 %v317
    %v319 = vpop.f32.mrf.mxu0
    %v320 = vadd.f32 %v260, %v319
    %v321 = vand.u32 %v118, 4294901760
    %v322 = vsub.f32 %v118, %v321
    %323 = vmatmul.f32.gmra.mxu0 %v322
    %v324 = vpop.f32.mrf.mxu0
    %v325 = vadd.f32 %v264, %v324
    %326 = vdwg.mxu0
    %327 = vmatpush.msra.mxu0 0.0
    %328 = vmatpush.msra.mxu0 0.0
    %329 = vmatpush.msra.mxu0 0.0
    %330 = vmatpush.msra.mxu0 0.0
    %331 = vmatpush.msra.mxu0 0.0
    %332 = vmatpush.msra.mxu0 0.0
    %333 = vmatpush.msra.mxu0 0.0
    %334 = vmatpush.msra.mxu0 0.0
    %335 = vmatpush.msra.mxu0 0.0
    %336 = vmatpush.msra.mxu0 0.0
    %337 = vmatpush.msra.mxu0 0.0
    %338 = vmatpush.msra.mxu0 0.0
    %339 = vmatpush.msra.mxu0 %v38
    %340 = vmatpush.msra.mxu0 %v37
    %341 = vmatpush.msra.mxu0 %v36
    %342 = vmatpush.msra.mxu0 %v35
    %v343 = vand.u32 %v97, 4294901760
    %v344 = vsub.f32 %v97, %v343
    %v345 = vand.u32 %v344, 4294901760
    %346 = vmatmul.f32.gmra.mxu0 %v345
    %v347 = vpop.f32.mrf.mxu0
    %v348 = vadd.f32 %v290, %v347
    %v349 = vand.u32 %v100, 4294901760
    %v350 = vsub.f32 %v100, %v349
    %v351 = vand.u32 %v350, 4294901760
    %352 = vmatmul.f32.gmra.mxu0 %v351
    %v353 = vpop.f32.mrf.mxu0
    %v354 = vadd.f32 %v295, %v353
    %v355 = vand.u32 %v103, 4294901760
    %v356 = vsub.f32 %v103, %v355
    %v357 = vand.u32 %v356, 4294901760
    %358 = vmatmul.f32.gmra.mxu0 %v357
    %v359 = vpop.f32.mrf.mxu0
    %v360 = vadd.f32 %v300, %v359
    %v361 = vand.u32 %v106, 4294901760
    %v362 = vsub.f32 %v106, %v361
    %v363 = vand.u32 %v362, 4294901760
    %364 = vmatmul.f32.gmra.mxu0 %v363
    %v365 = vpop.f32.mrf.mxu0
    %v366 = vadd.f32 %v305, %v365
    %v367 = vand.u32 %v109, 4294901760
    %v368 = vsub.f32 %v109, %v367
    %v369 = vand.u32 %v368, 4294901760
    %370 = vmatmul.f32.gmra.mxu0 %v369
    %v371 = vpop.f32.mrf.mxu0
    %v372 = vadd.f32 %v310, %v371
    %v373 = vand.u32 %v112, 4294901760
    %v374 = vsub.f32 %v112, %v373
    %v375 = vand.u32 %v374, 4294901760
    %376 = vmatmul.f32.gmra.mxu0 %v375
    %v377 = vpop.f32.mrf.mxu0
    %v378 = vadd.f32 %v315, %v377
    %v379 = vand.u32 %v115, 4294901760
    %v380 = vsub.f32 %v115, %v379
    %v381 = vand.u32 %v380, 4294901760
    %382 = vmatmul.f32.gmra.mxu0 %v381
    %v383 = vpop.f32.mrf.mxu0
    %v384 = vadd.f32 %v320, %v383
    %v385 = vand.u32 %v118, 4294901760
    %v386 = vsub.f32 %v118, %v385
    %v387 = vand.u32 %v386, 4294901760
    %388 = vmatmul.f32.gmra.mxu0 %v387
    %v389 = vpop.f32.mrf.mxu0
    %v390 = vadd.f32 %v325, %v389
    %391 = vdwg.mxu0
    %392 = vmatpush.msra.mxu0 0.0
    %393 = vmatpush.msra.mxu0 0.0
    %394 = vmatpush.msra.mxu0 0.0
    %395 = vmatpush.msra.mxu0 0.0
    %396 = vmatpush.msra.mxu0 0.0
    %397 = vmatpush.msra.mxu0 0.0
    %398 = vmatpush.msra.mxu0 0.0
    %399 = vmatpush.msra.mxu0 0.0
    %400 = vmatpush.msra.mxu0 0.0
    %401 = vmatpush.msra.mxu0 0.0
    %402 = vmatpush.msra.mxu0 0.0
    %403 = vmatpush.msra.mxu0 0.0
    %v404 = vsub.f32 %v38, %v38
    %v405 = vand.u32 %v404, 4294901760
    %406 = vmatpush.msra.mxu0 %v405
    %v407 = vsub.f32 %v37, %v37
    %v408 = vand.u32 %v407, 4294901760
    %409 = vmatpush.msra.mxu0 %v408
    %v410 = vsub.f32 %v36, %v36
    %v411 = vand.u32 %v410, 4294901760
    %412 = vmatpush.msra.mxu0 %v411
    %v413 = vsub.f32 %v35, %v35
    %v414 = vand.u32 %v413, 4294901760
    %415 = vmatpush.msra.mxu0 %v414
    %v416 = vand.u32 %v97, 4294901760
    %417 = vmatmul.f32.gmra.mxu0 %v416
    %v418 = vpop.f32.mrf.mxu0
    %v419 = vadd.f32 %v348, %v418
    %v420 = vand.u32 %v100, 4294901760
    %421 = vmatmul.f32.gmra.mxu0 %v420
    %v422 = vpop.f32.mrf.mxu0
    %v423 = vadd.f32 %v354, %v422
    %v424 = vand.u32 %v103, 4294901760
    %425 = vmatmul.f32.gmra.mxu0 %v424
    %v426 = vpop.f32.mrf.mxu0
    %v427 = vadd.f32 %v360, %v426
    %v428 = vand.u32 %v106, 4294901760
    %429 = vmatmul.f32.gmra.mxu0 %v428
    %v430 = vpop.f32.mrf.mxu0
    %v431 = vadd.f32 %v366, %v430
    %v432 = vand.u32 %v109, 4294901760
    %433 = vmatmul.f32.gmra.mxu0 %v432
    %v434 = vpop.f32.mrf.mxu0
    %v435 = vadd.f32 %v372, %v434
    %v436 = vand.u32 %v112, 4294901760
    %437 = vmatmul.f32.gmra.mxu0 %v436
    %v438 = vpop.f32.mrf.mxu0
    %v439 = vadd.f32 %v378, %v438
    %v440 = vand.u32 %v115, 4294901760
    %441 = vmatmul.f32.gmra.mxu0 %v440
    %v442 = vpop.f32.mrf.mxu0
    %v443 = vadd.f32 %v384, %v442
    %v444 = vand.u32 %v118, 4294901760
    %445 = vmatmul.f32.gmra.mxu0 %v444
    %v446 = vpop.f32.mrf.mxu0
    %v447 = vadd.f32 %v390, %v446
    %448 = vdwg.mxu0
    %449 = vmatpush.msra.mxu0 0.0
    %450 = vmatpush.msra.mxu0 0.0
    %451 = vmatpush.msra.mxu0 0.0
    %452 = vmatpush.msra.mxu0 0.0
    %453 = vmatpush.msra.mxu0 0.0
    %454 = vmatpush.msra.mxu0 0.0
    %455 = vmatpush.msra.mxu0 0.0
    %456 = vmatpush.msra.mxu0 0.0
    %457 = vmatpush.msra.mxu0 0.0
    %458 = vmatpush.msra.mxu0 0.0
    %459 = vmatpush.msra.mxu0 0.0
    %460 = vmatpush.msra.mxu0 0.0
    %461 = vmatpush.msra.mxu0 %v38
    %462 = vmatpush.msra.mxu0 %v37
    %463 = vmatpush.msra.mxu0 %v36
    %464 = vmatpush.msra.mxu0 %v35
    %v465 = vand.u32 %v97, 4294901760
    %466 = vmatmul.f32.gmra.mxu0 %v465
    %v467 = vpop.f32.mrf.mxu0
    %v468 = vadd.f32 %v419, %v467
    %v469 = vand.u32 %v100, 4294901760
    %470 = vmatmul.f32.gmra.mxu0 %v469
    %v471 = vpop.f32.mrf.mxu0
    %v472 = vadd.f32 %v423, %v471
    %v473 = vand.u32 %v103, 4294901760
    %474 = vmatmul.f32.gmra.mxu0 %v473
    %v475 = vpop.f32.mrf.mxu0
    %v476 = vadd.f32 %v427, %v475
    %v477 = vand.u32 %v106, 4294901760
    %478 = vmatmul.f32.gmra.mxu0 %v477
    %v479 = vpop.f32.mrf.mxu0
    %v480 = vadd.f32 %v431, %v479
    %v481 = vand.u32 %v109, 4294901760
    %482 = vmatmul.f32.gmra.mxu0 %v481
    %v483 = vpop.f32.mrf.mxu0
    %v484 = vadd.f32 %v435, %v483
    %v485 = vand.u32 %v112, 4294901760
    %486 = vmatmul.f32.gmra.mxu0 %v485
    %v487 = vpop.f32.mrf.mxu0
    %v488 = vadd.f32 %v439, %v487
    %v489 = vand.u32 %v115, 4294901760
    %490 = vmatmul.f32.gmra.mxu0 %v489
    %v491 = vpop.f32.mrf.mxu0
    %v492 = vadd.f32 %v443, %v491
    %v493 = vand.u32 %v118, 4294901760
    %494 = vmatmul.f32.gmra.mxu0 %v493
    %v495 = vpop.f32.mrf.mxu0
    %v496 = vadd.f32 %v447, %v495
    %497 = vdwg.mxu0
    %v498 = vxor.u32 %v468, 2147483648
    %v499 = vxor.u32 %v472, 2147483648
    %v500 = vxor.u32 %v476, 2147483648
    %v501 = vxor.u32 %v480, 2147483648
    %v502 = vxor.u32 %v484, 2147483648
    %v503 = vxor.u32 %v488, 2147483648
    %v504 = vxor.u32 %v492, 2147483648
    %v505 = vxor.u32 %v496, 2147483648
    %v506 = vmul.f32 %v498, 1.442695
    %v507 = vpow.pop %v506
    %v508 = vmul.f32 %v499, 1.442695
    %v509 = vpow.pop %v508
    %v510 = vmul.f32 %v500, 1.442695
    %v511 = vpow.pop %v510
    %v512 = vmul.f32 %v501, 1.442695
    %v513 = vpow.pop %v512
    %v514 = vmul.f32 %v502, 1.442695
    %v515 = vpow.pop %v514
    %v516 = vmul.f32 %v503, 1.442695
    %v517 = vpow.pop %v516
    %v518 = vmul.f32 %v504, 1.442695
    %v519 = vpow.pop %v518
    %v520 = vmul.f32 %v505, 1.442695
    %v521 = vpow.pop %v520
    %v522 = vadd.f32 %v507, 1.0
    %v523 = vadd.f32 %v509, 1.0
    %v524 = vadd.f32 %v511, 1.0
    %v525 = vadd.f32 %v513, 1.0
    %v526 = vadd.f32 %v515, 1.0
    %v527 = vadd.f32 %v517, 1.0
    %v528 = vadd.f32 %v519, 1.0
    %v529 = vadd.f32 %v521, 1.0
    %v530 = vrcp.pop %v522
    %v531 = vmul.f32 %v522, %v530
    %v532 = vsub.f32 1.0, %v531
    %v533 = vmul.f32 %v530, %v532
    %v534 = vadd.f32 %v530, %v533
    %vm535 = vweird.f32 %v522
    %vm536 = vweird.f32 %v530
    %vm537 = vmor %vm535, %vm536
    %v538 = vsel %vm537, %v530, %v534
    %v539 = vand.u32 2147483647, %v522
    %vm540 = vcmp.eq.f32.partialorder %v539, 8.507059e+37
    %v541 = vand.u32 %v522, 2147483648
    %v542 = vor.u32 1.1754944e-38, %v541
    %v543 = vsel %vm540, %v542, %v538
    %v544 = vmul.f32 1.0, %v543
    %v545 = vrcp.pop %v523
    %v546 = vmul.f32 %v523, %v545
    %v547 = vsub.f32 1.0, %v546
    %v548 = vmul.f32 %v545, %v547
    %v549 = vadd.f32 %v545, %v548
    %vm550 = vweird.f32 %v523
    %vm551 = vweird.f32 %v545
    %vm552 = vmor %vm550, %vm551
    %v553 = vsel %vm552, %v545, %v549
    %v554 = vand.u32 2147483647, %v523
    %vm555 = vcmp.eq.f32.partialorder %v554, 8.507059e+37
    %v556 = vand.u32 %v523, 2147483648
    %v557 = vor.u32 1.1754944e-38, %v556
    %v558 = vsel %vm555, %v557, %v553
    %v559 = vmul.f32 1.0, %v558
    %v560 = vrcp.pop %v524
    %v561 = vmul.f32 %v524, %v560
    %v562 = vsub.f32 1.0, %v561
    %v563 = vmul.f32 %v560, %v562
    %v564 = vadd.f32 %v560, %v563
    %vm565 = vweird.f32 %v524
    %vm566 = vweird.f32 %v560
    %vm567 = vmor %vm565, %vm566
    %v568 = vsel %vm567, %v560, %v564
    %v569 = vand.u32 2147483647, %v524
    %vm570 = vcmp.eq.f32.partialorder %v569, 8.507059e+37
    %v571 = vand.u32 %v524, 2147483648
    %v572 = vor.u32 1.1754944e-38, %v571
    %v573 = vsel %vm570, %v572, %v568
    %v574 = vmul.f32 1.0, %v573
    %v575 = vrcp.pop %v525
    %v576 = vmul.f32 %v525, %v575
    %v577 = vsub.f32 1.0, %v576
    %v578 = vmul.f32 %v575, %v577
    %v579 = vadd.f32 %v575, %v578
    %vm580 = vweird.f32 %v525
    %vm581 = vweird.f32 %v575
    %vm582 = vmor %vm580, %vm581
    %v583 = vsel %vm582, %v575, %v579
    %v584 = vand.u32 2147483647, %v525
    %vm585 = vcmp.eq.f32.partialorder %v584, 8.507059e+37
    %v586 = vand.u32 %v525, 2147483648
    %v587 = vor.u32 1.1754944e-38, %v586
    %v588 = vsel %vm585, %v587, %v583
    %v589 = vmul.f32 1.0, %v588
    %v590 = vrcp.pop %v526
    %v591 = vmul.f32 %v526, %v590
    %v592 = vsub.f32 1.0, %v591
    %v593 = vmul.f32 %v590, %v592
    %v594 = vadd.f32 %v590, %v593
    %vm595 = vweird.f32 %v526
    %vm596 = vweird.f32 %v590
    %vm597 = vmor %vm595, %vm596
    %v598 = vsel %vm597, %v590, %v594
    %v599 = vand.u32 2147483647, %v526
    %vm600 = vcmp.eq.f32.partialorder %v599, 8.507059e+37
    %v601 = vand.u32 %v526, 2147483648
    %v602 = vor.u32 1.1754944e-38, %v601
    %v603 = vsel %vm600, %v602, %v598
    %v604 = vmul.f32 1.0, %v603
    %v605 = vrcp.pop %v527
    %v606 = vmul.f32 %v527, %v605
    %v607 = vsub.f32 1.0, %v606
    %v608 = vmul.f32 %v605, %v607
    %v609 = vadd.f32 %v605, %v608
    %vm610 = vweird.f32 %v527
    %vm611 = vweird.f32 %v605
    %vm612 = vmor %vm610, %vm611
    %v613 = vsel %vm612, %v605, %v609
    %v614 = vand.u32 2147483647, %v527
    %vm615 = vcmp.eq.f32.partialorder %v614, 8.507059e+37
    %v616 = vand.u32 %v527, 2147483648
    %v617 = vor.u32 1.1754944e-38, %v616
    %v618 = vsel %vm615, %v617, %v613
    %v619 = vmul.f32 1.0, %v618
    %v620 = vrcp.pop %v528
    %v621 = vmul.f32 %v528, %v620
    %v622 = vsub.f32 1.0, %v621
    %v623 = vmul.f32 %v620, %v622
    %v624 = vadd.f32 %v620, %v623
    %vm625 = vweird.f32 %v528
    %vm626 = vweird.f32 %v620
    %vm627 = vmor %vm625, %vm626
    %v628 = vsel %vm627, %v620, %v624
    %v629 = vand.u32 2147483647, %v528
    %vm630 = vcmp.eq.f32.partialorder %v629, 8.507059e+37
    %v631 = vand.u32 %v528, 2147483648
    %v632 = vor.u32 1.1754944e-38, %v631
    %v633 = vsel %vm630, %v632, %v628
    %v634 = vmul.f32 1.0, %v633
    %v635 = vrcp.pop %v529
    %v636 = vmul.f32 %v529, %v635
    %v637 = vsub.f32 1.0, %v636
    %v638 = vmul.f32 %v635, %v637
    %v639 = vadd.f32 %v635, %v638
    %vm640 = vweird.f32 %v529
    %vm641 = vweird.f32 %v635
    %vm642 = vmor %vm640, %vm641
    %v643 = vsel %vm642, %v635, %v639
    %v644 = vand.u32 2147483647, %v529
    %vm645 = vcmp.eq.f32.partialorder %v644, 8.507059e+37
    %v646 = vand.u32 %v529, 2147483648
    %v647 = vor.u32 1.1754944e-38, %v646
    %v648 = vsel %vm645, %v647, %v643
    %v649 = vmul.f32 1.0, %v648
    %v650 = vld [vmem:[%s1 + $0x40] sm:$0xff]
    %v651 = vld [vmem:[%s1 + $0x48] sm:$0xff]
    %v652 = vld [vmem:[%s1 + $0x50] sm:$0xff]
    %v653 = vld [vmem:[%s1 + $0x58] sm:$0xff]
    %v654 = vld [vmem:[%s1 + $0x60] sm:$0xff]
    %v655 = vld [vmem:[%s1 + $0x68] sm:$0xff]
    %v656 = vld [vmem:[%s1 + $0x70] sm:$0xff]
    %v657 = vld [vmem:[%s1 + $0x78] sm:$0xff]
    %v658 = vld [vmem:[%s1 + $0x80] sm:$0xff]
    %v659 = vld [vmem:[%s1 + $0x88] sm:$0xff]
    %v660 = vld [vmem:[%s1 + $0x90] sm:$0xff]
    %v661 = vld [vmem:[%s1 + $0x98] sm:$0xff]
    %v662 = vld [vmem:[%s1 + $0xa0] sm:$0xff]
    %v663 = vld [vmem:[%s1 + $0xa8] sm:$0xff]
    %v664 = vld [vmem:[%s1 + $0xb0] sm:$0xff]
    %v665 = vld [vmem:[%s1 + $0xb8] sm:$0xff]
    %v666 = vld [vmem:[%s2 + $0x40] sm:$0xff]
    %v667 = vld [vmem:[%s2 + $0x48] sm:$0xff]
    %v668 = vld [vmem:[%s2 + $0x50] sm:$0xff]
    %v669 = vld [vmem:[%s2 + $0x58] sm:$0xff]
    %v670 = vld [vmem:[%s2 + $0x60] sm:$0xff]
    %v671 = vld [vmem:[%s2 + $0x68] sm:$0xff]
    %v672 = vld [vmem:[%s2 + $0x70] sm:$0xff]
    %v673 = vld [vmem:[%s2 + $0x78] sm:$0xff]
    %v674 = vld [vmem:[%s2 + $0x80] sm:$0xff]
    %v675 = vld [vmem:[%s2 + $0x88] sm:$0xff]
    %v676 = vld [vmem:[%s2 + $0x90] sm:$0xff]
    %v677 = vld [vmem:[%s2 + $0x98] sm:$0xff]
    %v678 = vld [vmem:[%s2 + $0xa0] sm:$0xff]
    %v679 = vld [vmem:[%s2 + $0xa8] sm:$0xff]
    %v680 = vld [vmem:[%s2 + $0xb0] sm:$0xff]
    %v681 = vld [vmem:[%s2 + $0xb8] sm:$0xff]
    %683 = vset.pattern.permute.xlu0 0
    %684 = vperm.xlu0 %683, %v666
    %v685 = vpop.permute.xlu0 %684
    %688 = vset.pattern.permute.xlu0 0
    %689 = vperm.xlu0 %688, %v667
    %v690 = vpop.permute.xlu0 %689
    %693 = vset.pattern.permute.xlu0 0
    %694 = vperm.xlu0 %693, %v668
    %v695 = vpop.permute.xlu0 %694
    %698 = vset.pattern.permute.xlu0 0
    %699 = vperm.xlu0 %698, %v669
    %v700 = vpop.permute.xlu0 %699
    %703 = vset.pattern.permute.xlu0 0
    %704 = vperm.xlu0 %703, %v670
    %v705 = vpop.permute.xlu0 %704
    %708 = vset.pattern.permute.xlu0 0
    %709 = vperm.xlu0 %708, %v671
    %v710 = vpop.permute.xlu0 %709
    %713 = vset.pattern.permute.xlu0 0
    %714 = vperm.xlu0 %713, %v672
    %v715 = vpop.permute.xlu0 %714
    %718 = vset.pattern.permute.xlu0 0
    %719 = vperm.xlu0 %718, %v673
    %v720 = vpop.permute.xlu0 %719
    %723 = vset.pattern.permute.xlu0 0
    %724 = vperm.xlu0 %723, %v674
    %v725 = vpop.permute.xlu0 %724
    %728 = vset.pattern.permute.xlu0 0
    %729 = vperm.xlu0 %728, %v675
    %v730 = vpop.permute.xlu0 %729
    %733 = vset.pattern.permute.xlu0 0
    %734 = vperm.xlu0 %733, %v676
    %v735 = vpop.permute.xlu0 %734
    %738 = vset.pattern.permute.xlu0 0
    %739 = vperm.xlu0 %738, %v677
    %v740 = vpop.permute.xlu0 %739
    %743 = vset.pattern.permute.xlu0 0
    %744 = vperm.xlu0 %743, %v678
    %v745 = vpop.permute.xlu0 %744
    %748 = vset.pattern.permute.xlu0 0
    %749 = vperm.xlu0 %748, %v679
    %v750 = vpop.permute.xlu0 %749
    %753 = vset.pattern.permute.xlu0 0
    %754 = vperm.xlu0 %753, %v680
    %v755 = vpop.permute.xlu0 %754
    %758 = vset.pattern.permute.xlu0 0
    %759 = vperm.xlu0 %758, %v681
    %v760 = vpop.permute.xlu0 %759
    %vm762 = vcmask 523264
    %v764 = vsel %vm762, %v650, 0
    %v767 = vsel %vm762, %v651, 0
    %v770 = vsel %vm762, %v652, 0
    %v773 = vsel %vm762, %v653, 0
    %v776 = vsel %vm762, %v654, 0
    %v779 = vsel %vm762, %v655, 0
    %v782 = vsel %vm762, %v656, 0
    %v785 = vsel %vm762, %v657, 0
    %v788 = vsel %vm762, %v658, 0
    %v791 = vsel %vm762, %v659, 0
    %v794 = vsel %vm762, %v660, 0
    %v797 = vsel %vm762, %v661, 0
    %v800 = vsel %vm762, %v662, 0
    %v803 = vsel %vm762, %v663, 0
    %v806 = vsel %vm762, %v664, 0
    %v809 = vsel %vm762, %v665, 0
    %811 = vmatpush.msra.mxu0 0.0
    %812 = vmatpush.msra.mxu0 0.0
    %813 = vmatpush.msra.mxu0 0.0
    %814 = vmatpush.msra.mxu0 0.0
    %815 = vmatpush.msra.mxu0 0.0
    %816 = vmatpush.msra.mxu0 0.0
    %817 = vmatpush.msra.mxu0 0.0
    %818 = vmatpush.msra.mxu0 0.0
    %v819 = vand.u32 %v649, 4294901760
    %820 = vmatpush.msra.mxu0 %v819
    %v821 = vand.u32 %v634, 4294901760
    %822 = vmatpush.msra.mxu0 %v821
    %v823 = vand.u32 %v619, 4294901760
    %824 = vmatpush.msra.mxu0 %v823
    %v825 = vand.u32 %v604, 4294901760
    %826 = vmatpush.msra.mxu0 %v825
    %v827 = vand.u32 %v589, 4294901760
    %828 = vmatpush.msra.mxu0 %v827
    %v829 = vand.u32 %v574, 4294901760
    %830 = vmatpush.msra.mxu0 %v829
    %v831 = vand.u32 %v559, 4294901760
    %832 = vmatpush.msra.mxu0 %v831
    %v833 = vand.u32 %v544, 4294901760
    %834 = vmatpush.msra.mxu0 %v833
    %v835 = vand.u32 %v764, 4294901760
    %v836 = vsub.f32 %v764, %v835
    %v837 = vand.u32 %v836, 4294901760
    %v838 = vsub.f32 %v836, %v837
    %v839 = vand.u32 %v838, 4294901760
    %840 = vmatmul.f32.gmra.mxu0 %v839
    %v841 = vpop.f32.mrf.mxu0
    %v842 = vadd.f32 %v685, %v841
    %v843 = vand.u32 %v767, 4294901760
    %v844 = vsub.f32 %v767, %v843
    %v845 = vand.u32 %v844, 4294901760
    %v846 = vsub.f32 %v844, %v845
    %v847 = vand.u32 %v846, 4294901760
    %848 = vmatmul.f32.gmra.mxu0 %v847
    %v849 = vpop.f32.mrf.mxu0
    %v850 = vadd.f32 %v690, %v849
    %v851 = vand.u32 %v770, 4294901760
    %v852 = vsub.f32 %v770, %v851
    %v853 = vand.u32 %v852, 4294901760
    %v854 = vsub.f32 %v852, %v853
    %v855 = vand.u32 %v854, 4294901760
    %856 = vmatmul.f32.gmra.mxu0 %v855
    %v857 = vpop.f32.mrf.mxu0
    %v858 = vadd.f32 %v695, %v857
    %v859 = vand.u32 %v773, 4294901760
    %v860 = vsub.f32 %v773, %v859
    %v861 = vand.u32 %v860, 4294901760
    %v862 = vsub.f32 %v860, %v861
    %v863 = vand.u32 %v862, 4294901760
    %864 = vmatmul.f32.gmra.mxu0 %v863
    %v865 = vpop.f32.mrf.mxu0
    %v866 = vadd.f32 %v700, %v865
    %v867 = vand.u32 %v776, 4294901760
    %v868 = vsub.f32 %v776, %v867
    %v869 = vand.u32 %v868, 4294901760
    %v870 = vsub.f32 %v868, %v869
    %v871 = vand.u32 %v870, 4294901760
    %872 = vmatmul.f32.gmra.mxu0 %v871
    %v873 = vpop.f32.mrf.mxu0
    %v874 = vadd.f32 %v705, %v873
    %v875 = vand.u32 %v779, 4294901760
    %v876 = vsub.f32 %v779, %v875
    %v877 = vand.u32 %v876, 4294901760
    %v878 = vsub.f32 %v876, %v877
    %v879 = vand.u32 %v878, 4294901760
    %880 = vmatmul.f32.gmra.mxu0 %v879
    %v881 = vpop.f32.mrf.mxu0
    %v882 = vadd.f32 %v710, %v881
    %v883 = vand.u32 %v782, 4294901760
    %v884 = vsub.f32 %v782, %v883
    %v885 = vand.u32 %v884, 4294901760
    %v886 = vsub.f32 %v884, %v885
    %v887 = vand.u32 %v886, 4294901760
    %888 = vmatmul.f32.gmra.mxu0 %v887
    %v889 = vpop.f32.mrf.mxu0
    %v890 = vadd.f32 %v715, %v889
    %v891 = vand.u32 %v785, 4294901760
    %v892 = vsub.f32 %v785, %v891
    %v893 = vand.u32 %v892, 4294901760
    %v894 = vsub.f32 %v892, %v893
    %v895 = vand.u32 %v894, 4294901760
    %896 = vmatmul.f32.gmra.mxu0 %v895
    %v897 = vpop.f32.mrf.mxu0
    %v898 = vadd.f32 %v720, %v897
    %v899 = vand.u32 %v788, 4294901760
    %v900 = vsub.f32 %v788, %v899
    %v901 = vand.u32 %v900, 4294901760
    %v902 = vsub.f32 %v900, %v901
    %v903 = vand.u32 %v902, 4294901760
    %904 = vmatmul.f32.gmra.mxu0 %v903
    %v905 = vpop.f32.mrf.mxu0
    %v906 = vadd.f32 %v725, %v905
    %v907 = vand.u32 %v791, 4294901760
    %v908 = vsub.f32 %v791, %v907
    %v909 = vand.u32 %v908, 4294901760
    %v910 = vsub.f32 %v908, %v909
    %v911 = vand.u32 %v910, 4294901760
    %912 = vmatmul.f32.gmra.mxu0 %v911
    %v913 = vpop.f32.mrf.mxu0
    %v914 = vadd.f32 %v730, %v913
    %v915 = vand.u32 %v794, 4294901760
    %v916 = vsub.f32 %v794, %v915
    %v917 = vand.u32 %v916, 4294901760
    %v918 = vsub.f32 %v916, %v917
    %v919 = vand.u32 %v918, 4294901760
    %920 = vmatmul.f32.gmra.mxu0 %v919
    %v921 = vpop.f32.mrf.mxu0
    %v922 = vadd.f32 %v735, %v921
    %v923 = vand.u32 %v797, 4294901760
    %v924 = vsub.f32 %v797, %v923
    %v925 = vand.u32 %v924, 4294901760
    %v926 = vsub.f32 %v924, %v925
    %v927 = vand.u32 %v926, 4294901760
    %928 = vmatmul.f32.gmra.mxu0 %v927
    %v929 = vpop.f32.mrf.mxu0
    %v930 = vadd.f32 %v740, %v929
    %v931 = vand.u32 %v800, 4294901760
    %v932 = vsub.f32 %v800, %v931
    %v933 = vand.u32 %v932, 4294901760
    %v934 = vsub.f32 %v932, %v933
    %v935 = vand.u32 %v934, 4294901760
    %936 = vmatmul.f32.gmra.mxu0 %v935
    %v937 = vpop.f32.mrf.mxu0
    %v938 = vadd.f32 %v745, %v937
    %v939 = vand.u32 %v803, 4294901760
    %v940 = vsub.f32 %v803, %v939
    %v941 = vand.u32 %v940, 4294901760
    %v942 = vsub.f32 %v940, %v941
    %v943 = vand.u32 %v942, 4294901760
    %944 = vmatmul.f32.gmra.mxu0 %v943
    %v945 = vpop.f32.mrf.mxu0
    %v946 = vadd.f32 %v750, %v945
    %v947 = vand.u32 %v806, 4294901760
    %v948 = vsub.f32 %v806, %v947
    %v949 = vand.u32 %v948, 4294901760
    %v950 = vsub.f32 %v948, %v949
    %v951 = vand.u32 %v950, 4294901760
    %952 = vmatmul.f32.gmra.mxu0 %v951
    %v953 = vpop.f32.mrf.mxu0
    %v954 = vadd.f32 %v755, %v953
    %v955 = vand.u32 %v809, 4294901760
    %v956 = vsub.f32 %v809, %v955
    %v957 = vand.u32 %v956, 4294901760
    %v958 = vsub.f32 %v956, %v957
    %v959 = vand.u32 %v958, 4294901760
    %960 = vmatmul.f32.gmra.mxu0 %v959
    %v961 = vpop.f32.mrf.mxu0
    %v962 = vadd.f32 %v760, %v961
    %963 = vdwg.mxu0
    %964 = vmatpush.msra.mxu0 0.0
    %965 = vmatpush.msra.mxu0 0.0
    %966 = vmatpush.msra.mxu0 0.0
    %967 = vmatpush.msra.mxu0 0.0
    %968 = vmatpush.msra.mxu0 0.0
    %969 = vmatpush.msra.mxu0 0.0
    %970 = vmatpush.msra.mxu0 0.0
    %971 = vmatpush.msra.mxu0 0.0
    %v972 = vand.u32 %v649, 4294901760
    %v973 = vsub.f32 %v649, %v972
    %v974 = vand.u32 %v973, 4294901760
    %v975 = vsub.f32 %v973, %v974
    %v976 = vand.u32 %v975, 4294901760
    %977 = vmatpush.msra.mxu0 %v976
    %v978 = vand.u32 %v634, 4294901760
    %v979 = vsub.f32 %v634, %v978
    %v980 = vand.u32 %v979, 4294901760
    %v981 = vsub.f32 %v979, %v980
    %v982 = vand.u32 %v981, 4294901760
    %983 = vmatpush.msra.mxu0 %v982
    %v984 = vand.u32 %v619, 4294901760
    %v985 = vsub.f32 %v619, %v984
    %v986 = vand.u32 %v985, 4294901760
    %v987 = vsub.f32 %v985, %v986
    %v988 = vand.u32 %v987, 4294901760
    %989 = vmatpush.msra.mxu0 %v988
    %v990 = vand.u32 %v604, 4294901760
    %v991 = vsub.f32 %v604, %v990
    %v992 = vand.u32 %v991, 4294901760
    %v993 = vsub.f32 %v991, %v992
    %v994 = vand.u32 %v993, 4294901760
    %995 = vmatpush.msra.mxu0 %v994
    %v996 = vand.u32 %v589, 4294901760
    %v997 = vsub.f32 %v589, %v996
    %v998 = vand.u32 %v997, 4294901760
    %v999 = vsub.f32 %v997, %v998
    %v1000 = vand.u32 %v999, 4294901760
    %1001 = vmatpush.msra.mxu0 %v1000
    %v1002 = vand.u32 %v574, 4294901760
    %v1003 = vsub.f32 %v574, %v1002
    %v1004 = vand.u32 %v1003, 4294901760
    %v1005 = vsub.f32 %v1003, %v1004
    %v1006 = vand.u32 %v1005, 4294901760
    %1007 = vmatpush.msra.mxu0 %v1006
    %v1008 = vand.u32 %v559, 4294901760
    %v1009 = vsub.f32 %v559, %v1008
    %v1010 = vand.u32 %v1009, 4294901760
    %v1011 = vsub.f32 %v1009, %v1010
    %v1012 = vand.u32 %v1011, 4294901760
    %1013 = vmatpush.msra.mxu0 %v1012
    %v1014 = vand.u32 %v544, 4294901760
    %v1015 = vsub.f32 %v544, %v1014
    %v1016 = vand.u32 %v1015, 4294901760
    %v1017 = vsub.f32 %v1015, %v1016
    %v1018 = vand.u32 %v1017, 4294901760
    %1019 = vmatpush.msra.mxu0 %v1018
    %v1020 = vand.u32 %v764, 4294901760
    %1021 = vmatmul.f32.gmra.mxu0 %v1020
    %v1022 = vpop.f32.mrf.mxu0
    %v1023 = vadd.f32 %v842, %v1022
    %v1024 = vand.u32 %v767, 4294901760
    %1025 = vmatmul.f32.gmra.mxu0 %v1024
    %v1026 = vpop.f32.mrf.mxu0
    %v1027 = vadd.f32 %v850, %v1026
    %v1028 = vand.u32 %v770, 4294901760
    %1029 = vmatmul.f32.gmra.mxu0 %v1028
    %v1030 = vpop.f32.mrf.mxu0
    %v1031 = vadd.f32 %v858, %v1030
    %v1032 = vand.u32 %v773, 4294901760
    %1033 = vmatmul.f32.gmra.mxu0 %v1032
    %v1034 = vpop.f32.mrf.mxu0
    %v1035 = vadd.f32 %v866, %v1034
    %v1036 = vand.u32 %v776, 4294901760
    %1037 = vmatmul.f32.gmra.mxu0 %v1036
    %v1038 = vpop.f32.mrf.mxu0
    %v1039 = vadd.f32 %v874, %v1038
    %v1040 = vand.u32 %v779, 4294901760
    %1041 = vmatmul.f32.gmra.mxu0 %v1040
    %v1042 = vpop.f32.mrf.mxu0
    %v1043 = vadd.f32 %v882, %v1042
    %v1044 = vand.u32 %v782, 4294901760
    %1045 = vmatmul.f32.gmra.mxu0 %v1044
    %v1046 = vpop.f32.mrf.mxu0
    %v1047 = vadd.f32 %v890, %v1046
    %v1048 = vand.u32 %v785, 4294901760
    %1049 = vmatmul.f32.gmra.mxu0 %v1048
    %v1050 = vpop.f32.mrf.mxu0
    %v1051 = vadd.f32 %v898, %v1050
    %v1052 = vand.u32 %v788, 4294901760
    %1053 = vmatmul.f32.gmra.mxu0 %v1052
    %v1054 = vpop.f32.mrf.mxu0
    %v1055 = vadd.f32 %v906, %v1054
    %v1056 = vand.u32 %v791, 4294901760
    %1057 = vmatmul.f32.gmra.mxu0 %v1056
    %v1058 = vpop.f32.mrf.mxu0
    %v1059 = vadd.f32 %v914, %v1058
    %v1060 = vand.u32 %v794, 4294901760
    %1061 = vmatmul.f32.gmra.mxu0 %v1060
    %v1062 = vpop.f32.mrf.mxu0
    %v1063 = vadd.f32 %v922, %v1062
    %v1064 = vand.u32 %v797, 4294901760
    %1065 = vmatmul.f32.gmra.mxu0 %v1064
    %v1066 = vpop.f32.mrf.mxu0
    %v1067 = vadd.f32 %v930, %v1066
    %v1068 = vand.u32 %v800, 4294901760
    %1069 = vmatmul.f32.gmra.mxu0 %v1068
    %v1070 = vpop.f32.mrf.mxu0
    %v1071 = vadd.f32 %v938, %v1070
    %v1072 = vand.u32 %v803, 4294901760
    %1073 = vmatmul.f32.gmra.mxu0 %v1072
    %v1074 = vpop.f32.mrf.mxu0
    %v1075 = vadd.f32 %v946, %v1074
    %v1076 = vand.u32 %v806, 4294901760
    %1077 = vmatmul.f32.gmra.mxu0 %v1076
    %v1078 = vpop.f32.mrf.mxu0
    %v1079 = vadd.f32 %v954, %v1078
    %v1080 = vand.u32 %v809, 4294901760
    %1081 = vmatmul.f32.gmra.mxu0 %v1080
    %v1082 = vpop.f32.mrf.mxu0
    %v1083 = vadd.f32 %v962, %v1082
    %1084 = vdwg.mxu0
    %1085 = vmatpush.msra.mxu0 0.0
    %1086 = vmatpush.msra.mxu0 0.0
    %1087 = vmatpush.msra.mxu0 0.0
    %1088 = vmatpush.msra.mxu0 0.0
    %1089 = vmatpush.msra.mxu0 0.0
    %1090 = vmatpush.msra.mxu0 0.0
    %1091 = vmatpush.msra.mxu0 0.0
    %1092 = vmatpush.msra.mxu0 0.0
    %v1093 = vand.u32 %v649, 4294901760
    %v1094 = vsub.f32 %v649, %v1093
    %1095 = vmatpush.msra.mxu0 %v1094
    %v1096 = vand.u32 %v634, 4294901760
    %v1097 = vsub.f32 %v634, %v1096
    %1098 = vmatpush.msra.mxu0 %v1097
    %v1099 = vand.u32 %v619, 4294901760
    %v1100 = vsub.f32 %v619, %v1099
    %1101 = vmatpush.msra.mxu0 %v1100
    %v1102 = vand.u32 %v604, 4294901760
    %v1103 = vsub.f32 %v604, %v1102
    %1104 = vmatpush.msra.mxu0 %v1103
    %v1105 = vand.u32 %v589, 4294901760
    %v1106 = vsub.f32 %v589, %v1105
    %1107 = vmatpush.msra.mxu0 %v1106
    %v1108 = vand.u32 %v574, 4294901760
    %v1109 = vsub.f32 %v574, %v1108
    %1110 = vmatpush.msra.mxu0 %v1109
    %v1111 = vand.u32 %v559, 4294901760
    %v1112 = vsub.f32 %v559, %v1111
    %1113 = vmatpush.msra.mxu0 %v1112
    %v1114 = vand.u32 %v544, 4294901760
    %v1115 = vsub.f32 %v544, %v1114
    %1116 = vmatpush.msra.mxu0 %v1115
    %v1117 = vand.u32 %v764, 4294901760
    %v1118 = vsub.f32 %v764, %v1117
    %1119 = vmatmul.f32.gmra.mxu0 %v1118
    %v1120 = vpop.f32.mrf.mxu0
    %v1121 = vadd.f32 %v1023, %v1120
    %v1122 = vand.u32 %v767, 4294901760
    %v1123 = vsub.f32 %v767, %v1122
    %1124 = vmatmul.f32.gmra.mxu0 %v1123
    %v1125 = vpop.f32.mrf.mxu0
    %v1126 = vadd.f32 %v1027, %v1125
    %v1127 = vand.u32 %v770, 4294901760
    %v1128 = vsub.f32 %v770, %v1127
    %1129 = vmatmul.f32.gmra.mxu0 %v1128
    %v1130 = vpop.f32.mrf.mxu0
    %v1131 = vadd.f32 %v1031, %v1130
    %v1132 = vand.u32 %v773, 4294901760
    %v1133 = vsub.f32 %v773, %v1132
    %1134 = vmatmul.f32.gmra.mxu0 %v1133
    %v1135 = vpop.f32.mrf.mxu0
    %v1136 = vadd.f32 %v1035, %v1135
    %v1137 = vand.u32 %v776, 4294901760
    %v1138 = vsub.f32 %v776, %v1137
    %1139 = vmatmul.f32.gmra.mxu0 %v1138
    %v1140 = vpop.f32.mrf.mxu0
    %v1141 = vadd.f32 %v1039, %v1140
    %v1142 = vand.u32 %v779, 4294901760
    %v1143 = vsub.f32 %v779, %v1142
    %1144 = vmatmul.f32.gmra.mxu0 %v1143
    %v1145 = vpop.f32.mrf.mxu0
    %v1146 = vadd.f32 %v1043, %v1145
    %v1147 = vand.u32 %v782, 4294901760
    %v1148 = vsub.f32 %v782, %v1147
    %1149 = vmatmul.f32.gmra.mxu0 %v1148
    %v1150 = vpop.f32.mrf.mxu0
    %v1151 = vadd.f32 %v1047, %v1150
    %v1152 = vand.u32 %v785, 4294901760
    %v1153 = vsub.f32 %v785, %v1152
    %1154 = vmatmul.f32.gmra.mxu0 %v1153
    %v1155 = vpop.f32.mrf.mxu0
    %v1156 = vadd.f32 %v1051, %v1155
    %v1157 = vand.u32 %v788, 4294901760
    %v1158 = vsub.f32 %v788, %v1157
    %1159 = vmatmul.f32.gmra.mxu0 %v1158
    %v1160 = vpop.f32.mrf.mxu0
    %v1161 = vadd.f32 %v1055, %v1160
    %v1162 = vand.u32 %v791, 4294901760
    %v1163 = vsub.f32 %v791, %v1162
    %1164 = vmatmul.f32.gmra.mxu0 %v1163
    %v1165 = vpop.f32.mrf.mxu0
    %v1166 = vadd.f32 %v1059, %v1165
    %v1167 = vand.u32 %v794, 4294901760
    %v1168 = vsub.f32 %v794, %v1167
    %1169 = vmatmul.f32.gmra.mxu0 %v1168
    %v1170 = vpop.f32.mrf.mxu0
    %v1171 = vadd.f32 %v1063, %v1170
    %v1172 = vand.u32 %v797, 4294901760
    %v1173 = vsub.f32 %v797, %v1172
    %1174 = vmatmul.f32.gmra.mxu0 %v1173
    %v1175 = vpop.f32.mrf.mxu0
    %v1176 = vadd.f32 %v1067, %v1175
    %v1177 = vand.u32 %v800, 4294901760
    %v1178 = vsub.f32 %v800, %v1177
    %1179 = vmatmul.f32.gmra.mxu0 %v1178
    %v1180 = vpop.f32.mrf.mxu0
    %v1181 = vadd.f32 %v1071, %v1180
    %v1182 = vand.u32 %v803, 4294901760
    %v1183 = vsub.f32 %v803, %v1182
    %1184 = vmatmul.f32.gmra.mxu0 %v1183
    %v1185 = vpop.f32.mrf.mxu0
    %v1186 = vadd.f32 %v1075, %v1185
    %v1187 = vand.u32 %v806, 4294901760
    %v1188 = vsub.f32 %v806, %v1187
    %1189 = vmatmul.f32.gmra.mxu0 %v1188
    %v1190 = vpop.f32.mrf.mxu0
    %v1191 = vadd.f32 %v1079, %v1190
    %v1192 = vand.u32 %v809, 4294901760
    %v1193 = vsub.f32 %v809, %v1192
    %1194 = vmatmul.f32.gmra.mxu0 %v1193
    %v1195 = vpop.f32.mrf.mxu0
    %v1196 = vadd.f32 %v1083, %v1195
    %1197 = vdwg.mxu0
    %1198 = vmatpush.msra.mxu0 0.0
    %1199 = vmatpush.msra.mxu0 0.0
    %1200 = vmatpush.msra.mxu0 0.0
    %1201 = vmatpush.msra.mxu0 0.0
    %1202 = vmatpush.msra.mxu0 0.0
    %1203 = vmatpush.msra.mxu0 0.0
    %1204 = vmatpush.msra.mxu0 0.0
    %1205 = vmatpush.msra.mxu0 0.0
    %v1206 = vand.u32 %v649, 4294901760
    %1207 = vmatpush.msra.mxu0 %v1206
    %v1208 = vand.u32 %v634, 4294901760
    %1209 = vmatpush.msra.mxu0 %v1208
    %v1210 = vand.u32 %v619, 4294901760
    %1211 = vmatpush.msra.mxu0 %v1210
    %v1212 = vand.u32 %v604, 4294901760
    %1213 = vmatpush.msra.mxu0 %v1212
    %v1214 = vand.u32 %v589, 4294901760
    %1215 = vmatpush.msra.mxu0 %v1214
    %v1216 = vand.u32 %v574, 4294901760
    %1217 = vmatpush.msra.mxu0 %v1216
    %v1218 = vand.u32 %v559, 4294901760
    %1219 = vmatpush.msra.mxu0 %v1218
    %v1220 = vand.u32 %v544, 4294901760
    %1221 = vmatpush.msra.mxu0 %v1220
    %v1222 = vand.u32 %v764, 4294901760
    %v1223 = vsub.f32 %v764, %v1222
    %v1224 = vand.u32 %v1223, 4294901760
    %1225 = vmatmul.f32.gmra.mxu0 %v1224
    %v1226 = vpop.f32.mrf.mxu0
    %v1227 = vadd.f32 %v1121, %v1226
    %v1228 = vand.u32 %v767, 4294901760
    %v1229 = vsub.f32 %v767, %v1228
    %v1230 = vand.u32 %v1229, 4294901760
    %1231 = vmatmul.f32.gmra.mxu0 %v1230
    %v1232 = vpop.f32.mrf.mxu0
    %v1233 = vadd.f32 %v1126, %v1232
    %v1234 = vand.u32 %v770, 4294901760
    %v1235 = vsub.f32 %v770, %v1234
    %v1236 = vand.u32 %v1235, 4294901760
    %1237 = vmatmul.f32.gmra.mxu0 %v1236
    %v1238 = vpop.f32.mrf.mxu0
    %v1239 = vadd.f32 %v1131, %v1238
    %v1240 = vand.u32 %v773, 4294901760
    %v1241 = vsub.f32 %v773, %v1240
    %v1242 = vand.u32 %v1241, 4294901760
    %1243 = vmatmul.f32.gmra.mxu0 %v1242
    %v1244 = vpop.f32.mrf.mxu0
    %v1245 = vadd.f32 %v1136, %v1244
    %v1246 = vand.u32 %v776, 4294901760
    %v1247 = vsub.f32 %v776, %v1246
    %v1248 = vand.u32 %v1247, 4294901760
    %1249 = vmatmul.f32.gmra.mxu0 %v1248
    %v1250 = vpop.f32.mrf.mxu0
    %v1251 = vadd.f32 %v1141, %v1250
    %v1252 = vand.u32 %v779, 4294901760
    %v1253 = vsub.f32 %v779, %v1252
    %v1254 = vand.u32 %v1253, 4294901760
    %1255 = vmatmul.f32.gmra.mxu0 %v1254
    %v1256 = vpop.f32.mrf.mxu0
    %v1257 = vadd.f32 %v1146, %v1256
    %v1258 = vand.u32 %v782, 4294901760
    %v1259 = vsub.f32 %v782, %v1258
    %v1260 = vand.u32 %v1259, 4294901760
    %1261 = vmatmul.f32.gmra.mxu0 %v1260
    %v1262 = vpop.f32.mrf.mxu0
    %v1263 = vadd.f32 %v1151, %v1262
    %v1264 = vand.u32 %v785, 4294901760
    %v1265 = vsub.f32 %v785, %v1264
    %v1266 = vand.u32 %v1265, 4294901760
    %1267 = vmatmul.f32.gmra.mxu0 %v1266
    %v1268 = vpop.f32.mrf.mxu0
    %v1269 = vadd.f32 %v1156, %v1268
    %v1270 = vand.u32 %v788, 4294901760
    %v1271 = vsub.f32 %v788, %v1270
    %v1272 = vand.u32 %v1271, 4294901760
    %1273 = vmatmul.f32.gmra.mxu0 %v1272
    %v1274 = vpop.f32.mrf.mxu0
    %v1275 = vadd.f32 %v1161, %v1274
    %v1276 = vand.u32 %v791, 4294901760
    %v1277 = vsub.f32 %v791, %v1276
    %v1278 = vand.u32 %v1277, 4294901760
    %1279 = vmatmul.f32.gmra.mxu0 %v1278
    %v1280 = vpop.f32.mrf.mxu0
    %v1281 = vadd.f32 %v1166, %v1280
    %v1282 = vand.u32 %v794, 4294901760
    %v1283 = vsub.f32 %v794, %v1282
    %v1284 = vand.u32 %v1283, 4294901760
    %1285 = vmatmul.f32.gmra.mxu0 %v1284
    %v1286 = vpop.f32.mrf.mxu0
    %v1287 = vadd.f32 %v1171, %v1286
    %v1288 = vand.u32 %v797, 4294901760
    %v1289 = vsub.f32 %v797, %v1288
    %v1290 = vand.u32 %v1289, 4294901760
    %1291 = vmatmul.f32.gmra.mxu0 %v1290
    %v1292 = vpop.f32.mrf.mxu0
    %v1293 = vadd.f32 %v1176, %v1292
    %v1294 = vand.u32 %v800, 4294901760
    %v1295 = vsub.f32 %v800, %v1294
    %v1296 = vand.u32 %v1295, 4294901760
    %1297 = vmatmul.f32.gmra.mxu0 %v1296
    %v1298 = vpop.f32.mrf.mxu0
    %v1299 = vadd.f32 %v1181, %v1298
    %v1300 = vand.u32 %v803, 4294901760
    %v1301 = vsub.f32 %v803, %v1300
    %v1302 = vand.u32 %v1301, 4294901760
    %1303 = vmatmul.f32.gmra.mxu0 %v1302
    %v1304 = vpop.f32.mrf.mxu0
    %v1305 = vadd.f32 %v1186, %v1304
    %v1306 = vand.u32 %v806, 4294901760
    %v1307 = vsub.f32 %v806, %v1306
    %v1308 = vand.u32 %v1307, 4294901760
    %1309 = vmatmul.f32.gmra.mxu0 %v1308
    %v1310 = vpop.f32.mrf.mxu0
    %v1311 = vadd.f32 %v1191, %v1310
    %v1312 = vand.u32 %v809, 4294901760
    %v1313 = vsub.f32 %v809, %v1312
    %v1314 = vand.u32 %v1313, 4294901760
    %1315 = vmatmul.f32.gmra.mxu0 %v1314
    %v1316 = vpop.f32.mrf.mxu0
    %v1317 = vadd.f32 %v1196, %v1316
    %1318 = vdwg.mxu0
    %1319 = vmatpush.msra.mxu0 0.0
    %1320 = vmatpush.msra.mxu0 0.0
    %1321 = vmatpush.msra.mxu0 0.0
    %1322 = vmatpush.msra.mxu0 0.0
    %1323 = vmatpush.msra.mxu0 0.0
    %1324 = vmatpush.msra.mxu0 0.0
    %1325 = vmatpush.msra.mxu0 0.0
    %1326 = vmatpush.msra.mxu0 0.0
    %v1327 = vand.u32 %v649, 4294901760
    %v1328 = vsub.f32 %v649, %v1327
    %v1329 = vand.u32 %v1328, 4294901760
    %1330 = vmatpush.msra.mxu0 %v1329
    %v1331 = vand.u32 %v634, 4294901760
    %v1332 = vsub.f32 %v634, %v1331
    %v1333 = vand.u32 %v1332, 4294901760
    %1334 = vmatpush.msra.mxu0 %v1333
    %v1335 = vand.u32 %v619, 4294901760
    %v1336 = vsub.f32 %v619, %v1335
    %v1337 = vand.u32 %v1336, 4294901760
    %1338 = vmatpush.msra.mxu0 %v1337
    %v1339 = vand.u32 %v604, 4294901760
    %v1340 = vsub.f32 %v604, %v1339
    %v1341 = vand.u32 %v1340, 4294901760
    %1342 = vmatpush.msra.mxu0 %v1341
    %v1343 = vand.u32 %v589, 4294901760
    %v1344 = vsub.f32 %v589, %v1343
    %v1345 = vand.u32 %v1344, 4294901760
    %1346 = vmatpush.msra.mxu0 %v1345
    %v1347 = vand.u32 %v574, 4294901760
    %v1348 = vsub.f32 %v574, %v1347
    %v1349 = vand.u32 %v1348, 4294901760
    %1350 = vmatpush.msra.mxu0 %v1349
    %v1351 = vand.u32 %v559, 4294901760
    %v1352 = vsub.f32 %v559, %v1351
    %v1353 = vand.u32 %v1352, 4294901760
    %1354 = vmatpush.msra.mxu0 %v1353
    %v1355 = vand.u32 %v544, 4294901760
    %v1356 = vsub.f32 %v544, %v1355
    %v1357 = vand.u32 %v1356, 4294901760
    %1358 = vmatpush.msra.mxu0 %v1357
    %v1359 = vand.u32 %v764, 4294901760
    %1360 = vmatmul.f32.gmra.mxu0 %v1359
    %v1361 = vpop.f32.mrf.mxu0
    %v1362 = vadd.f32 %v1227, %v1361
    %v1363 = vand.u32 %v767, 4294901760
    %1364 = vmatmul.f32.gmra.mxu0 %v1363
    %v1365 = vpop.f32.mrf.mxu0
    %v1366 = vadd.f32 %v1233, %v1365
    %v1367 = vand.u32 %v770, 4294901760
    %1368 = vmatmul.f32.gmra.mxu0 %v1367
    %v1369 = vpop.f32.mrf.mxu0
    %v1370 = vadd.f32 %v1239, %v1369
    %v1371 = vand.u32 %v773, 4294901760
    %1372 = vmatmul.f32.gmra.mxu0 %v1371
    %v1373 = vpop.f32.mrf.mxu0
    %v1374 = vadd.f32 %v1245, %v1373
    %v1375 = vand.u32 %v776, 4294901760
    %1376 = vmatmul.f32.gmra.mxu0 %v1375
    %v1377 = vpop.f32.mrf.mxu0
    %v1378 = vadd.f32 %v1251, %v1377
    %v1379 = vand.u32 %v779, 4294901760
    %1380 = vmatmul.f32.gmra.mxu0 %v1379
    %v1381 = vpop.f32.mrf.mxu0
    %v1382 = vadd.f32 %v1257, %v1381
    %v1383 = vand.u32 %v782, 4294901760
    %1384 = vmatmul.f32.gmra.mxu0 %v1383
    %v1385 = vpop.f32.mrf.mxu0
    %v1386 = vadd.f32 %v1263, %v1385
    %v1387 = vand.u32 %v785, 4294901760
    %1388 = vmatmul.f32.gmra.mxu0 %v1387
    %v1389 = vpop.f32.mrf.mxu0
    %v1390 = vadd.f32 %v1269, %v1389
    %v1391 = vand.u32 %v788, 4294901760
    %1392 = vmatmul.f32.gmra.mxu0 %v1391
    %v1393 = vpop.f32.mrf.mxu0
    %v1394 = vadd.f32 %v1275, %v1393
    %v1395 = vand.u32 %v791, 4294901760
    %1396 = vmatmul.f32.gmra.mxu0 %v1395
    %v1397 = vpop.f32.mrf.mxu0
    %v1398 = vadd.f32 %v1281, %v1397
    %v1399 = vand.u32 %v794, 4294901760
    %1400 = vmatmul.f32.gmra.mxu0 %v1399
    %v1401 = vpop.f32.mrf.mxu0
    %v1402 = vadd.f32 %v1287, %v1401
    %v1403 = vand.u32 %v797, 4294901760
    %1404 = vmatmul.f32.gmra.mxu0 %v1403
    %v1405 = vpop.f32.mrf.mxu0
    %v1406 = vadd.f32 %v1293, %v1405
    %v1407 = vand.u32 %v800, 4294901760
    %1408 = vmatmul.f32.gmra.mxu0 %v1407
    %v1409 = vpop.f32.mrf.mxu0
    %v1410 = vadd.f32 %v1299, %v1409
    %v1411 = vand.u32 %v803, 4294901760
    %1412 = vmatmul.f32.gmra.mxu0 %v1411
    %v1413 = vpop.f32.mrf.mxu0
    %v1414 = vadd.f32 %v1305, %v1413
    %v1415 = vand.u32 %v806, 4294901760
    %1416 = vmatmul.f32.gmra.mxu0 %v1415
    %v1417 = vpop.f32.mrf.mxu0
    %v1418 = vadd.f32 %v1311, %v1417
    %v1419 = vand.u32 %v809, 4294901760
    %1420 = vmatmul.f32.gmra.mxu0 %v1419
    %v1421 = vpop.f32.mrf.mxu0
    %v1422 = vadd.f32 %v1317, %v1421
    %1423 = vdwg.mxu0
    %1424 = vmatpush.msra.mxu0 0.0
    %1425 = vmatpush.msra.mxu0 0.0
    %1426 = vmatpush.msra.mxu0 0.0
    %1427 = vmatpush.msra.mxu0 0.0
    %1428 = vmatpush.msra.mxu0 0.0
    %1429 = vmatpush.msra.mxu0 0.0
    %1430 = vmatpush.msra.mxu0 0.0
    %1431 = vmatpush.msra.mxu0 0.0
    %v1432 = vand.u32 %v649, 4294901760
    %1433 = vmatpush.msra.mxu0 %v1432
    %v1434 = vand.u32 %v634, 4294901760
    %1435 = vmatpush.msra.mxu0 %v1434
    %v1436 = vand.u32 %v619, 4294901760
    %1437 = vmatpush.msra.mxu0 %v1436
    %v1438 = vand.u32 %v604, 4294901760
    %1439 = vmatpush.msra.mxu0 %v1438
    %v1440 = vand.u32 %v589, 4294901760
    %1441 = vmatpush.msra.mxu0 %v1440
    %v1442 = vand.u32 %v574, 4294901760
    %1443 = vmatpush.msra.mxu0 %v1442
    %v1444 = vand.u32 %v559, 4294901760
    %1445 = vmatpush.msra.mxu0 %v1444
    %v1446 = vand.u32 %v544, 4294901760
    %1447 = vmatpush.msra.mxu0 %v1446
    %v1448 = vand.u32 %v764, 4294901760
    %1449 = vmatmul.f32.gmra.mxu0 %v1448
    %v1450 = vpop.f32.mrf.mxu0
    %v1451 = vadd.f32 %v1362, %v1450
    %v1452 = vand.u32 %v767, 4294901760
    %1453 = vmatmul.f32.gmra.mxu0 %v1452
    %v1454 = vpop.f32.mrf.mxu0
    %v1455 = vadd.f32 %v1366, %v1454
    %v1456 = vand.u32 %v770, 4294901760
    %1457 = vmatmul.f32.gmra.mxu0 %v1456
    %v1458 = vpop.f32.mrf.mxu0
    %v1459 = vadd.f32 %v1370, %v1458
    %v1460 = vand.u32 %v773, 4294901760
    %1461 = vmatmul.f32.gmra.mxu0 %v1460
    %v1462 = vpop.f32.mrf.mxu0
    %v1463 = vadd.f32 %v1374, %v1462
    %v1464 = vand.u32 %v776, 4294901760
    %1465 = vmatmul.f32.gmra.mxu0 %v1464
    %v1466 = vpop.f32.mrf.mxu0
    %v1467 = vadd.f32 %v1378, %v1466
    %v1468 = vand.u32 %v779, 4294901760
    %1469 = vmatmul.f32.gmra.mxu0 %v1468
    %v1470 = vpop.f32.mrf.mxu0
    %v1471 = vadd.f32 %v1382, %v1470
    %v1472 = vand.u32 %v782, 4294901760
    %1473 = vmatmul.f32.gmra.mxu0 %v1472
    %v1474 = vpop.f32.mrf.mxu0
    %v1475 = vadd.f32 %v1386, %v1474
    %v1476 = vand.u32 %v785, 4294901760
    %1477 = vmatmul.f32.gmra.mxu0 %v1476
    %v1478 = vpop.f32.mrf.mxu0
    %v1479 = vadd.f32 %v1390, %v1478
    %v1480 = vand.u32 %v788, 4294901760
    %1481 = vmatmul.f32.gmra.mxu0 %v1480
    %v1482 = vpop.f32.mrf.mxu0
    %v1483 = vadd.f32 %v1394, %v1482
    %v1484 = vand.u32 %v791, 4294901760
    %1485 = vmatmul.f32.gmra.mxu0 %v1484
    %v1486 = vpop.f32.mrf.mxu0
    %v1487 = vadd.f32 %v1398, %v1486
    %v1488 = vand.u32 %v794, 4294901760
    %1489 = vmatmul.f32.gmra.mxu0 %v1488
    %v1490 = vpop.f32.mrf.mxu0
    %v1491 = vadd.f32 %v1402, %v1490
    %v1492 = vand.u32 %v797, 4294901760
    %1493 = vmatmul.f32.gmra.mxu0 %v1492
    %v1494 = vpop.f32.mrf.mxu0
    %v1495 = vadd.f32 %v1406, %v1494
    %v1496 = vand.u32 %v800, 4294901760
    %1497 = vmatmul.f32.gmra.mxu0 %v1496
    %v1498 = vpop.f32.mrf.mxu0
    %v1499 = vadd.f32 %v1410, %v1498
    %v1500 = vand.u32 %v803, 4294901760
    %1501 = vmatmul.f32.gmra.mxu0 %v1500
    %v1502 = vpop.f32.mrf.mxu0
    %v1503 = vadd.f32 %v1414, %v1502
    %v1504 = vand.u32 %v806, 4294901760
    %1505 = vmatmul.f32.gmra.mxu0 %v1504
    %v1506 = vpop.f32.mrf.mxu0
    %v1507 = vadd.f32 %v1418, %v1506
    %v1508 = vand.u32 %v809, 4294901760
    %1509 = vmatmul.f32.gmra.mxu0 %v1508
    %v1510 = vpop.f32.mrf.mxu0
    %v1511 = vadd.f32 %v1422, %v1510
    %1512 = vdwg.mxu0
    %v1513 = vxor.u32 %v1451, 2147483648
    %v1514 = vxor.u32 %v1455, 2147483648
    %v1515 = vxor.u32 %v1459, 2147483648
    %v1516 = vxor.u32 %v1463, 2147483648
    %v1517 = vxor.u32 %v1467, 2147483648
    %v1518 = vxor.u32 %v1471, 2147483648
    %v1519 = vxor.u32 %v1475, 2147483648
    %v1520 = vxor.u32 %v1479, 2147483648
    %v1521 = vxor.u32 %v1483, 2147483648
    %v1522 = vxor.u32 %v1487, 2147483648
    %v1523 = vxor.u32 %v1491, 2147483648
    %v1524 = vxor.u32 %v1495, 2147483648
    %v1525 = vxor.u32 %v1499, 2147483648
    %v1526 = vxor.u32 %v1503, 2147483648
    %v1527 = vxor.u32 %v1507, 2147483648
    %v1528 = vxor.u32 %v1511, 2147483648
    %v1529 = vmul.f32 %v1513, 1.442695
    %v1530 = vpow.pop %v1529
    %v1531 = vmul.f32 %v1514, 1.442695
    %v1532 = vpow.pop %v1531
    %v1533 = vmul.f32 %v1515, 1.442695
    %v1534 = vpow.pop %v1533
    %v1535 = vmul.f32 %v1516, 1.442695
    %v1536 = vpow.pop %v1535
    %v1537 = vmul.f32 %v1517, 1.442695
    %v1538 = vpow.pop %v1537
    %v1539 = vmul.f32 %v1518, 1.442695
    %v1540 = vpow.pop %v1539
    %v1541 = vmul.f32 %v1519, 1.442695
    %v1542 = vpow.pop %v1541
    %v1543 = vmul.f32 %v1520, 1.442695
    %v1544 = vpow.pop %v1543
    %v1545 = vmul.f32 %v1521, 1.442695
    %v1546 = vpow.pop %v1545
    %v1547 = vmul.f32 %v1522, 1.442695
    %v1548 = vpow.pop %v1547
    %v1549 = vmul.f32 %v1523, 1.442695
    %v1550 = vpow.pop %v1549
    %v1551 = vmul.f32 %v1524, 1.442695
    %v1552 = vpow.pop %v1551
    %v1553 = vmul.f32 %v1525, 1.442695
    %v1554 = vpow.pop %v1553
    %v1555 = vmul.f32 %v1526, 1.442695
    %v1556 = vpow.pop %v1555
    %v1557 = vmul.f32 %v1527, 1.442695
    %v1558 = vpow.pop %v1557
    %v1559 = vmul.f32 %v1528, 1.442695
    %v1560 = vpow.pop %v1559
    %v1561 = vadd.f32 %v1530, 1.0
    %v1562 = vadd.f32 %v1532, 1.0
    %v1563 = vadd.f32 %v1534, 1.0
    %v1564 = vadd.f32 %v1536, 1.0
    %v1565 = vadd.f32 %v1538, 1.0
    %v1566 = vadd.f32 %v1540, 1.0
    %v1567 = vadd.f32 %v1542, 1.0
    %v1568 = vadd.f32 %v1544, 1.0
    %v1569 = vadd.f32 %v1546, 1.0
    %v1570 = vadd.f32 %v1548, 1.0
    %v1571 = vadd.f32 %v1550, 1.0
    %v1572 = vadd.f32 %v1552, 1.0
    %v1573 = vadd.f32 %v1554, 1.0
    %v1574 = vadd.f32 %v1556, 1.0
    %v1575 = vadd.f32 %v1558, 1.0
    %v1576 = vadd.f32 %v1560, 1.0
    %v1577 = vrcp.pop %v1561
    %v1578 = vmul.f32 %v1561, %v1577
    %v1579 = vsub.f32 1.0, %v1578
    %v1580 = vmul.f32 %v1577, %v1579
    %v1581 = vadd.f32 %v1577, %v1580
    %vm1582 = vweird.f32 %v1561
    %vm1583 = vweird.f32 %v1577
    %vm1584 = vmor %vm1582, %vm1583
    %v1585 = vsel %vm1584, %v1577, %v1581
    %v1586 = vand.u32 2147483647, %v1561
    %vm1587 = vcmp.eq.f32.partialorder %v1586, 8.507059e+37
    %v1588 = vand.u32 %v1561, 2147483648
    %v1589 = vor.u32 1.1754944e-38, %v1588
    %v1590 = vsel %vm1587, %v1589, %v1585
    %v1591 = vmul.f32 1.0, %v1590
    %v1592 = vrcp.pop %v1562
    %v1593 = vmul.f32 %v1562, %v1592
    %v1594 = vsub.f32 1.0, %v1593
    %v1595 = vmul.f32 %v1592, %v1594
    %v1596 = vadd.f32 %v1592, %v1595
    %vm1597 = vweird.f32 %v1562
    %vm1598 = vweird.f32 %v1592
    %vm1599 = vmor %vm1597, %vm1598
    %v1600 = vsel %vm1599, %v1592, %v1596
    %v1601 = vand.u32 2147483647, %v1562
    %vm1602 = vcmp.eq.f32.partialorder %v1601, 8.507059e+37
    %v1603 = vand.u32 %v1562, 2147483648
    %v1604 = vor.u32 1.1754944e-38, %v1603
    %v1605 = vsel %vm1602, %v1604, %v1600
    %v1606 = vmul.f32 1.0, %v1605
    %v1607 = vrcp.pop %v1563
    %v1608 = vmul.f32 %v1563, %v1607
    %v1609 = vsub.f32 1.0, %v1608
    %v1610 = vmul.f32 %v1607, %v1609
    %v1611 = vadd.f32 %v1607, %v1610
    %vm1612 = vweird.f32 %v1563
    %vm1613 = vweird.f32 %v1607
    %vm1614 = vmor %vm1612, %vm1613
    %v1615 = vsel %vm1614, %v1607, %v1611
    %v1616 = vand.u32 2147483647, %v1563
    %vm1617 = vcmp.eq.f32.partialorder %v1616, 8.507059e+37
    %v1618 = vand.u32 %v1563, 2147483648
    %v1619 = vor.u32 1.1754944e-38, %v1618
    %v1620 = vsel %vm1617, %v1619, %v1615
    %v1621 = vmul.f32 1.0, %v1620
    %v1622 = vrcp.pop %v1564
    %v1623 = vmul.f32 %v1564, %v1622
    %v1624 = vsub.f32 1.0, %v1623
    %v1625 = vmul.f32 %v1622, %v1624
    %v1626 = vadd.f32 %v1622, %v1625
    %vm1627 = vweird.f32 %v1564
    %vm1628 = vweird.f32 %v1622
    %vm1629 = vmor %vm1627, %vm1628
    %v1630 = vsel %vm1629, %v1622, %v1626
    %v1631 = vand.u32 2147483647, %v1564
    %vm1632 = vcmp.eq.f32.partialorder %v1631, 8.507059e+37
    %v1633 = vand.u32 %v1564, 2147483648
    %v1634 = vor.u32 1.1754944e-38, %v1633
    %v1635 = vsel %vm1632, %v1634, %v1630
    %v1636 = vmul.f32 1.0, %v1635
    %v1637 = vrcp.pop %v1565
    %v1638 = vmul.f32 %v1565, %v1637
    %v1639 = vsub.f32 1.0, %v1638
    %v1640 = vmul.f32 %v1637, %v1639
    %v1641 = vadd.f32 %v1637, %v1640
    %vm1642 = vweird.f32 %v1565
    %vm1643 = vweird.f32 %v1637
    %vm1644 = vmor %vm1642, %vm1643
    %v1645 = vsel %vm1644, %v1637, %v1641
    %v1646 = vand.u32 2147483647, %v1565
    %vm1647 = vcmp.eq.f32.partialorder %v1646, 8.507059e+37
    %v1648 = vand.u32 %v1565, 2147483648
    %v1649 = vor.u32 1.1754944e-38, %v1648
    %v1650 = vsel %vm1647, %v1649, %v1645
    %v1651 = vmul.f32 1.0, %v1650
    %v1652 = vrcp.pop %v1566
    %v1653 = vmul.f32 %v1566, %v1652
    %v1654 = vsub.f32 1.0, %v1653
    %v1655 = vmul.f32 %v1652, %v1654
    %v1656 = vadd.f32 %v1652, %v1655
    %vm1657 = vweird.f32 %v1566
    %vm1658 = vweird.f32 %v1652
    %vm1659 = vmor %vm1657, %vm1658
    %v1660 = vsel %vm1659, %v1652, %v1656
    %v1661 = vand.u32 2147483647, %v1566
    %vm1662 = vcmp.eq.f32.partialorder %v1661, 8.507059e+37
    %v1663 = vand.u32 %v1566, 2147483648
    %v1664 = vor.u32 1.1754944e-38, %v1663
    %v1665 = vsel %vm1662, %v1664, %v1660
    %v1666 = vmul.f32 1.0, %v1665
    %v1667 = vrcp.pop %v1567
    %v1668 = vmul.f32 %v1567, %v1667
    %v1669 = vsub.f32 1.0, %v1668
    %v1670 = vmul.f32 %v1667, %v1669
    %v1671 = vadd.f32 %v1667, %v1670
    %vm1672 = vweird.f32 %v1567
    %vm1673 = vweird.f32 %v1667
    %vm1674 = vmor %vm1672, %vm1673
    %v1675 = vsel %vm1674, %v1667, %v1671
    %v1676 = vand.u32 2147483647, %v1567
    %vm1677 = vcmp.eq.f32.partialorder %v1676, 8.507059e+37
    %v1678 = vand.u32 %v1567, 2147483648
    %v1679 = vor.u32 1.1754944e-38, %v1678
    %v1680 = vsel %vm1677, %v1679, %v1675
    %v1681 = vmul.f32 1.0, %v1680
    %v1682 = vrcp.pop %v1568
    %v1683 = vmul.f32 %v1568, %v1682
    %v1684 = vsub.f32 1.0, %v1683
    %v1685 = vmul.f32 %v1682, %v1684
    %v1686 = vadd.f32 %v1682, %v1685
    %vm1687 = vweird.f32 %v1568
    %vm1688 = vweird.f32 %v1682
    %vm1689 = vmor %vm1687, %vm1688
    %v1690 = vsel %vm1689, %v1682, %v1686
    %v1691 = vand.u32 2147483647, %v1568
    %vm1692 = vcmp.eq.f32.partialorder %v1691, 8.507059e+37
    %v1693 = vand.u32 %v1568, 2147483648
    %v1694 = vor.u32 1.1754944e-38, %v1693
    %v1695 = vsel %vm1692, %v1694, %v1690
    %v1696 = vmul.f32 1.0, %v1695
    %v1697 = vrcp.pop %v1569
    %v1698 = vmul.f32 %v1569, %v1697
    %v1699 = vsub.f32 1.0, %v1698
    %v1700 = vmul.f32 %v1697, %v1699
    %v1701 = vadd.f32 %v1697, %v1700
    %vm1702 = vweird.f32 %v1569
    %vm1703 = vweird.f32 %v1697
    %vm1704 = vmor %vm1702, %vm1703
    %v1705 = vsel %vm1704, %v1697, %v1701
    %v1706 = vand.u32 2147483647, %v1569
    %vm1707 = vcmp.eq.f32.partialorder %v1706, 8.507059e+37
    %v1708 = vand.u32 %v1569, 2147483648
    %v1709 = vor.u32 1.1754944e-38, %v1708
    %v1710 = vsel %vm1707, %v1709, %v1705
    %v1711 = vmul.f32 1.0, %v1710
    %v1712 = vrcp.pop %v1570
    %v1713 = vmul.f32 %v1570, %v1712
    %v1714 = vsub.f32 1.0, %v1713
    %v1715 = vmul.f32 %v1712, %v1714
    %v1716 = vadd.f32 %v1712, %v1715
    %vm1717 = vweird.f32 %v1570
    %vm1718 = vweird.f32 %v1712
    %vm1719 = vmor %vm1717, %vm1718
    %v1720 = vsel %vm1719, %v1712, %v1716
    %v1721 = vand.u32 2147483647, %v1570
    %vm1722 = vcmp.eq.f32.partialorder %v1721, 8.507059e+37
    %v1723 = vand.u32 %v1570, 2147483648
    %v1724 = vor.u32 1.1754944e-38, %v1723
    %v1725 = vsel %vm1722, %v1724, %v1720
    %v1726 = vmul.f32 1.0, %v1725
    %v1727 = vrcp.pop %v1571
    %v1728 = vmul.f32 %v1571, %v1727
    %v1729 = vsub.f32 1.0, %v1728
    %v1730 = vmul.f32 %v1727, %v1729
    %v1731 = vadd.f32 %v1727, %v1730
    %vm1732 = vweird.f32 %v1571
    %vm1733 = vweird.f32 %v1727
    %vm1734 = vmor %vm1732, %vm1733
    %v1735 = vsel %vm1734, %v1727, %v1731
    %v1736 = vand.u32 2147483647, %v1571
    %vm1737 = vcmp.eq.f32.partialorder %v1736, 8.507059e+37
    %v1738 = vand.u32 %v1571, 2147483648
    %v1739 = vor.u32 1.1754944e-38, %v1738
    %v1740 = vsel %vm1737, %v1739, %v1735
    %v1741 = vmul.f32 1.0, %v1740
    %v1742 = vrcp.pop %v1572
    %v1743 = vmul.f32 %v1572, %v1742
    %v1744 = vsub.f32 1.0, %v1743
    %v1745 = vmul.f32 %v1742, %v1744
    %v1746 = vadd.f32 %v1742, %v1745
    %vm1747 = vweird.f32 %v1572
    %vm1748 = vweird.f32 %v1742
    %vm1749 = vmor %vm1747, %vm1748
    %v1750 = vsel %vm1749, %v1742, %v1746
    %v1751 = vand.u32 2147483647, %v1572
    %vm1752 = vcmp.eq.f32.partialorder %v1751, 8.507059e+37
    %v1753 = vand.u32 %v1572, 2147483648
    %v1754 = vor.u32 1.1754944e-38, %v1753
    %v1755 = vsel %vm1752, %v1754, %v1750
    %v1756 = vmul.f32 1.0, %v1755
    %v1757 = vrcp.pop %v1573
    %v1758 = vmul.f32 %v1573, %v1757
    %v1759 = vsub.f32 1.0, %v1758
    %v1760 = vmul.f32 %v1757, %v1759
    %v1761 = vadd.f32 %v1757, %v1760
    %vm1762 = vweird.f32 %v1573
    %vm1763 = vweird.f32 %v1757
    %vm1764 = vmor %vm1762, %vm1763
    %v1765 = vsel %vm1764, %v1757, %v1761
    %v1766 = vand.u32 2147483647, %v1573
    %vm1767 = vcmp.eq.f32.partialorder %v1766, 8.507059e+37
    %v1768 = vand.u32 %v1573, 2147483648
    %v1769 = vor.u32 1.1754944e-38, %v1768
    %v1770 = vsel %vm1767, %v1769, %v1765
    %v1771 = vmul.f32 1.0, %v1770
    %v1772 = vrcp.pop %v1574
    %v1773 = vmul.f32 %v1574, %v1772
    %v1774 = vsub.f32 1.0, %v1773
    %v1775 = vmul.f32 %v1772, %v1774
    %v1776 = vadd.f32 %v1772, %v1775
    %vm1777 = vweird.f32 %v1574
    %vm1778 = vweird.f32 %v1772
    %vm1779 = vmor %vm1777, %vm1778
    %v1780 = vsel %vm1779, %v1772, %v1776
    %v1781 = vand.u32 2147483647, %v1574
    %vm1782 = vcmp.eq.f32.partialorder %v1781, 8.507059e+37
    %v1783 = vand.u32 %v1574, 2147483648
    %v1784 = vor.u32 1.1754944e-38, %v1783
    %v1785 = vsel %vm1782, %v1784, %v1780
    %v1786 = vmul.f32 1.0, %v1785
    %v1787 = vrcp.pop %v1575
    %v1788 = vmul.f32 %v1575, %v1787
    %v1789 = vsub.f32 1.0, %v1788
    %v1790 = vmul.f32 %v1787, %v1789
    %v1791 = vadd.f32 %v1787, %v1790
    %vm1792 = vweird.f32 %v1575
    %vm1793 = vweird.f32 %v1787
    %vm1794 = vmor %vm1792, %vm1793
    %v1795 = vsel %vm1794, %v1787, %v1791
    %v1796 = vand.u32 2147483647, %v1575
    %vm1797 = vcmp.eq.f32.partialorder %v1796, 8.507059e+37
    %v1798 = vand.u32 %v1575, 2147483648
    %v1799 = vor.u32 1.1754944e-38, %v1798
    %v1800 = vsel %vm1797, %v1799, %v1795
    %v1801 = vmul.f32 1.0, %v1800
    %v1802 = vrcp.pop %v1576
    %v1803 = vmul.f32 %v1576, %v1802
    %v1804 = vsub.f32 1.0, %v1803
    %v1805 = vmul.f32 %v1802, %v1804
    %v1806 = vadd.f32 %v1802, %v1805
    %vm1807 = vweird.f32 %v1576
    %vm1808 = vweird.f32 %v1802
    %vm1809 = vmor %vm1807, %vm1808
    %v1810 = vsel %vm1809, %v1802, %v1806
    %v1811 = vand.u32 2147483647, %v1576
    %vm1812 = vcmp.eq.f32.partialorder %v1811, 8.507059e+37
    %v1813 = vand.u32 %v1576, 2147483648
    %v1814 = vor.u32 1.1754944e-38, %v1813
    %v1815 = vsel %vm1812, %v1814, %v1810
    %v1816 = vmul.f32 1.0, %v1815
    %v1817 = vld [vmem:[%s1 + $0xc0] sm:$0xff]
    %v1818 = vld [vmem:[%s1 + $0xc8] sm:$0xff]
    %v1819 = vld [vmem:[%s1 + $0xd0] sm:$0xff]
    %v1820 = vld [vmem:[%s1 + $0xd8] sm:$0xff]
    %v1821 = vld [vmem:[%s1 + $0xe0] sm:$0xff]
    %v1822 = vld [vmem:[%s1 + $0xe8] sm:$0xff]
    %v1823 = vld [vmem:[%s1 + $0xf0] sm:$0xff]
    %v1824 = vld [vmem:[%s1 + $0xf8] sm:$0xff]
    %v1825 = vld [vmem:[%s2 + $0xc0] sm:$0xff]
    %v1826 = vld [vmem:[%s2 + $0xc8] sm:$0xff]
    %v1827 = vld [vmem:[%s2 + $0xd0] sm:$0xff]
    %v1828 = vld [vmem:[%s2 + $0xd8] sm:$0xff]
    %v1829 = vld [vmem:[%s2 + $0xe0] sm:$0xff]
    %v1830 = vld [vmem:[%s2 + $0xe8] sm:$0xff]
    %v1831 = vld [vmem:[%s2 + $0xf0] sm:$0xff]
    %v1832 = vld [vmem:[%s2 + $0xf8] sm:$0xff]
    %1834 = vset.pattern.permute.xlu0 0
    %1835 = vperm.xlu0 %1834, %v1825
    %v1836 = vpop.permute.xlu0 %1835
    %1839 = vset.pattern.permute.xlu0 0
    %1840 = vperm.xlu0 %1839, %v1826
    %v1841 = vpop.permute.xlu0 %1840
    %1844 = vset.pattern.permute.xlu0 0
    %1845 = vperm.xlu0 %1844, %v1827
    %v1846 = vpop.permute.xlu0 %1845
    %1849 = vset.pattern.permute.xlu0 0
    %1850 = vperm.xlu0 %1849, %v1828
    %v1851 = vpop.permute.xlu0 %1850
    %1854 = vset.pattern.permute.xlu0 0
    %1855 = vperm.xlu0 %1854, %v1829
    %v1856 = vpop.permute.xlu0 %1855
    %1859 = vset.pattern.permute.xlu0 0
    %1860 = vperm.xlu0 %1859, %v1830
    %v1861 = vpop.permute.xlu0 %1860
    %1864 = vset.pattern.permute.xlu0 0
    %1865 = vperm.xlu0 %1864, %v1831
    %v1866 = vpop.permute.xlu0 %1865
    %1869 = vset.pattern.permute.xlu0 0
    %1870 = vperm.xlu0 %1869, %v1832
    %v1871 = vpop.permute.xlu0 %1870
    %v1873 = vand.u32 %v1816, 4294901760
    %1874 = vmatpush.msra.mxu0 %v1873
    %v1875 = vand.u32 %v1801, 4294901760
    %1876 = vmatpush.msra.mxu0 %v1875
    %v1877 = vand.u32 %v1786, 4294901760
    %1878 = vmatpush.msra.mxu0 %v1877
    %v1879 = vand.u32 %v1771, 4294901760
    %1880 = vmatpush.msra.mxu0 %v1879
    %v1881 = vand.u32 %v1756, 4294901760
    %1882 = vmatpush.msra.mxu0 %v1881
    %v1883 = vand.u32 %v1741, 4294901760
    %1884 = vmatpush.msra.mxu0 %v1883
    %v1885 = vand.u32 %v1726, 4294901760
    %1886 = vmatpush.msra.mxu0 %v1885
    %v1887 = vand.u32 %v1711, 4294901760
    %1888 = vmatpush.msra.mxu0 %v1887
    %v1889 = vand.u32 %v1696, 4294901760
    %1890 = vmatpush.msra.mxu0 %v1889
    %v1891 = vand.u32 %v1681, 4294901760
    %1892 = vmatpush.msra.mxu0 %v1891
    %v1893 = vand.u32 %v1666, 4294901760
    %1894 = vmatpush.msra.mxu0 %v1893
    %v1895 = vand.u32 %v1651, 4294901760
    %1896 = vmatpush.msra.mxu0 %v1895
    %v1897 = vand.u32 %v1636, 4294901760
    %1898 = vmatpush.msra.mxu0 %v1897
    %v1899 = vand.u32 %v1621, 4294901760
    %1900 = vmatpush.msra.mxu0 %v1899
    %v1901 = vand.u32 %v1606, 4294901760
    %1902 = vmatpush.msra.mxu0 %v1901
    %v1903 = vand.u32 %v1591, 4294901760
    %1904 = vmatpush.msra.mxu0 %v1903
    %v1905 = vand.u32 %v1817, 4294901760
    %v1906 = vsub.f32 %v1817, %v1905
    %v1907 = vand.u32 %v1906, 4294901760
    %v1908 = vsub.f32 %v1906, %v1907
    %v1909 = vand.u32 %v1908, 4294901760
    %1910 = vmatmul.f32.gmra.mxu0 %v1909
    %v1911 = vpop.f32.mrf.mxu0
    %v1912 = vadd.f32 %v1836, %v1911
    %v1913 = vand.u32 %v1818, 4294901760
    %v1914 = vsub.f32 %v1818, %v1913
    %v1915 = vand.u32 %v1914, 4294901760
    %v1916 = vsub.f32 %v1914, %v1915
    %v1917 = vand.u32 %v1916, 4294901760
    %1918 = vmatmul.f32.gmra.mxu0 %v1917
    %v1919 = vpop.f32.mrf.mxu0
    %v1920 = vadd.f32 %v1841, %v1919
    %v1921 = vand.u32 %v1819, 4294901760
    %v1922 = vsub.f32 %v1819, %v1921
    %v1923 = vand.u32 %v1922, 4294901760
    %v1924 = vsub.f32 %v1922, %v1923
    %v1925 = vand.u32 %v1924, 4294901760
    %1926 = vmatmul.f32.gmra.mxu0 %v1925
    %v1927 = vpop.f32.mrf.mxu0
    %v1928 = vadd.f32 %v1846, %v1927
    %v1929 = vand.u32 %v1820, 4294901760
    %v1930 = vsub.f32 %v1820, %v1929
    %v1931 = vand.u32 %v1930, 4294901760
    %v1932 = vsub.f32 %v1930, %v1931
    %v1933 = vand.u32 %v1932, 4294901760
    %1934 = vmatmul.f32.gmra.mxu0 %v1933
    %v1935 = vpop.f32.mrf.mxu0
    %v1936 = vadd.f32 %v1851, %v1935
    %v1937 = vand.u32 %v1821, 4294901760
    %v1938 = vsub.f32 %v1821, %v1937
    %v1939 = vand.u32 %v1938, 4294901760
    %v1940 = vsub.f32 %v1938, %v1939
    %v1941 = vand.u32 %v1940, 4294901760
    %1942 = vmatmul.f32.gmra.mxu0 %v1941
    %v1943 = vpop.f32.mrf.mxu0
    %v1944 = vadd.f32 %v1856, %v1943
    %v1945 = vand.u32 %v1822, 4294901760
    %v1946 = vsub.f32 %v1822, %v1945
    %v1947 = vand.u32 %v1946, 4294901760
    %v1948 = vsub.f32 %v1946, %v1947
    %v1949 = vand.u32 %v1948, 4294901760
    %1950 = vmatmul.f32.gmra.mxu0 %v1949
    %v1951 = vpop.f32.mrf.mxu0
    %v1952 = vadd.f32 %v1861, %v1951
    %v1953 = vand.u32 %v1823, 4294901760
    %v1954 = vsub.f32 %v1823, %v1953
    %v1955 = vand.u32 %v1954, 4294901760
    %v1956 = vsub.f32 %v1954, %v1955
    %v1957 = vand.u32 %v1956, 4294901760
    %1958 = vmatmul.f32.gmra.mxu0 %v1957
    %v1959 = vpop.f32.mrf.mxu0
    %v1960 = vadd.f32 %v1866, %v1959
    %v1961 = vand.u32 %v1824, 4294901760
    %v1962 = vsub.f32 %v1824, %v1961
    %v1963 = vand.u32 %v1962, 4294901760
    %v1964 = vsub.f32 %v1962, %v1963
    %v1965 = vand.u32 %v1964, 4294901760
    %1966 = vmatmul.f32.gmra.mxu0 %v1965
    %v1967 = vpop.f32.mrf.mxu0
    %v1968 = vadd.f32 %v1871, %v1967
    %1969 = vdwg.mxu0
    %v1970 = vand.u32 %v1816, 4294901760
    %v1971 = vsub.f32 %v1816, %v1970
    %v1972 = vand.u32 %v1971, 4294901760
    %v1973 = vsub.f32 %v1971, %v1972
    %v1974 = vand.u32 %v1973, 4294901760
    %1975 = vmatpush.msra.mxu0 %v1974
    %v1976 = vand.u32 %v1801, 4294901760
    %v1977 = vsub.f32 %v1801, %v1976
    %v1978 = vand.u32 %v1977, 4294901760
    %v1979 = vsub.f32 %v1977, %v1978
    %v1980 = vand.u32 %v1979, 4294901760
    %1981 = vmatpush.msra.mxu0 %v1980
    %v1982 = vand.u32 %v1786, 4294901760
    %v1983 = vsub.f32 %v1786, %v1982
    %v1984 = vand.u32 %v1983, 4294901760
    %v1985 = vsub.f32 %v1983, %v1984
    %v1986 = vand.u32 %v1985, 4294901760
    %1987 = vmatpush.msra.mxu0 %v1986
    %v1988 = vand.u32 %v1771, 4294901760
    %v1989 = vsub.f32 %v1771, %v1988
    %v1990 = vand.u32 %v1989, 4294901760
    %v1991 = vsub.f32 %v1989, %v1990
    %v1992 = vand.u32 %v1991, 4294901760
    %1993 = vmatpush.msra.mxu0 %v1992
    %v1994 = vand.u32 %v1756, 4294901760
    %v1995 = vsub.f32 %v1756, %v1994
    %v1996 = vand.u32 %v1995, 4294901760
    %v1997 = vsub.f32 %v1995, %v1996
    %v1998 = vand.u32 %v1997, 4294901760
    %1999 = vmatpush.msra.mxu0 %v1998
    %v2000 = vand.u32 %v1741, 4294901760
    %v2001 = vsub.f32 %v1741, %v2000
    %v2002 = vand.u32 %v2001, 4294901760
    %v2003 = vsub.f32 %v2001, %v2002
    %v2004 = vand.u32 %v2003, 4294901760
    %2005 = vmatpush.msra.mxu0 %v2004
    %v2006 = vand.u32 %v1726, 4294901760
    %v2007 = vsub.f32 %v1726, %v2006
    %v2008 = vand.u32 %v2007, 4294901760
    %v2009 = vsub.f32 %v2007, %v2008
    %v2010 = vand.u32 %v2009, 4294901760
    %2011 = vmatpush.msra.mxu0 %v2010
    %v2012 = vand.u32 %v1711, 4294901760
    %v2013 = vsub.f32 %v1711, %v2012
    %v2014 = vand.u32 %v2013, 4294901760
    %v2015 = vsub.f32 %v2013, %v2014
    %v2016 = vand.u32 %v2015, 4294901760
    %2017 = vmatpush.msra.mxu0 %v2016
    %v2018 = vand.u32 %v1696, 4294901760
    %v2019 = vsub.f32 %v1696, %v2018
    %v2020 = vand.u32 %v2019, 4294901760
    %v2021 = vsub.f32 %v2019, %v2020
    %v2022 = vand.u32 %v2021, 4294901760
    %2023 = vmatpush.msra.mxu0 %v2022
    %v2024 = vand.u32 %v1681, 4294901760
    %v2025 = vsub.f32 %v1681, %v2024
    %v2026 = vand.u32 %v2025, 4294901760
    %v2027 = vsub.f32 %v2025, %v2026
    %v2028 = vand.u32 %v2027, 4294901760
    %2029 = vmatpush.msra.mxu0 %v2028
    %v2030 = vand.u32 %v1666, 4294901760
    %v2031 = vsub.f32 %v1666, %v2030
    %v2032 = vand.u32 %v2031, 4294901760
    %v2033 = vsub.f32 %v2031, %v2032
    %v2034 = vand.u32 %v2033, 4294901760
    %2035 = vmatpush.msra.mxu0 %v2034
    %v2036 = vand.u32 %v1651, 4294901760
    %v2037 = vsub.f32 %v1651, %v2036
    %v2038 = vand.u32 %v2037, 4294901760
    %v2039 = vsub.f32 %v2037, %v2038
    %v2040 = vand.u32 %v2039, 4294901760
    %2041 = vmatpush.msra.mxu0 %v2040
    %v2042 = vand.u32 %v1636, 4294901760
    %v2043 = vsub.f32 %v1636, %v2042
    %v2044 = vand.u32 %v2043, 4294901760
    %v2045 = vsub.f32 %v2043, %v2044
    %v2046 = vand.u32 %v2045, 4294901760
    %2047 = vmatpush.msra.mxu0 %v2046
    %v2048 = vand.u32 %v1621, 4294901760
    %v2049 = vsub.f32 %v1621, %v2048
    %v2050 = vand.u32 %v2049, 4294901760
    %v2051 = vsub.f32 %v2049, %v2050
    %v2052 = vand.u32 %v2051, 4294901760
    %2053 = vmatpush.msra.mxu0 %v2052
    %v2054 = vand.u32 %v1606, 4294901760
    %v2055 = vsub.f32 %v1606, %v2054
    %v2056 = vand.u32 %v2055, 4294901760
    %v2057 = vsub.f32 %v2055, %v2056
    %v2058 = vand.u32 %v2057, 4294901760
    %2059 = vmatpush.msra.mxu0 %v2058
    %v2060 = vand.u32 %v1591, 4294901760
    %v2061 = vsub.f32 %v1591, %v2060
    %v2062 = vand.u32 %v2061, 4294901760
    %v2063 = vsub.f32 %v2061, %v2062
    %v2064 = vand.u32 %v2063, 4294901760
    %2065 = vmatpush.msra.mxu0 %v2064
    %v2066 = vand.u32 %v1817, 4294901760
    %2067 = vmatmul.f32.gmra.mxu0 %v2066
    %v2068 = vpop.f32.mrf.mxu0
    %v2069 = vadd.f32 %v1912, %v2068
    %v2070 = vand.u32 %v1818, 4294901760
    %2071 = vmatmul.f32.gmra.mxu0 %v2070
    %v2072 = vpop.f32.mrf.mxu0
    %v2073 = vadd.f32 %v1920, %v2072
    %v2074 = vand.u32 %v1819, 4294901760
    %2075 = vmatmul.f32.gmra.mxu0 %v2074
    %v2076 = vpop.f32.mrf.mxu0
    %v2077 = vadd.f32 %v1928, %v2076
    %v2078 = vand.u32 %v1820, 4294901760
    %2079 = vmatmul.f32.gmra.mxu0 %v2078
    %v2080 = vpop.f32.mrf.mxu0
    %v2081 = vadd.f32 %v1936, %v2080
    %v2082 = vand.u32 %v1821, 4294901760
    %2083 = vmatmul.f32.gmra.mxu0 %v2082
    %v2084 = vpop.f32.mrf.mxu0
    %v2085 = vadd.f32 %v1944, %v2084
    %v2086 = vand.u32 %v1822, 4294901760
    %2087 = vmatmul.f32.gmra.mxu0 %v2086
    %v2088 = vpop.f32.mrf.mxu0
    %v2089 = vadd.f32 %v1952, %v2088
    %v2090 = vand.u32 %v1823, 4294901760
    %2091 = vmatmul.f32.gmra.mxu0 %v2090
    %v2092 = vpop.f32.mrf.mxu0
    %v2093 = vadd.f32 %v1960, %v2092
    %v2094 = vand.u32 %v1824, 4294901760
    %2095 = vmatmul.f32.gmra.mxu0 %v2094
    %v2096 = vpop.f32.mrf.mxu0
    %v2097 = vadd.f32 %v1968, %v2096
    %2098 = vdwg.mxu0
    %v2099 = vand.u32 %v1816, 4294901760
    %v2100 = vsub.f32 %v1816, %v2099
    %2101 = vmatpush.msra.mxu0 %v2100
    %v2102 = vand.u32 %v1801, 4294901760
    %v2103 = vsub.f32 %v1801, %v2102
    %2104 = vmatpush.msra.mxu0 %v2103
    %v2105 = vand.u32 %v1786, 4294901760
    %v2106 = vsub.f32 %v1786, %v2105
    %2107 = vmatpush.msra.mxu0 %v2106
    %v2108 = vand.u32 %v1771, 4294901760
    %v2109 = vsub.f32 %v1771, %v2108
    %2110 = vmatpush.msra.mxu0 %v2109
    %v2111 = vand.u32 %v1756, 4294901760
    %v2112 = vsub.f32 %v1756, %v2111
    %2113 = vmatpush.msra.mxu0 %v2112
    %v2114 = vand.u32 %v1741, 4294901760
    %v2115 = vsub.f32 %v1741, %v2114
    %2116 = vmatpush.msra.mxu0 %v2115
    %v2117 = vand.u32 %v1726, 4294901760
    %v2118 = vsub.f32 %v1726, %v2117
    %2119 = vmatpush.msra.mxu0 %v2118
    %v2120 = vand.u32 %v1711, 4294901760
    %v2121 = vsub.f32 %v1711, %v2120
    %2122 = vmatpush.msra.mxu0 %v2121
    %v2123 = vand.u32 %v1696, 4294901760
    %v2124 = vsub.f32 %v1696, %v2123
    %2125 = vmatpush.msra.mxu0 %v2124
    %v2126 = vand.u32 %v1681, 4294901760
    %v2127 = vsub.f32 %v1681, %v2126
    %2128 = vmatpush.msra.mxu0 %v2127
    %v2129 = vand.u32 %v1666, 4294901760
    %v2130 = vsub.f32 %v1666, %v2129
    %2131 = vmatpush.msra.mxu0 %v2130
    %v2132 = vand.u32 %v1651, 4294901760
    %v2133 = vsub.f32 %v1651, %v2132
    %2134 = vmatpush.msra.mxu0 %v2133
    %v2135 = vand.u32 %v1636, 4294901760
    %v2136 = vsub.f32 %v1636, %v2135
    %2137 = vmatpush.msra.mxu0 %v2136
    %v2138 = vand.u32 %v1621, 4294901760
    %v2139 = vsub.f32 %v1621, %v2138
    %2140 = vmatpush.msra.mxu0 %v2139
    %v2141 = vand.u32 %v1606, 4294901760
    %v2142 = vsub.f32 %v1606, %v2141
    %2143 = vmatpush.msra.mxu0 %v2142
    %v2144 = vand.u32 %v1591, 4294901760
    %v2145 = vsub.f32 %v1591, %v2144
    %2146 = vmatpush.msra.mxu0 %v2145
    %v2147 = vand.u32 %v1817, 4294901760
    %v2148 = vsub.f32 %v1817, %v2147
    %2149 = vmatmul.f32.gmra.mxu0 %v2148
    %v2150 = vpop.f32.mrf.mxu0
    %v2151 = vadd.f32 %v2069, %v2150
    %v2152 = vand.u32 %v1818, 4294901760
    %v2153 = vsub.f32 %v1818, %v2152
    %2154 = vmatmul.f32.gmra.mxu0 %v2153
    %v2155 = vpop.f32.mrf.mxu0
    %v2156 = vadd.f32 %v2073, %v2155
    %v2157 = vand.u32 %v1819, 4294901760
    %v2158 = vsub.f32 %v1819, %v2157
    %2159 = vmatmul.f32.gmra.mxu0 %v2158
    %v2160 = vpop.f32.mrf.mxu0
    %v2161 = vadd.f32 %v2077, %v2160
    %v2162 = vand.u32 %v1820, 4294901760
    %v2163 = vsub.f32 %v1820, %v2162
    %2164 = vmatmul.f32.gmra.mxu0 %v2163
    %v2165 = vpop.f32.mrf.mxu0
    %v2166 = vadd.f32 %v2081, %v2165
    %v2167 = vand.u32 %v1821, 4294901760
    %v2168 = vsub.f32 %v1821, %v2167
    %2169 = vmatmul.f32.gmra.mxu0 %v2168
    %v2170 = vpop.f32.mrf.mxu0
    %v2171 = vadd.f32 %v2085, %v2170
    %v2172 = vand.u32 %v1822, 4294901760
    %v2173 = vsub.f32 %v1822, %v2172
    %2174 = vmatmul.f32.gmra.mxu0 %v2173
    %v2175 = vpop.f32.mrf.mxu0
    %v2176 = vadd.f32 %v2089, %v2175
    %v2177 = vand.u32 %v1823, 4294901760
    %v2178 = vsub.f32 %v1823, %v2177
    %2179 = vmatmul.f32.gmra.mxu0 %v2178
    %v2180 = vpop.f32.mrf.mxu0
    %v2181 = vadd.f32 %v2093, %v2180
    %v2182 = vand.u32 %v1824, 4294901760
    %v2183 = vsub.f32 %v1824, %v2182
    %2184 = vmatmul.f32.gmra.mxu0 %v2183
    %v2185 = vpop.f32.mrf.mxu0
    %v2186 = vadd.f32 %v2097, %v2185
    %2187 = vdwg.mxu0
    %v2188 = vand.u32 %v1816, 4294901760
    %2189 = vmatpush.msra.mxu0 %v2188
    %v2190 = vand.u32 %v1801, 4294901760
    %2191 = vmatpush.msra.mxu0 %v2190
    %v2192 = vand.u32 %v1786, 4294901760
    %2193 = vmatpush.msra.mxu0 %v2192
    %v2194 = vand.u32 %v1771, 4294901760
    %2195 = vmatpush.msra.mxu0 %v2194
    %v2196 = vand.u32 %v1756, 4294901760
    %2197 = vmatpush.msra.mxu0 %v2196
    %v2198 = vand.u32 %v1741, 4294901760
    %2199 = vmatpush.msra.mxu0 %v2198
    %v2200 = vand.u32 %v1726, 4294901760
    %2201 = vmatpush.msra.mxu0 %v2200
    %v2202 = vand.u32 %v1711, 4294901760
    %2203 = vmatpush.msra.mxu0 %v2202
    %v2204 = vand.u32 %v1696, 4294901760
    %2205 = vmatpush.msra.mxu0 %v2204
    %v2206 = vand.u32 %v1681, 4294901760
    %2207 = vmatpush.msra.mxu0 %v2206
    %v2208 = vand.u32 %v1666, 4294901760
    %2209 = vmatpush.msra.mxu0 %v2208
    %v2210 = vand.u32 %v1651, 4294901760
    %2211 = vmatpush.msra.mxu0 %v2210
    %v2212 = vand.u32 %v1636, 4294901760
    %2213 = vmatpush.msra.mxu0 %v2212
    %v2214 = vand.u32 %v1621, 4294901760
    %2215 = vmatpush.msra.mxu0 %v2214
    %v2216 = vand.u32 %v1606, 4294901760
    %2217 = vmatpush.msra.mxu0 %v2216
    %v2218 = vand.u32 %v1591, 4294901760
    %2219 = vmatpush.msra.mxu0 %v2218
    %v2220 = vand.u32 %v1817, 4294901760
    %v2221 = vsub.f32 %v1817, %v2220
    %v2222 = vand.u32 %v2221, 4294901760
    %2223 = vmatmul.f32.gmra.mxu0 %v2222
    %v2224 = vpop.f32.mrf.mxu0
    %v2225 = vadd.f32 %v2151, %v2224
    %v2226 = vand.u32 %v1818, 4294901760
    %v2227 = vsub.f32 %v1818, %v2226
    %v2228 = vand.u32 %v2227, 4294901760
    %2229 = vmatmul.f32.gmra.mxu0 %v2228
    %v2230 = vpop.f32.mrf.mxu0
    %v2231 = vadd.f32 %v2156, %v2230
    %v2232 = vand.u32 %v1819, 4294901760
    %v2233 = vsub.f32 %v1819, %v2232
    %v2234 = vand.u32 %v2233, 4294901760
    %2235 = vmatmul.f32.gmra.mxu0 %v2234
    %v2236 = vpop.f32.mrf.mxu0
    %v2237 = vadd.f32 %v2161, %v2236
    %v2238 = vand.u32 %v1820, 4294901760
    %v2239 = vsub.f32 %v1820, %v2238
    %v2240 = vand.u32 %v2239, 4294901760
    %2241 = vmatmul.f32.gmra.mxu0 %v2240
    %v2242 = vpop.f32.mrf.mxu0
    %v2243 = vadd.f32 %v2166, %v2242
    %v2244 = vand.u32 %v1821, 4294901760
    %v2245 = vsub.f32 %v1821, %v2244
    %v2246 = vand.u32 %v2245, 4294901760
    %2247 = vmatmul.f32.gmra.mxu0 %v2246
    %v2248 = vpop.f32.mrf.mxu0
    %v2249 = vadd.f32 %v2171, %v2248
    %v2250 = vand.u32 %v1822, 4294901760
    %v2251 = vsub.f32 %v1822, %v2250
    %v2252 = vand.u32 %v2251, 4294901760
    %2253 = vmatmul.f32.gmra.mxu0 %v2252
    %v2254 = vpop.f32.mrf.mxu0
    %v2255 = vadd.f32 %v2176, %v2254
    %v2256 = vand.u32 %v1823, 4294901760
    %v2257 = vsub.f32 %v1823, %v2256
    %v2258 = vand.u32 %v2257, 4294901760
    %2259 = vmatmul.f32.gmra.mxu0 %v2258
    %v2260 = vpop.f32.mrf.mxu0
    %v2261 = vadd.f32 %v2181, %v2260
    %v2262 = vand.u32 %v1824, 4294901760
    %v2263 = vsub.f32 %v1824, %v2262
    %v2264 = vand.u32 %v2263, 4294901760
    %2265 = vmatmul.f32.gmra.mxu0 %v2264
    %v2266 = vpop.f32.mrf.mxu0
    %v2267 = vadd.f32 %v2186, %v2266
    %2268 = vdwg.mxu0
    %v2269 = vand.u32 %v1816, 4294901760
    %v2270 = vsub.f32 %v1816, %v2269
    %v2271 = vand.u32 %v2270, 4294901760
    %2272 = vmatpush.msra.mxu0 %v2271
    %v2273 = vand.u32 %v1801, 4294901760
    %v2274 = vsub.f32 %v1801, %v2273
    %v2275 = vand.u32 %v2274, 4294901760
    %2276 = vmatpush.msra.mxu0 %v2275
    %v2277 = vand.u32 %v1786, 4294901760
    %v2278 = vsub.f32 %v1786, %v2277
    %v2279 = vand.u32 %v2278, 4294901760
    %2280 = vmatpush.msra.mxu0 %v2279
    %v2281 = vand.u32 %v1771, 4294901760
    %v2282 = vsub.f32 %v1771, %v2281
    %v2283 = vand.u32 %v2282, 4294901760
    %2284 = vmatpush.msra.mxu0 %v2283
    %v2285 = vand.u32 %v1756, 4294901760
    %v2286 = vsub.f32 %v1756, %v2285
    %v2287 = vand.u32 %v2286, 4294901760
    %2288 = vmatpush.msra.mxu0 %v2287
    %v2289 = vand.u32 %v1741, 4294901760
    %v2290 = vsub.f32 %v1741, %v2289
    %v2291 = vand.u32 %v2290, 4294901760
    %2292 = vmatpush.msra.mxu0 %v2291
    %v2293 = vand.u32 %v1726, 4294901760
    %v2294 = vsub.f32 %v1726, %v2293
    %v2295 = vand.u32 %v2294, 4294901760
    %2296 = vmatpush.msra.mxu0 %v2295
    %v2297 = vand.u32 %v1711, 4294901760
    %v2298 = vsub.f32 %v1711, %v2297
    %v2299 = vand.u32 %v2298, 4294901760
    %2300 = vmatpush.msra.mxu0 %v2299
    %v2301 = vand.u32 %v1696, 4294901760
    %v2302 = vsub.f32 %v1696, %v2301
    %v2303 = vand.u32 %v2302, 4294901760
    %2304 = vmatpush.msra.mxu0 %v2303
    %v2305 = vand.u32 %v1681, 4294901760
    %v2306 = vsub.f32 %v1681, %v2305
    %v2307 = vand.u32 %v2306, 4294901760
    %2308 = vmatpush.msra.mxu0 %v2307
    %v2309 = vand.u32 %v1666, 4294901760
    %v2310 = vsub.f32 %v1666, %v2309
    %v2311 = vand.u32 %v2310, 4294901760
    %2312 = vmatpush.msra.mxu0 %v2311
    %v2313 = vand.u32 %v1651, 4294901760
    %v2314 = vsub.f32 %v1651, %v2313
    %v2315 = vand.u32 %v2314, 4294901760
    %2316 = vmatpush.msra.mxu0 %v2315
    %v2317 = vand.u32 %v1636, 4294901760
    %v2318 = vsub.f32 %v1636, %v2317
    %v2319 = vand.u32 %v2318, 4294901760
    %2320 = vmatpush.msra.mxu0 %v2319
    %v2321 = vand.u32 %v1621, 4294901760
    %v2322 = vsub.f32 %v1621, %v2321
    %v2323 = vand.u32 %v2322, 4294901760
    %2324 = vmatpush.msra.mxu0 %v2323
    %v2325 = vand.u32 %v1606, 4294901760
    %v2326 = vsub.f32 %v1606, %v2325
    %v2327 = vand.u32 %v2326, 4294901760
    %2328 = vmatpush.msra.mxu0 %v2327
    %v2329 = vand.u32 %v1591, 4294901760
    %v2330 = vsub.f32 %v1591, %v2329
    %v2331 = vand.u32 %v2330, 4294901760
    %2332 = vmatpush.msra.mxu0 %v2331
    %v2333 = vand.u32 %v1817, 4294901760
    %2334 = vmatmul.f32.gmra.mxu0 %v2333
    %v2335 = vpop.f32.mrf.mxu0
    %v2336 = vadd.f32 %v2225, %v2335
    %v2337 = vand.u32 %v1818, 4294901760
    %2338 = vmatmul.f32.gmra.mxu0 %v2337
    %v2339 = vpop.f32.mrf.mxu0
    %v2340 = vadd.f32 %v2231, %v2339
    %v2341 = vand.u32 %v1819, 4294901760
    %2342 = vmatmul.f32.gmra.mxu0 %v2341
    %v2343 = vpop.f32.mrf.mxu0
    %v2344 = vadd.f32 %v2237, %v2343
    %v2345 = vand.u32 %v1820, 4294901760
    %2346 = vmatmul.f32.gmra.mxu0 %v2345
    %v2347 = vpop.f32.mrf.mxu0
    %v2348 = vadd.f32 %v2243, %v2347
    %v2349 = vand.u32 %v1821, 4294901760
    %2350 = vmatmul.f32.gmra.mxu0 %v2349
    %v2351 = vpop.f32.mrf.mxu0
    %v2352 = vadd.f32 %v2249, %v2351
    %v2353 = vand.u32 %v1822, 4294901760
    %2354 = vmatmul.f32.gmra.mxu0 %v2353
    %v2355 = vpop.f32.mrf.mxu0
    %v2356 = vadd.f32 %v2255, %v2355
    %v2357 = vand.u32 %v1823, 4294901760
    %2358 = vmatmul.f32.gmra.mxu0 %v2357
    %v2359 = vpop.f32.mrf.mxu0
    %v2360 = vadd.f32 %v2261, %v2359
    %v2361 = vand.u32 %v1824, 4294901760
    %2362 = vmatmul.f32.gmra.mxu0 %v2361
    %v2363 = vpop.f32.mrf.mxu0
    %v2364 = vadd.f32 %v2267, %v2363
    %2365 = vdwg.mxu0
    %v2366 = vand.u32 %v1816, 4294901760
    %2367 = vmatpush.msra.mxu0 %v2366
    %v2368 = vand.u32 %v1801, 4294901760
    %2369 = vmatpush.msra.mxu0 %v2368
    %v2370 = vand.u32 %v1786, 4294901760
    %2371 = vmatpush.msra.mxu0 %v2370
    %v2372 = vand.u32 %v1771, 4294901760
    %2373 = vmatpush.msra.mxu0 %v2372
    %v2374 = vand.u32 %v1756, 4294901760
    %2375 = vmatpush.msra.mxu0 %v2374
    %v2376 = vand.u32 %v1741, 4294901760
    %2377 = vmatpush.msra.mxu0 %v2376
    %v2378 = vand.u32 %v1726, 4294901760
    %2379 = vmatpush.msra.mxu0 %v2378
    %v2380 = vand.u32 %v1711, 4294901760
    %2381 = vmatpush.msra.mxu0 %v2380
    %v2382 = vand.u32 %v1696, 4294901760
    %2383 = vmatpush.msra.mxu0 %v2382
    %v2384 = vand.u32 %v1681, 4294901760
    %2385 = vmatpush.msra.mxu0 %v2384
    %v2386 = vand.u32 %v1666, 4294901760
    %2387 = vmatpush.msra.mxu0 %v2386
    %v2388 = vand.u32 %v1651, 4294901760
    %2389 = vmatpush.msra.mxu0 %v2388
    %v2390 = vand.u32 %v1636, 4294901760
    %2391 = vmatpush.msra.mxu0 %v2390
    %v2392 = vand.u32 %v1621, 4294901760
    %2393 = vmatpush.msra.mxu0 %v2392
    %v2394 = vand.u32 %v1606, 4294901760
    %2395 = vmatpush.msra.mxu0 %v2394
    %v2396 = vand.u32 %v1591, 4294901760
    %2397 = vmatpush.msra.mxu0 %v2396
    %v2398 = vand.u32 %v1817, 4294901760
    %2399 = vmatmul.f32.gmra.mxu0 %v2398
    %v2400 = vpop.f32.mrf.mxu0
    %v2401 = vadd.f32 %v2336, %v2400
    %v2402 = vand.u32 %v1818, 4294901760
    %2403 = vmatmul.f32.gmra.mxu0 %v2402
    %v2404 = vpop.f32.mrf.mxu0
    %v2405 = vadd.f32 %v2340, %v2404
    %v2406 = vand.u32 %v1819, 4294901760
    %2407 = vmatmul.f32.gmra.mxu0 %v2406
    %v2408 = vpop.f32.mrf.mxu0
    %v2409 = vadd.f32 %v2344, %v2408
    %v2410 = vand.u32 %v1820, 4294901760
    %2411 = vmatmul.f32.gmra.mxu0 %v2410
    %v2412 = vpop.f32.mrf.mxu0
    %v2413 = vadd.f32 %v2348, %v2412
    %v2414 = vand.u32 %v1821, 4294901760
    %2415 = vmatmul.f32.gmra.mxu0 %v2414
    %v2416 = vpop.f32.mrf.mxu0
    %v2417 = vadd.f32 %v2352, %v2416
    %v2418 = vand.u32 %v1822, 4294901760
    %2419 = vmatmul.f32.gmra.mxu0 %v2418
    %v2420 = vpop.f32.mrf.mxu0
    %v2421 = vadd.f32 %v2356, %v2420
    %v2422 = vand.u32 %v1823, 4294901760
    %2423 = vmatmul.f32.gmra.mxu0 %v2422
    %v2424 = vpop.f32.mrf.mxu0
    %v2425 = vadd.f32 %v2360, %v2424
    %v2426 = vand.u32 %v1824, 4294901760
    %2427 = vmatmul.f32.gmra.mxu0 %v2426
    %v2428 = vpop.f32.mrf.mxu0
    %v2429 = vadd.f32 %v2364, %v2428
    %2430 = vdwg.mxu0
    %v2431 = vxor.u32 %v2401, 2147483648
    %v2432 = vxor.u32 %v2405, 2147483648
    %v2433 = vxor.u32 %v2409, 2147483648
    %v2434 = vxor.u32 %v2413, 2147483648
    %v2435 = vxor.u32 %v2417, 2147483648
    %v2436 = vxor.u32 %v2421, 2147483648
    %v2437 = vxor.u32 %v2425, 2147483648
    %v2438 = vxor.u32 %v2429, 2147483648
    %v2439 = vmul.f32 %v2431, 1.442695
    %v2440 = vpow.pop %v2439
    %v2441 = vmul.f32 %v2432, 1.442695
    %v2442 = vpow.pop %v2441
    %v2443 = vmul.f32 %v2433, 1.442695
    %v2444 = vpow.pop %v2443
    %v2445 = vmul.f32 %v2434, 1.442695
    %v2446 = vpow.pop %v2445
    %v2447 = vmul.f32 %v2435, 1.442695
    %v2448 = vpow.pop %v2447
    %v2449 = vmul.f32 %v2436, 1.442695
    %v2450 = vpow.pop %v2449
    %v2451 = vmul.f32 %v2437, 1.442695
    %v2452 = vpow.pop %v2451
    %v2453 = vmul.f32 %v2438, 1.442695
    %v2454 = vpow.pop %v2453
    %v2455 = vadd.f32 %v2440, 1.0
    %v2456 = vadd.f32 %v2442, 1.0
    %v2457 = vadd.f32 %v2444, 1.0
    %v2458 = vadd.f32 %v2446, 1.0
    %v2459 = vadd.f32 %v2448, 1.0
    %v2460 = vadd.f32 %v2450, 1.0
    %v2461 = vadd.f32 %v2452, 1.0
    %v2462 = vadd.f32 %v2454, 1.0
    %v2463 = vrcp.pop %v2455
    %v2464 = vmul.f32 %v2455, %v2463
    %v2465 = vsub.f32 1.0, %v2464
    %v2466 = vmul.f32 %v2463, %v2465
    %v2467 = vadd.f32 %v2463, %v2466
    %vm2468 = vweird.f32 %v2455
    %vm2469 = vweird.f32 %v2463
    %vm2470 = vmor %vm2468, %vm2469
    %v2471 = vsel %vm2470, %v2463, %v2467
    %v2472 = vand.u32 2147483647, %v2455
    %vm2473 = vcmp.eq.f32.partialorder %v2472, 8.507059e+37
    %v2474 = vand.u32 %v2455, 2147483648
    %v2475 = vor.u32 1.1754944e-38, %v2474
    %v2476 = vsel %vm2473, %v2475, %v2471
    %v2477 = vmul.f32 1.0, %v2476
    %v2478 = vrcp.pop %v2456
    %v2479 = vmul.f32 %v2456, %v2478
    %v2480 = vsub.f32 1.0, %v2479
    %v2481 = vmul.f32 %v2478, %v2480
    %v2482 = vadd.f32 %v2478, %v2481
    %vm2483 = vweird.f32 %v2456
    %vm2484 = vweird.f32 %v2478
    %vm2485 = vmor %vm2483, %vm2484
    %v2486 = vsel %vm2485, %v2478, %v2482
    %v2487 = vand.u32 2147483647, %v2456
    %vm2488 = vcmp.eq.f32.partialorder %v2487, 8.507059e+37
    %v2489 = vand.u32 %v2456, 2147483648
    %v2490 = vor.u32 1.1754944e-38, %v2489
    %v2491 = vsel %vm2488, %v2490, %v2486
    %v2492 = vmul.f32 1.0, %v2491
    %v2493 = vrcp.pop %v2457
    %v2494 = vmul.f32 %v2457, %v2493
    %v2495 = vsub.f32 1.0, %v2494
    %v2496 = vmul.f32 %v2493, %v2495
    %v2497 = vadd.f32 %v2493, %v2496
    %vm2498 = vweird.f32 %v2457
    %vm2499 = vweird.f32 %v2493
    %vm2500 = vmor %vm2498, %vm2499
    %v2501 = vsel %vm2500, %v2493, %v2497
    %v2502 = vand.u32 2147483647, %v2457
    %vm2503 = vcmp.eq.f32.partialorder %v2502, 8.507059e+37
    %v2504 = vand.u32 %v2457, 2147483648
    %v2505 = vor.u32 1.1754944e-38, %v2504
    %v2506 = vsel %vm2503, %v2505, %v2501
    %v2507 = vmul.f32 1.0, %v2506
    %v2508 = vrcp.pop %v2458
    %v2509 = vmul.f32 %v2458, %v2508
    %v2510 = vsub.f32 1.0, %v2509
    %v2511 = vmul.f32 %v2508, %v2510
    %v2512 = vadd.f32 %v2508, %v2511
    %vm2513 = vweird.f32 %v2458
    %vm2514 = vweird.f32 %v2508
    %vm2515 = vmor %vm2513, %vm2514
    %v2516 = vsel %vm2515, %v2508, %v2512
    %v2517 = vand.u32 2147483647, %v2458
    %vm2518 = vcmp.eq.f32.partialorder %v2517, 8.507059e+37
    %v2519 = vand.u32 %v2458, 2147483648
    %v2520 = vor.u32 1.1754944e-38, %v2519
    %v2521 = vsel %vm2518, %v2520, %v2516
    %v2522 = vmul.f32 1.0, %v2521
    %v2523 = vrcp.pop %v2459
    %v2524 = vmul.f32 %v2459, %v2523
    %v2525 = vsub.f32 1.0, %v2524
    %v2526 = vmul.f32 %v2523, %v2525
    %v2527 = vadd.f32 %v2523, %v2526
    %vm2528 = vweird.f32 %v2459
    %vm2529 = vweird.f32 %v2523
    %vm2530 = vmor %vm2528, %vm2529
    %v2531 = vsel %vm2530, %v2523, %v2527
    %v2532 = vand.u32 2147483647, %v2459
    %vm2533 = vcmp.eq.f32.partialorder %v2532, 8.507059e+37
    %v2534 = vand.u32 %v2459, 2147483648
    %v2535 = vor.u32 1.1754944e-38, %v2534
    %v2536 = vsel %vm2533, %v2535, %v2531
    %v2537 = vmul.f32 1.0, %v2536
    %v2538 = vrcp.pop %v2460
    %v2539 = vmul.f32 %v2460, %v2538
    %v2540 = vsub.f32 1.0, %v2539
    %v2541 = vmul.f32 %v2538, %v2540
    %v2542 = vadd.f32 %v2538, %v2541
    %vm2543 = vweird.f32 %v2460
    %vm2544 = vweird.f32 %v2538
    %vm2545 = vmor %vm2543, %vm2544
    %v2546 = vsel %vm2545, %v2538, %v2542
    %v2547 = vand.u32 2147483647, %v2460
    %vm2548 = vcmp.eq.f32.partialorder %v2547, 8.507059e+37
    %v2549 = vand.u32 %v2460, 2147483648
    %v2550 = vor.u32 1.1754944e-38, %v2549
    %v2551 = vsel %vm2548, %v2550, %v2546
    %v2552 = vmul.f32 1.0, %v2551
    %v2553 = vrcp.pop %v2461
    %v2554 = vmul.f32 %v2461, %v2553
    %v2555 = vsub.f32 1.0, %v2554
    %v2556 = vmul.f32 %v2553, %v2555
    %v2557 = vadd.f32 %v2553, %v2556
    %vm2558 = vweird.f32 %v2461
    %vm2559 = vweird.f32 %v2553
    %vm2560 = vmor %vm2558, %vm2559
    %v2561 = vsel %vm2560, %v2553, %v2557
    %v2562 = vand.u32 2147483647, %v2461
    %vm2563 = vcmp.eq.f32.partialorder %v2562, 8.507059e+37
    %v2564 = vand.u32 %v2461, 2147483648
    %v2565 = vor.u32 1.1754944e-38, %v2564
    %v2566 = vsel %vm2563, %v2565, %v2561
    %v2567 = vmul.f32 1.0, %v2566
    %v2568 = vrcp.pop %v2462
    %v2569 = vmul.f32 %v2462, %v2568
    %v2570 = vsub.f32 1.0, %v2569
    %v2571 = vmul.f32 %v2568, %v2570
    %v2572 = vadd.f32 %v2568, %v2571
    %vm2573 = vweird.f32 %v2462
    %vm2574 = vweird.f32 %v2568
    %vm2575 = vmor %vm2573, %vm2574
    %v2576 = vsel %vm2575, %v2568, %v2572
    %v2577 = vand.u32 2147483647, %v2462
    %vm2578 = vcmp.eq.f32.partialorder %v2577, 8.507059e+37
    %v2579 = vand.u32 %v2462, 2147483648
    %v2580 = vor.u32 1.1754944e-38, %v2579
    %v2581 = vsel %vm2578, %v2580, %v2576
    %v2582 = vmul.f32 1.0, %v2581
    %v2583 = vld [vmem:[%s1 + $0x100] sm:$0xff]
    %v2584 = vld [vmem:[%s1 + $0x108] sm:$0xff]
    %v2585 = vld [vmem:[%s1 + $0x110] sm:$0xff]
    %v2586 = vld [vmem:[%s1 + $0x118] sm:$0xff]
    %v2587 = vld [vmem:[%s2 + $0x100] sm:$0xff]
    %v2588 = vld [vmem:[%s2 + $0x108] sm:$0xff]
    %v2589 = vld [vmem:[%s2 + $0x110] sm:$0xff]
    %v2590 = vld [vmem:[%s2 + $0x118] sm:$0xff]
    %2592 = vset.pattern.permute.xlu0 0
    %2593 = vperm.xlu0 %2592, %v2587
    %v2594 = vpop.permute.xlu0 %2593
    %2597 = vset.pattern.permute.xlu0 0
    %2598 = vperm.xlu0 %2597, %v2588
    %v2599 = vpop.permute.xlu0 %2598
    %2602 = vset.pattern.permute.xlu0 0
    %2603 = vperm.xlu0 %2602, %v2589
    %v2604 = vpop.permute.xlu0 %2603
    %2607 = vset.pattern.permute.xlu0 0
    %2608 = vperm.xlu0 %2607, %v2590
    %v2609 = vpop.permute.xlu0 %2608
    %v2612 = vsel %vm762, %v2583, 0
    %v2615 = vsel %vm762, %v2584, 0
    %v2618 = vsel %vm762, %v2585, 0
    %v2621 = vsel %vm762, %v2586, 0
    %2623 = vmatpush.msra.mxu0 0.0
    %2624 = vmatpush.msra.mxu0 0.0
    %2625 = vmatpush.msra.mxu0 0.0
    %2626 = vmatpush.msra.mxu0 0.0
    %2627 = vmatpush.msra.mxu0 0.0
    %2628 = vmatpush.msra.mxu0 0.0
    %2629 = vmatpush.msra.mxu0 0.0
    %2630 = vmatpush.msra.mxu0 0.0
    %v2631 = vand.u32 %v2582, 4294901760
    %2632 = vmatpush.msra.mxu0 %v2631
    %v2633 = vand.u32 %v2567, 4294901760
    %2634 = vmatpush.msra.mxu0 %v2633
    %v2635 = vand.u32 %v2552, 4294901760
    %2636 = vmatpush.msra.mxu0 %v2635
    %v2637 = vand.u32 %v2537, 4294901760
    %2638 = vmatpush.msra.mxu0 %v2637
    %v2639 = vand.u32 %v2522, 4294901760
    %2640 = vmatpush.msra.mxu0 %v2639
    %v2641 = vand.u32 %v2507, 4294901760
    %2642 = vmatpush.msra.mxu0 %v2641
    %v2643 = vand.u32 %v2492, 4294901760
    %2644 = vmatpush.msra.mxu0 %v2643
    %v2645 = vand.u32 %v2477, 4294901760
    %2646 = vmatpush.msra.mxu0 %v2645
    %v2647 = vand.u32 %v2612, 4294901760
    %v2648 = vsub.f32 %v2612, %v2647
    %v2649 = vand.u32 %v2648, 4294901760
    %v2650 = vsub.f32 %v2648, %v2649
    %v2651 = vand.u32 %v2650, 4294901760
    %2652 = vmatmul.f32.gmra.mxu0 %v2651
    %v2653 = vpop.f32.mrf.mxu0
    %v2654 = vadd.f32 %v2594, %v2653
    %v2655 = vand.u32 %v2615, 4294901760
    %v2656 = vsub.f32 %v2615, %v2655
    %v2657 = vand.u32 %v2656, 4294901760
    %v2658 = vsub.f32 %v2656, %v2657
    %v2659 = vand.u32 %v2658, 4294901760
    %2660 = vmatmul.f32.gmra.mxu0 %v2659
    %v2661 = vpop.f32.mrf.mxu0
    %v2662 = vadd.f32 %v2599, %v2661
    %v2663 = vand.u32 %v2618, 4294901760
    %v2664 = vsub.f32 %v2618, %v2663
    %v2665 = vand.u32 %v2664, 4294901760
    %v2666 = vsub.f32 %v2664, %v2665
    %v2667 = vand.u32 %v2666, 4294901760
    %2668 = vmatmul.f32.gmra.mxu0 %v2667
    %v2669 = vpop.f32.mrf.mxu0
    %v2670 = vadd.f32 %v2604, %v2669
    %v2671 = vand.u32 %v2621, 4294901760
    %v2672 = vsub.f32 %v2621, %v2671
    %v2673 = vand.u32 %v2672, 4294901760
    %v2674 = vsub.f32 %v2672, %v2673
    %v2675 = vand.u32 %v2674, 4294901760
    %2676 = vmatmul.f32.gmra.mxu0 %v2675
    %v2677 = vpop.f32.mrf.mxu0
    %v2678 = vadd.f32 %v2609, %v2677
    %2679 = vdwg.mxu0
    %2680 = vmatpush.msra.mxu0 0.0
    %2681 = vmatpush.msra.mxu0 0.0
    %2682 = vmatpush.msra.mxu0 0.0
    %2683 = vmatpush.msra.mxu0 0.0
    %2684 = vmatpush.msra.mxu0 0.0
    %2685 = vmatpush.msra.mxu0 0.0
    %2686 = vmatpush.msra.mxu0 0.0
    %2687 = vmatpush.msra.mxu0 0.0
    %v2688 = vand.u32 %v2582, 4294901760
    %v2689 = vsub.f32 %v2582, %v2688
    %v2690 = vand.u32 %v2689, 4294901760
    %v2691 = vsub.f32 %v2689, %v2690
    %v2692 = vand.u32 %v2691, 4294901760
    %2693 = vmatpush.msra.mxu0 %v2692
    %v2694 = vand.u32 %v2567, 4294901760
    %v2695 = vsub.f32 %v2567, %v2694
    %v2696 = vand.u32 %v2695, 4294901760
    %v2697 = vsub.f32 %v2695, %v2696
    %v2698 = vand.u32 %v2697, 4294901760
    %2699 = vmatpush.msra.mxu0 %v2698
    %v2700 = vand.u32 %v2552, 4294901760
    %v2701 = vsub.f32 %v2552, %v2700
    %v2702 = vand.u32 %v2701, 4294901760
    %v2703 = vsub.f32 %v2701, %v2702
    %v2704 = vand.u32 %v2703, 4294901760
    %2705 = vmatpush.msra.mxu0 %v2704
    %v2706 = vand.u32 %v2537, 4294901760
    %v2707 = vsub.f32 %v2537, %v2706
    %v2708 = vand.u32 %v2707, 4294901760
    %v2709 = vsub.f32 %v2707, %v2708
    %v2710 = vand.u32 %v2709, 4294901760
    %2711 = vmatpush.msra.mxu0 %v2710
    %v2712 = vand.u32 %v2522, 4294901760
    %v2713 = vsub.f32 %v2522, %v2712
    %v2714 = vand.u32 %v2713, 4294901760
    %v2715 = vsub.f32 %v2713, %v2714
    %v2716 = vand.u32 %v2715, 4294901760
    %2717 = vmatpush.msra.mxu0 %v2716
    %v2718 = vand.u32 %v2507, 4294901760
    %v2719 = vsub.f32 %v2507, %v2718
    %v2720 = vand.u32 %v2719, 4294901760
    %v2721 = vsub.f32 %v2719, %v2720
    %v2722 = vand.u32 %v2721, 4294901760
    %2723 = vmatpush.msra.mxu0 %v2722
    %v2724 = vand.u32 %v2492, 4294901760
    %v2725 = vsub.f32 %v2492, %v2724
    %v2726 = vand.u32 %v2725, 4294901760
    %v2727 = vsub.f32 %v2725, %v2726
    %v2728 = vand.u32 %v2727, 4294901760
    %2729 = vmatpush.msra.mxu0 %v2728
    %v2730 = vand.u32 %v2477, 4294901760
    %v2731 = vsub.f32 %v2477, %v2730
    %v2732 = vand.u32 %v2731, 4294901760
    %v2733 = vsub.f32 %v2731, %v2732
    %v2734 = vand.u32 %v2733, 4294901760
    %2735 = vmatpush.msra.mxu0 %v2734
    %v2736 = vand.u32 %v2612, 4294901760
    %2737 = vmatmul.f32.gmra.mxu0 %v2736
    %v2738 = vpop.f32.mrf.mxu0
    %v2739 = vadd.f32 %v2654, %v2738
    %v2740 = vand.u32 %v2615, 4294901760
    %2741 = vmatmul.f32.gmra.mxu0 %v2740
    %v2742 = vpop.f32.mrf.mxu0
    %v2743 = vadd.f32 %v2662, %v2742
    %v2744 = vand.u32 %v2618, 4294901760
    %2745 = vmatmul.f32.gmra.mxu0 %v2744
    %v2746 = vpop.f32.mrf.mxu0
    %v2747 = vadd.f32 %v2670, %v2746
    %v2748 = vand.u32 %v2621, 4294901760
    %2749 = vmatmul.f32.gmra.mxu0 %v2748
    %v2750 = vpop.f32.mrf.mxu0
    %v2751 = vadd.f32 %v2678, %v2750
    %2752 = vdwg.mxu0
    %2753 = vmatpush.msra.mxu0 0.0
    %2754 = vmatpush.msra.mxu0 0.0
    %2755 = vmatpush.msra.mxu0 0.0
    %2756 = vmatpush.msra.mxu0 0.0
    %2757 = vmatpush.msra.mxu0 0.0
    %2758 = vmatpush.msra.mxu0 0.0
    %2759 = vmatpush.msra.mxu0 0.0
    %2760 = vmatpush.msra.mxu0 0.0
    %v2761 = vand.u32 %v2582, 4294901760
    %v2762 = vsub.f32 %v2582, %v2761
    %2763 = vmatpush.msra.mxu0 %v2762
    %v2764 = vand.u32 %v2567, 4294901760
    %v2765 = vsub.f32 %v2567, %v2764
    %2766 = vmatpush.msra.mxu0 %v2765
    %v2767 = vand.u32 %v2552, 4294901760
    %v2768 = vsub.f32 %v2552, %v2767
    %2769 = vmatpush.msra.mxu0 %v2768
    %v2770 = vand.u32 %v2537, 4294901760
    %v2771 = vsub.f32 %v2537, %v2770
    %2772 = vmatpush.msra.mxu0 %v2771
    %v2773 = vand.u32 %v2522, 4294901760
    %v2774 = vsub.f32 %v2522, %v2773
    %2775 = vmatpush.msra.mxu0 %v2774
    %v2776 = vand.u32 %v2507, 4294901760
    %v2777 = vsub.f32 %v2507, %v2776
    %2778 = vmatpush.msra.mxu0 %v2777
    %v2779 = vand.u32 %v2492, 4294901760
    %v2780 = vsub.f32 %v2492, %v2779
    %2781 = vmatpush.msra.mxu0 %v2780
    %v2782 = vand.u32 %v2477, 4294901760
    %v2783 = vsub.f32 %v2477, %v2782
    %2784 = vmatpush.msra.mxu0 %v2783
    %v2785 = vand.u32 %v2612, 4294901760
    %v2786 = vsub.f32 %v2612, %v2785
    %2787 = vmatmul.f32.gmra.mxu0 %v2786
    %v2788 = vpop.f32.mrf.mxu0
    %v2789 = vadd.f32 %v2739, %v2788
    %v2790 = vand.u32 %v2615, 4294901760
    %v2791 = vsub.f32 %v2615, %v2790
    %2792 = vmatmul.f32.gmra.mxu0 %v2791
    %v2793 = vpop.f32.mrf.mxu0
    %v2794 = vadd.f32 %v2743, %v2793
    %v2795 = vand.u32 %v2618, 4294901760
    %v2796 = vsub.f32 %v2618, %v2795
    %2797 = vmatmul.f32.gmra.mxu0 %v2796
    %v2798 = vpop.f32.mrf.mxu0
    %v2799 = vadd.f32 %v2747, %v2798
    %v2800 = vand.u32 %v2621, 4294901760
    %v2801 = vsub.f32 %v2621, %v2800
    %2802 = vmatmul.f32.gmra.mxu0 %v2801
    %v2803 = vpop.f32.mrf.mxu0
    %v2804 = vadd.f32 %v2751, %v2803
    %2805 = vdwg.mxu0
    %2806 = vmatpush.msra.mxu0 0.0
    %2807 = vmatpush.msra.mxu0 0.0
    %2808 = vmatpush.msra.mxu0 0.0
    %2809 = vmatpush.msra.mxu0 0.0
    %2810 = vmatpush.msra.mxu0 0.0
    %2811 = vmatpush.msra.mxu0 0.0
    %2812 = vmatpush.msra.mxu0 0.0
    %2813 = vmatpush.msra.mxu0 0.0
    %v2814 = vand.u32 %v2582, 4294901760
    %2815 = vmatpush.msra.mxu0 %v2814
    %v2816 = vand.u32 %v2567, 4294901760
    %2817 = vmatpush.msra.mxu0 %v2816
    %v2818 = vand.u32 %v2552, 4294901760
    %2819 = vmatpush.msra.mxu0 %v2818
    %v2820 = vand.u32 %v2537, 4294901760
    %2821 = vmatpush.msra.mxu0 %v2820
    %v2822 = vand.u32 %v2522, 4294901760
    %2823 = vmatpush.msra.mxu0 %v2822
    %v2824 = vand.u32 %v2507, 4294901760
    %2825 = vmatpush.msra.mxu0 %v2824
    %v2826 = vand.u32 %v2492, 4294901760
    %2827 = vmatpush.msra.mxu0 %v2826
    %v2828 = vand.u32 %v2477, 4294901760
    %2829 = vmatpush.msra.mxu0 %v2828
    %v2830 = vand.u32 %v2612, 4294901760
    %v2831 = vsub.f32 %v2612, %v2830
    %v2832 = vand.u32 %v2831, 4294901760
    %2833 = vmatmul.f32.gmra.mxu0 %v2832
    %v2834 = vpop.f32.mrf.mxu0
    %v2835 = vadd.f32 %v2789, %v2834
    %v2836 = vand.u32 %v2615, 4294901760
    %v2837 = vsub.f32 %v2615, %v2836
    %v2838 = vand.u32 %v2837, 4294901760
    %2839 = vmatmul.f32.gmra.mxu0 %v2838
    %v2840 = vpop.f32.mrf.mxu0
    %v2841 = vadd.f32 %v2794, %v2840
    %v2842 = vand.u32 %v2618, 4294901760
    %v2843 = vsub.f32 %v2618, %v2842
    %v2844 = vand.u32 %v2843, 4294901760
    %2845 = vmatmul.f32.gmra.mxu0 %v2844
    %v2846 = vpop.f32.mrf.mxu0
    %v2847 = vadd.f32 %v2799, %v2846
    %v2848 = vand.u32 %v2621, 4294901760
    %v2849 = vsub.f32 %v2621, %v2848
    %v2850 = vand.u32 %v2849, 4294901760
    %2851 = vmatmul.f32.gmra.mxu0 %v2850
    %v2852 = vpop.f32.mrf.mxu0
    %v2853 = vadd.f32 %v2804, %v2852
    %2854 = vdwg.mxu0
    %2855 = vmatpush.msra.mxu0 0.0
    %2856 = vmatpush.msra.mxu0 0.0
    %2857 = vmatpush.msra.mxu0 0.0
    %2858 = vmatpush.msra.mxu0 0.0
    %2859 = vmatpush.msra.mxu0 0.0
    %2860 = vmatpush.msra.mxu0 0.0
    %2861 = vmatpush.msra.mxu0 0.0
    %2862 = vmatpush.msra.mxu0 0.0
    %v2863 = vand.u32 %v2582, 4294901760
    %v2864 = vsub.f32 %v2582, %v2863
    %v2865 = vand.u32 %v2864, 4294901760
    %2866 = vmatpush.msra.mxu0 %v2865
    %v2867 = vand.u32 %v2567, 4294901760
    %v2868 = vsub.f32 %v2567, %v2867
    %v2869 = vand.u32 %v2868, 4294901760
    %2870 = vmatpush.msra.mxu0 %v2869
    %v2871 = vand.u32 %v2552, 4294901760
    %v2872 = vsub.f32 %v2552, %v2871
    %v2873 = vand.u32 %v2872, 4294901760
    %2874 = vmatpush.msra.mxu0 %v2873
    %v2875 = vand.u32 %v2537, 4294901760
    %v2876 = vsub.f32 %v2537, %v2875
    %v2877 = vand.u32 %v2876, 4294901760
    %2878 = vmatpush.msra.mxu0 %v2877
    %v2879 = vand.u32 %v2522, 4294901760
    %v2880 = vsub.f32 %v2522, %v2879
    %v2881 = vand.u32 %v2880, 4294901760
    %2882 = vmatpush.msra.mxu0 %v2881
    %v2883 = vand.u32 %v2507, 4294901760
    %v2884 = vsub.f32 %v2507, %v2883
    %v2885 = vand.u32 %v2884, 4294901760
    %2886 = vmatpush.msra.mxu0 %v2885
    %v2887 = vand.u32 %v2492, 4294901760
    %v2888 = vsub.f32 %v2492, %v2887
    %v2889 = vand.u32 %v2888, 4294901760
    %2890 = vmatpush.msra.mxu0 %v2889
    %v2891 = vand.u32 %v2477, 4294901760
    %v2892 = vsub.f32 %v2477, %v2891
    %v2893 = vand.u32 %v2892, 4294901760
    %2894 = vmatpush.msra.mxu0 %v2893
    %v2895 = vand.u32 %v2612, 4294901760
    %2896 = vmatmul.f32.gmra.mxu0 %v2895
    %v2897 = vpop.f32.mrf.mxu0
    %v2898 = vadd.f32 %v2835, %v2897
    %v2899 = vand.u32 %v2615, 4294901760
    %2900 = vmatmul.f32.gmra.mxu0 %v2899
    %v2901 = vpop.f32.mrf.mxu0
    %v2902 = vadd.f32 %v2841, %v2901
    %v2903 = vand.u32 %v2618, 4294901760
    %2904 = vmatmul.f32.gmra.mxu0 %v2903
    %v2905 = vpop.f32.mrf.mxu0
    %v2906 = vadd.f32 %v2847, %v2905
    %v2907 = vand.u32 %v2621, 4294901760
    %2908 = vmatmul.f32.gmra.mxu0 %v2907
    %v2909 = vpop.f32.mrf.mxu0
    %v2910 = vadd.f32 %v2853, %v2909
    %2911 = vdwg.mxu0
    %2912 = vmatpush.msra.mxu0 0.0
    %2913 = vmatpush.msra.mxu0 0.0
    %2914 = vmatpush.msra.mxu0 0.0
    %2915 = vmatpush.msra.mxu0 0.0
    %2916 = vmatpush.msra.mxu0 0.0
    %2917 = vmatpush.msra.mxu0 0.0
    %2918 = vmatpush.msra.mxu0 0.0
    %2919 = vmatpush.msra.mxu0 0.0
    %v2920 = vand.u32 %v2582, 4294901760
    %2921 = vmatpush.msra.mxu0 %v2920
    %v2922 = vand.u32 %v2567, 4294901760
    %2923 = vmatpush.msra.mxu0 %v2922
    %v2924 = vand.u32 %v2552, 4294901760
    %2925 = vmatpush.msra.mxu0 %v2924
    %v2926 = vand.u32 %v2537, 4294901760
    %2927 = vmatpush.msra.mxu0 %v2926
    %v2928 = vand.u32 %v2522, 4294901760
    %2929 = vmatpush.msra.mxu0 %v2928
    %v2930 = vand.u32 %v2507, 4294901760
    %2931 = vmatpush.msra.mxu0 %v2930
    %v2932 = vand.u32 %v2492, 4294901760
    %2933 = vmatpush.msra.mxu0 %v2932
    %v2934 = vand.u32 %v2477, 4294901760
    %2935 = vmatpush.msra.mxu0 %v2934
    %v2936 = vand.u32 %v2612, 4294901760
    %2937 = vmatmul.f32.gmra.mxu0 %v2936
    %v2938 = vpop.f32.mrf.mxu0
    %v2939 = vadd.f32 %v2898, %v2938
    %v2940 = vand.u32 %v2615, 4294901760
    %2941 = vmatmul.f32.gmra.mxu0 %v2940
    %v2942 = vpop.f32.mrf.mxu0
    %v2943 = vadd.f32 %v2902, %v2942
    %v2944 = vand.u32 %v2618, 4294901760
    %2945 = vmatmul.f32.gmra.mxu0 %v2944
    %v2946 = vpop.f32.mrf.mxu0
    %v2947 = vadd.f32 %v2906, %v2946
    %v2948 = vand.u32 %v2621, 4294901760
    %2949 = vmatmul.f32.gmra.mxu0 %v2948
    %v2950 = vpop.f32.mrf.mxu0
    %v2951 = vadd.f32 %v2910, %v2950
    %2952 = vdwg.mxu0
    %v2953 = vxor.u32 %v2939, 2147483648
    %v2954 = vxor.u32 %v2943, 2147483648
    %v2955 = vxor.u32 %v2947, 2147483648
    %v2956 = vxor.u32 %v2951, 2147483648
    %v2957 = vmul.f32 %v2953, 1.442695
    %v2958 = vpow.pop %v2957
    %v2959 = vmul.f32 %v2954, 1.442695
    %v2960 = vpow.pop %v2959
    %v2961 = vmul.f32 %v2955, 1.442695
    %v2962 = vpow.pop %v2961
    %v2963 = vmul.f32 %v2956, 1.442695
    %v2964 = vpow.pop %v2963
    %v2965 = vadd.f32 %v2958, 1.0
    %v2966 = vadd.f32 %v2960, 1.0
    %v2967 = vadd.f32 %v2962, 1.0
    %v2968 = vadd.f32 %v2964, 1.0
    %v2969 = vrcp.pop %v2965
    %v2970 = vmul.f32 %v2965, %v2969
    %v2971 = vsub.f32 1.0, %v2970
    %v2972 = vmul.f32 %v2969, %v2971
    %v2973 = vadd.f32 %v2969, %v2972
    %vm2974 = vweird.f32 %v2965
    %vm2975 = vweird.f32 %v2969
    %vm2976 = vmor %vm2974, %vm2975
    %v2977 = vsel %vm2976, %v2969, %v2973
    %v2978 = vand.u32 2147483647, %v2965
    %vm2979 = vcmp.eq.f32.partialorder %v2978, 8.507059e+37
    %v2980 = vand.u32 %v2965, 2147483648
    %v2981 = vor.u32 1.1754944e-38, %v2980
    %v2982 = vsel %vm2979, %v2981, %v2977
    %v2983 = vmul.f32 1.0, %v2982
    %v2984 = vrcp.pop %v2966
    %v2985 = vmul.f32 %v2966, %v2984
    %v2986 = vsub.f32 1.0, %v2985
    %v2987 = vmul.f32 %v2984, %v2986
    %v2988 = vadd.f32 %v2984, %v2987
    %vm2989 = vweird.f32 %v2966
    %vm2990 = vweird.f32 %v2984
    %vm2991 = vmor %vm2989, %vm2990
    %v2992 = vsel %vm2991, %v2984, %v2988
    %v2993 = vand.u32 2147483647, %v2966
    %vm2994 = vcmp.eq.f32.partialorder %v2993, 8.507059e+37
    %v2995 = vand.u32 %v2966, 2147483648
    %v2996 = vor.u32 1.1754944e-38, %v2995
    %v2997 = vsel %vm2994, %v2996, %v2992
    %v2998 = vmul.f32 1.0, %v2997
    %v2999 = vrcp.pop %v2967
    %v3000 = vmul.f32 %v2967, %v2999
    %v3001 = vsub.f32 1.0, %v3000
    %v3002 = vmul.f32 %v2999, %v3001
    %v3003 = vadd.f32 %v2999, %v3002
    %vm3004 = vweird.f32 %v2967
    %vm3005 = vweird.f32 %v2999
    %vm3006 = vmor %vm3004, %vm3005
    %v3007 = vsel %vm3006, %v2999, %v3003
    %v3008 = vand.u32 2147483647, %v2967
    %vm3009 = vcmp.eq.f32.partialorder %v3008, 8.507059e+37
    %v3010 = vand.u32 %v2967, 2147483648
    %v3011 = vor.u32 1.1754944e-38, %v3010
    %v3012 = vsel %vm3009, %v3011, %v3007
    %v3013 = vmul.f32 1.0, %v3012
    %v3014 = vrcp.pop %v2968
    %v3015 = vmul.f32 %v2968, %v3014
    %v3016 = vsub.f32 1.0, %v3015
    %v3017 = vmul.f32 %v3014, %v3016
    %v3018 = vadd.f32 %v3014, %v3017
    %vm3019 = vweird.f32 %v2968
    %vm3020 = vweird.f32 %v3014
    %vm3021 = vmor %vm3019, %vm3020
    %v3022 = vsel %vm3021, %v3014, %v3018
    %v3023 = vand.u32 2147483647, %v2968
    %vm3024 = vcmp.eq.f32.partialorder %v3023, 8.507059e+37
    %v3025 = vand.u32 %v2968, 2147483648
    %v3026 = vor.u32 1.1754944e-38, %v3025
    %v3027 = vsel %vm3024, %v3026, %v3022
    %v3028 = vmul.f32 1.0, %v3027
    %v3029 = vld [vmem:[%s1 + $0x120] sm:$0xff]
    %v3030 = vld [vmem:[%s1 + $0x128] sm:$0xff]
    %v3031 = vld [vmem:[%s2 + $0x120] sm:$0xff]
    %v3032 = vld [vmem:[%s2 + $0x128] sm:$0xff]
    %3034 = vset.pattern.permute.xlu0 0
    %3035 = vperm.xlu0 %3034, %v3031
    %v3036 = vpop.permute.xlu0 %3035
    %3039 = vset.pattern.permute.xlu0 0
    %3040 = vperm.xlu0 %3039, %v3032
    %v3041 = vpop.permute.xlu0 %3040
    %v3044 = vsel %vm95, %v3029, 0
    %v3047 = vsel %vm95, %v3030, 0
    %3049 = vmatpush.msra.mxu0 0.0
    %3050 = vmatpush.msra.mxu0 0.0
    %3051 = vmatpush.msra.mxu0 0.0
    %3052 = vmatpush.msra.mxu0 0.0
    %3053 = vmatpush.msra.mxu0 0.0
    %3054 = vmatpush.msra.mxu0 0.0
    %3055 = vmatpush.msra.mxu0 0.0
    %3056 = vmatpush.msra.mxu0 0.0
    %3057 = vmatpush.msra.mxu0 0.0
    %3058 = vmatpush.msra.mxu0 0.0
    %3059 = vmatpush.msra.mxu0 0.0
    %3060 = vmatpush.msra.mxu0 0.0
    %v3061 = vand.u32 %v3028, 4294901760
    %3062 = vmatpush.msra.mxu0 %v3061
    %v3063 = vand.u32 %v3013, 4294901760
    %3064 = vmatpush.msra.mxu0 %v3063
    %v3065 = vand.u32 %v2998, 4294901760
    %3066 = vmatpush.msra.mxu0 %v3065
    %v3067 = vand.u32 %v2983, 4294901760
    %3068 = vmatpush.msra.mxu0 %v3067
    %v3069 = vand.u32 %v3044, 4294901760
    %v3070 = vsub.f32 %v3044, %v3069
    %v3071 = vand.u32 %v3070, 4294901760
    %v3072 = vsub.f32 %v3070, %v3071
    %v3073 = vand.u32 %v3072, 4294901760
    %3074 = vmatmul.f32.gmra.mxu0 %v3073
    %v3075 = vpop.f32.mrf.mxu0
    %v3076 = vadd.f32 %v3036, %v3075
    %v3077 = vand.u32 %v3047, 4294901760
    %v3078 = vsub.f32 %v3047, %v3077
    %v3079 = vand.u32 %v3078, 4294901760
    %v3080 = vsub.f32 %v3078, %v3079
    %v3081 = vand.u32 %v3080, 4294901760
    %3082 = vmatmul.f32.gmra.mxu0 %v3081
    %v3083 = vpop.f32.mrf.mxu0
    %v3084 = vadd.f32 %v3041, %v3083
    %3085 = vdwg.mxu0
    %3086 = vmatpush.msra.mxu0 0.0
    %3087 = vmatpush.msra.mxu0 0.0
    %3088 = vmatpush.msra.mxu0 0.0
    %3089 = vmatpush.msra.mxu0 0.0
    %3090 = vmatpush.msra.mxu0 0.0
    %3091 = vmatpush.msra.mxu0 0.0
    %3092 = vmatpush.msra.mxu0 0.0
    %3093 = vmatpush.msra.mxu0 0.0
    %3094 = vmatpush.msra.mxu0 0.0
    %3095 = vmatpush.msra.mxu0 0.0
    %3096 = vmatpush.msra.mxu0 0.0
    %3097 = vmatpush.msra.mxu0 0.0
    %v3098 = vand.u32 %v3028, 4294901760
    %v3099 = vsub.f32 %v3028, %v3098
    %v3100 = vand.u32 %v3099, 4294901760
    %v3101 = vsub.f32 %v3099, %v3100
    %v3102 = vand.u32 %v3101, 4294901760
    %3103 = vmatpush.msra.mxu0 %v3102
    %v3104 = vand.u32 %v3013, 4294901760
    %v3105 = vsub.f32 %v3013, %v3104
    %v3106 = vand.u32 %v3105, 4294901760
    %v3107 = vsub.f32 %v3105, %v3106
    %v3108 = vand.u32 %v3107, 4294901760
    %3109 = vmatpush.msra.mxu0 %v3108
    %v3110 = vand.u32 %v2998, 4294901760
    %v3111 = vsub.f32 %v2998, %v3110
    %v3112 = vand.u32 %v3111, 4294901760
    %v3113 = vsub.f32 %v3111, %v3112
    %v3114 = vand.u32 %v3113, 4294901760
    %3115 = vmatpush.msra.mxu0 %v3114
    %v3116 = vand.u32 %v2983, 4294901760
    %v3117 = vsub.f32 %v2983, %v3116
    %v3118 = vand.u32 %v3117, 4294901760
    %v3119 = vsub.f32 %v3117, %v3118
    %v3120 = vand.u32 %v3119, 4294901760
    %3121 = vmatpush.msra.mxu0 %v3120
    %v3122 = vand.u32 %v3044, 4294901760
    %3123 = vmatmul.f32.gmra.mxu0 %v3122
    %v3124 = vpop.f32.mrf.mxu0
    %v3125 = vadd.f32 %v3076, %v3124
    %v3126 = vand.u32 %v3047, 4294901760
    %3127 = vmatmul.f32.gmra.mxu0 %v3126
    %v3128 = vpop.f32.mrf.mxu0
    %v3129 = vadd.f32 %v3084, %v3128
    %3130 = vdwg.mxu0
    %3131 = vmatpush.msra.mxu0 0.0
    %3132 = vmatpush.msra.mxu0 0.0
    %3133 = vmatpush.msra.mxu0 0.0
    %3134 = vmatpush.msra.mxu0 0.0
    %3135 = vmatpush.msra.mxu0 0.0
    %3136 = vmatpush.msra.mxu0 0.0
    %3137 = vmatpush.msra.mxu0 0.0
    %3138 = vmatpush.msra.mxu0 0.0
    %3139 = vmatpush.msra.mxu0 0.0
    %3140 = vmatpush.msra.mxu0 0.0
    %3141 = vmatpush.msra.mxu0 0.0
    %3142 = vmatpush.msra.mxu0 0.0
    %v3143 = vand.u32 %v3028, 4294901760
    %v3144 = vsub.f32 %v3028, %v3143
    %3145 = vmatpush.msra.mxu0 %v3144
    %v3146 = vand.u32 %v3013, 4294901760
    %v3147 = vsub.f32 %v3013, %v3146
    %3148 = vmatpush.msra.mxu0 %v3147
    %v3149 = vand.u32 %v2998, 4294901760
    %v3150 = vsub.f32 %v2998, %v3149
    %3151 = vmatpush.msra.mxu0 %v3150
    %v3152 = vand.u32 %v2983, 4294901760
    %v3153 = vsub.f32 %v2983, %v3152
    %3154 = vmatpush.msra.mxu0 %v3153
    %v3155 = vand.u32 %v3044, 4294901760
    %v3156 = vsub.f32 %v3044, %v3155
    %3157 = vmatmul.f32.gmra.mxu0 %v3156
    %v3158 = vpop.f32.mrf.mxu0
    %v3159 = vadd.f32 %v3125, %v3158
    %v3160 = vand.u32 %v3047, 4294901760
    %v3161 = vsub.f32 %v3047, %v3160
    %3162 = vmatmul.f32.gmra.mxu0 %v3161
    %v3163 = vpop.f32.mrf.mxu0
    %v3164 = vadd.f32 %v3129, %v3163
    %3165 = vdwg.mxu0
    %3166 = vmatpush.msra.mxu0 0.0
    %3167 = vmatpush.msra.mxu0 0.0
    %3168 = vmatpush.msra.mxu0 0.0
    %3169 = vmatpush.msra.mxu0 0.0
    %3170 = vmatpush.msra.mxu0 0.0
    %3171 = vmatpush.msra.mxu0 0.0
    %3172 = vmatpush.msra.mxu0 0.0
    %3173 = vmatpush.msra.mxu0 0.0
    %3174 = vmatpush.msra.mxu0 0.0
    %3175 = vmatpush.msra.mxu0 0.0
    %3176 = vmatpush.msra.mxu0 0.0
    %3177 = vmatpush.msra.mxu0 0.0
    %v3178 = vand.u32 %v3028, 4294901760
    %3179 = vmatpush.msra.mxu0 %v3178
    %v3180 = vand.u32 %v3013, 4294901760
    %3181 = vmatpush.msra.mxu0 %v3180
    %v3182 = vand.u32 %v2998, 4294901760
    %3183 = vmatpush.msra.mxu0 %v3182
    %v3184 = vand.u32 %v2983, 4294901760
    %3185 = vmatpush.msra.mxu0 %v3184
    %v3186 = vand.u32 %v3044, 4294901760
    %v3187 = vsub.f32 %v3044, %v3186
    %v3188 = vand.u32 %v3187, 4294901760
    %3189 = vmatmul.f32.gmra.mxu0 %v3188
    %v3190 = vpop.f32.mrf.mxu0
    %v3191 = vadd.f32 %v3159, %v3190
    %v3192 = vand.u32 %v3047, 4294901760
    %v3193 = vsub.f32 %v3047, %v3192
    %v3194 = vand.u32 %v3193, 4294901760
    %3195 = vmatmul.f32.gmra.mxu0 %v3194
    %v3196 = vpop.f32.mrf.mxu0
    %v3197 = vadd.f32 %v3164, %v3196
    %3198 = vdwg.mxu0
    %3199 = vmatpush.msra.mxu0 0.0
    %3200 = vmatpush.msra.mxu0 0.0
    %3201 = vmatpush.msra.mxu0 0.0
    %3202 = vmatpush.msra.mxu0 0.0
    %3203 = vmatpush.msra.mxu0 0.0
    %3204 = vmatpush.msra.mxu0 0.0
    %3205 = vmatpush.msra.mxu0 0.0
    %3206 = vmatpush.msra.mxu0 0.0
    %3207 = vmatpush.msra.mxu0 0.0
    %3208 = vmatpush.msra.mxu0 0.0
    %3209 = vmatpush.msra.mxu0 0.0
    %3210 = vmatpush.msra.mxu0 0.0
    %v3211 = vand.u32 %v3028, 4294901760
    %v3212 = vsub.f32 %v3028, %v3211
    %v3213 = vand.u32 %v3212, 4294901760
    %3214 = vmatpush.msra.mxu0 %v3213
    %v3215 = vand.u32 %v3013, 4294901760
    %v3216 = vsub.f32 %v3013, %v3215
    %v3217 = vand.u32 %v3216, 4294901760
    %3218 = vmatpush.msra.mxu0 %v3217
    %v3219 = vand.u32 %v2998, 4294901760
    %v3220 = vsub.f32 %v2998, %v3219
    %v3221 = vand.u32 %v3220, 4294901760
    %3222 = vmatpush.msra.mxu0 %v3221
    %v3223 = vand.u32 %v2983, 4294901760
    %v3224 = vsub.f32 %v2983, %v3223
    %v3225 = vand.u32 %v3224, 4294901760
    %3226 = vmatpush.msra.mxu0 %v3225
    %v3227 = vand.u32 %v3044, 4294901760
    %3228 = vmatmul.f32.gmra.mxu0 %v3227
    %v3229 = vpop.f32.mrf.mxu0
    %v3230 = vadd.f32 %v3191, %v3229
    %v3231 = vand.u32 %v3047, 4294901760
    %3232 = vmatmul.f32.gmra.mxu0 %v3231
    %v3233 = vpop.f32.mrf.mxu0
    %v3234 = vadd.f32 %v3197, %v3233
    %3235 = vdwg.mxu0
    %3236 = vmatpush.msra.mxu0 0.0
    %3237 = vmatpush.msra.mxu0 0.0
    %3238 = vmatpush.msra.mxu0 0.0
    %3239 = vmatpush.msra.mxu0 0.0
    %3240 = vmatpush.msra.mxu0 0.0
    %3241 = vmatpush.msra.mxu0 0.0
    %3242 = vmatpush.msra.mxu0 0.0
    %3243 = vmatpush.msra.mxu0 0.0
    %3244 = vmatpush.msra.mxu0 0.0
    %3245 = vmatpush.msra.mxu0 0.0
    %3246 = vmatpush.msra.mxu0 0.0
    %3247 = vmatpush.msra.mxu0 0.0
    %v3248 = vand.u32 %v3028, 4294901760
    %3249 = vmatpush.msra.mxu0 %v3248
    %v3250 = vand.u32 %v3013, 4294901760
    %3251 = vmatpush.msra.mxu0 %v3250
    %v3252 = vand.u32 %v2998, 4294901760
    %3253 = vmatpush.msra.mxu0 %v3252
    %v3254 = vand.u32 %v2983, 4294901760
    %3255 = vmatpush.msra.mxu0 %v3254
    %v3256 = vand.u32 %v3044, 4294901760
    %3257 = vmatmul.f32.gmra.mxu0 %v3256
    %v3258 = vpop.f32.mrf.mxu0
    %v3259 = vadd.f32 %v3230, %v3258
    %v3260 = vand.u32 %v3047, 4294901760
    %3261 = vmatmul.f32.gmra.mxu0 %v3260
    %v3262 = vpop.f32.mrf.mxu0
    %v3263 = vadd.f32 %v3234, %v3262
    %3264 = vdwg.mxu0
    %v3265 = vxor.u32 %v3259, 2147483648
    %v3266 = vxor.u32 %v3263, 2147483648
    %v3267 = vmul.f32 %v3265, 1.442695
    %v3268 = vpow.pop %v3267
    %v3269 = vmul.f32 %v3266, 1.442695
    %v3270 = vpow.pop %v3269
    %v3271 = vadd.f32 %v3268, 1.0
    %v3272 = vadd.f32 %v3270, 1.0
    %v3273 = vrcp.pop %v3271
    %v3274 = vmul.f32 %v3271, %v3273
    %v3275 = vsub.f32 1.0, %v3274
    %v3276 = vmul.f32 %v3273, %v3275
    %v3277 = vadd.f32 %v3273, %v3276
    %vm3278 = vweird.f32 %v3271
    %vm3279 = vweird.f32 %v3273
    %vm3280 = vmor %vm3278, %vm3279
    %v3281 = vsel %vm3280, %v3273, %v3277
    %v3282 = vand.u32 2147483647, %v3271
    %vm3283 = vcmp.eq.f32.partialorder %v3282, 8.507059e+37
    %v3284 = vand.u32 %v3271, 2147483648
    %v3285 = vor.u32 1.1754944e-38, %v3284
    %v3286 = vsel %vm3283, %v3285, %v3281
    %v3287 = vmul.f32 1.0, %v3286
    %v3288 = vrcp.pop %v3272
    %v3289 = vmul.f32 %v3272, %v3288
    %v3290 = vsub.f32 1.0, %v3289
    %v3291 = vmul.f32 %v3288, %v3290
    %v3292 = vadd.f32 %v3288, %v3291
    %vm3293 = vweird.f32 %v3272
    %vm3294 = vweird.f32 %v3288
    %vm3295 = vmor %vm3293, %vm3294
    %v3296 = vsel %vm3295, %v3288, %v3292
    %v3297 = vand.u32 2147483647, %v3272
    %vm3298 = vcmp.eq.f32.partialorder %v3297, 8.507059e+37
    %v3299 = vand.u32 %v3272, 2147483648
    %v3300 = vor.u32 1.1754944e-38, %v3299
    %v3301 = vsel %vm3298, %v3300, %v3296
    %v3302 = vmul.f32 1.0, %v3301
    %v3303 = vld [vmem:[%s1 + $0x130] sm:$0xff]
    %v3304 = vld [vmem:[%s2 + $0x130] sm:$0x1]
    %vm3305 = vcmask 130048
    %v3307 = vsel %vm3305, %v3303, 0
    %3309 = vmatpush.msra.mxu0 0.0
    %3310 = vmatpush.msra.mxu0 0.0
    %3311 = vmatpush.msra.mxu0 0.0
    %3312 = vmatpush.msra.mxu0 0.0
    %3313 = vmatpush.msra.mxu0 0.0
    %3314 = vmatpush.msra.mxu0 0.0
    %3315 = vmatpush.msra.mxu0 0.0
    %3316 = vmatpush.msra.mxu0 0.0
    %3317 = vmatpush.msra.mxu0 0.0
    %3318 = vmatpush.msra.mxu0 0.0
    %3319 = vmatpush.msra.mxu0 0.0
    %3320 = vmatpush.msra.mxu0 0.0
    %3321 = vmatpush.msra.mxu0 0.0
    %3322 = vmatpush.msra.mxu0 0.0
    %v3323 = vand.u32 %v3302, 4294901760
    %3324 = vmatpush.msra.mxu0 %v3323
    %v3325 = vand.u32 %v3287, 4294901760
    %3326 = vmatpush.msra.mxu0 %v3325
    %v3327 = vand.u32 %v3307, 4294901760
    %v3328 = vsub.f32 %v3307, %v3327
    %v3329 = vand.u32 %v3328, 4294901760
    %v3330 = vsub.f32 %v3328, %v3329
    %v3331 = vand.u32 %v3330, 4294901760
    %3332 = vmatmul.f32.gmra.mxu0 %v3331
    %v3333 = vpop.f32.mrf.mxu0
    %v3334 = vadd.f32 0.0, %v3333
    %3335 = vdwg.mxu0
    %3336 = vmatpush.msra.mxu0 0.0
    %3337 = vmatpush.msra.mxu0 0.0
    %3338 = vmatpush.msra.mxu0 0.0
    %3339 = vmatpush.msra.mxu0 0.0
    %3340 = vmatpush.msra.mxu0 0.0
    %3341 = vmatpush.msra.mxu0 0.0
    %3342 = vmatpush.msra.mxu0 0.0
    %3343 = vmatpush.msra.mxu0 0.0
    %3344 = vmatpush.msra.mxu0 0.0
    %3345 = vmatpush.msra.mxu0 0.0
    %3346 = vmatpush.msra.mxu0 0.0
    %3347 = vmatpush.msra.mxu0 0.0
    %3348 = vmatpush.msra.mxu0 0.0
    %3349 = vmatpush.msra.mxu0 0.0
    %v3350 = vand.u32 %v3302, 4294901760
    %v3351 = vsub.f32 %v3302, %v3350
    %v3352 = vand.u32 %v3351, 4294901760
    %v3353 = vsub.f32 %v3351, %v3352
    %v3354 = vand.u32 %v3353, 4294901760
    %3355 = vmatpush.msra.mxu0 %v3354
    %v3356 = vand.u32 %v3287, 4294901760
    %v3357 = vsub.f32 %v3287, %v3356
    %v3358 = vand.u32 %v3357, 4294901760
    %v3359 = vsub.f32 %v3357, %v3358
    %v3360 = vand.u32 %v3359, 4294901760
    %3361 = vmatpush.msra.mxu0 %v3360
    %v3362 = vand.u32 %v3307, 4294901760
    %3363 = vmatmul.f32.gmra.mxu0 %v3362
    %v3364 = vpop.f32.mrf.mxu0
    %v3365 = vadd.f32 %v3334, %v3364
    %3366 = vdwg.mxu0
    %3367 = vmatpush.msra.mxu0 0.0
    %3368 = vmatpush.msra.mxu0 0.0
    %3369 = vmatpush.msra.mxu0 0.0
    %3370 = vmatpush.msra.mxu0 0.0
    %3371 = vmatpush.msra.mxu0 0.0
    %3372 = vmatpush.msra.mxu0 0.0
    %3373 = vmatpush.msra.mxu0 0.0
    %3374 = vmatpush.msra.mxu0 0.0
    %3375 = vmatpush.msra.mxu0 0.0
    %3376 = vmatpush.msra.mxu0 0.0
    %3377 = vmatpush.msra.mxu0 0.0
    %3378 = vmatpush.msra.mxu0 0.0
    %3379 = vmatpush.msra.mxu0 0.0
    %3380 = vmatpush.msra.mxu0 0.0
    %v3381 = vand.u32 %v3302, 4294901760
    %v3382 = vsub.f32 %v3302, %v3381
    %3383 = vmatpush.msra.mxu0 %v3382
    %v3384 = vand.u32 %v3287, 4294901760
    %v3385 = vsub.f32 %v3287, %v3384
    %3386 = vmatpush.msra.mxu0 %v3385
    %v3387 = vand.u32 %v3307, 4294901760
    %v3388 = vsub.f32 %v3307, %v3387
    %3389 = vmatmul.f32.gmra.mxu0 %v3388
    %v3390 = vpop.f32.mrf.mxu0
    %v3391 = vadd.f32 %v3365, %v3390
    %3392 = vdwg.mxu0
    %3393 = vmatpush.msra.mxu0 0.0
    %3394 = vmatpush.msra.mxu0 0.0
    %3395 = vmatpush.msra.mxu0 0.0
    %3396 = vmatpush.msra.mxu0 0.0
    %3397 = vmatpush.msra.mxu0 0.0
    %3398 = vmatpush.msra.mxu0 0.0
    %3399 = vmatpush.msra.mxu0 0.0
    %3400 = vmatpush.msra.mxu0 0.0
    %3401 = vmatpush.msra.mxu0 0.0
    %3402 = vmatpush.msra.mxu0 0.0
    %3403 = vmatpush.msra.mxu0 0.0
    %3404 = vmatpush.msra.mxu0 0.0
    %3405 = vmatpush.msra.mxu0 0.0
    %3406 = vmatpush.msra.mxu0 0.0
    %v3407 = vand.u32 %v3302, 4294901760
    %3408 = vmatpush.msra.mxu0 %v3407
    %v3409 = vand.u32 %v3287, 4294901760
    %3410 = vmatpush.msra.mxu0 %v3409
    %v3411 = vand.u32 %v3307, 4294901760
    %v3412 = vsub.f32 %v3307, %v3411
    %v3413 = vand.u32 %v3412, 4294901760
    %3414 = vmatmul.f32.gmra.mxu0 %v3413
    %v3415 = vpop.f32.mrf.mxu0
    %v3416 = vadd.f32 %v3391, %v3415
    %3417 = vdwg.mxu0
    %3418 = vmatpush.msra.mxu0 0.0
    %3419 = vmatpush.msra.mxu0 0.0
    %3420 = vmatpush.msra.mxu0 0.0
    %3421 = vmatpush.msra.mxu0 0.0
    %3422 = vmatpush.msra.mxu0 0.0
    %3423 = vmatpush.msra.mxu0 0.0
    %3424 = vmatpush.msra.mxu0 0.0
    %3425 = vmatpush.msra.mxu0 0.0
    %3426 = vmatpush.msra.mxu0 0.0
    %3427 = vmatpush.msra.mxu0 0.0
    %3428 = vmatpush.msra.mxu0 0.0
    %3429 = vmatpush.msra.mxu0 0.0
    %3430 = vmatpush.msra.mxu0 0.0
    %3431 = vmatpush.msra.mxu0 0.0
    %v3432 = vand.u32 %v3302, 4294901760
    %v3433 = vsub.f32 %v3302, %v3432
    %v3434 = vand.u32 %v3433, 4294901760
    %3435 = vmatpush.msra.mxu0 %v3434
    %v3436 = vand.u32 %v3287, 4294901760
    %v3437 = vsub.f32 %v3287, %v3436
    %v3438 = vand.u32 %v3437, 4294901760
    %3439 = vmatpush.msra.mxu0 %v3438
    %v3440 = vand.u32 %v3307, 4294901760
    %3441 = vmatmul.f32.gmra.mxu0 %v3440
    %v3442 = vpop.f32.mrf.mxu0
    %v3443 = vadd.f32 %v3416, %v3442
    %3444 = vdwg.mxu0
    %3445 = vmatpush.msra.mxu0 0.0
    %3446 = vmatpush.msra.mxu0 0.0
    %3447 = vmatpush.msra.mxu0 0.0
    %3448 = vmatpush.msra.mxu0 0.0
    %3449 = vmatpush.msra.mxu0 0.0
    %3450 = vmatpush.msra.mxu0 0.0
    %3451 = vmatpush.msra.mxu0 0.0
    %3452 = vmatpush.msra.mxu0 0.0
    %3453 = vmatpush.msra.mxu0 0.0
    %3454 = vmatpush.msra.mxu0 0.0
    %3455 = vmatpush.msra.mxu0 0.0
    %3456 = vmatpush.msra.mxu0 0.0
    %3457 = vmatpush.msra.mxu0 0.0
    %3458 = vmatpush.msra.mxu0 0.0
    %v3459 = vand.u32 %v3302, 4294901760
    %3460 = vmatpush.msra.mxu0 %v3459
    %v3461 = vand.u32 %v3287, 4294901760
    %3462 = vmatpush.msra.mxu0 %v3461
    %v3463 = vand.u32 %v3307, 4294901760
    %3464 = vmatmul.f32.gmra.mxu0 %v3463
    %v3465 = vpop.f32.mrf.mxu0
    %v3466 = vadd.f32 %v3443, %v3465
    %3467 = vdwg.mxu0
    %3469 = vset.pattern.permute.xlu0 0
    %3470 = vperm.xlu0 %3469, %v3304
    %v3471 = vpop.permute.xlu0 %3470
    %v3473 = vadd.f32 %v3466, %v3471
    %v3474 = vxor.u32 %v3473, 2147483648
    %v3475 = vmul.f32 %v3474, 1.442695
    %v3476 = vpow.pop %v3475
    %v3477 = vadd.f32 %v3476, 1.0
    %v3478 = vrcp.pop %v3477
    %v3479 = vmul.f32 %v3477, %v3478
    %v3480 = vsub.f32 1.0, %v3479
    %v3481 = vmul.f32 %v3478, %v3480
    %v3482 = vadd.f32 %v3478, %v3481
    %vm3483 = vweird.f32 %v3477
    %vm3484 = vweird.f32 %v3478
    %vm3485 = vmor %vm3483, %vm3484
    %v3486 = vsel %vm3485, %v3478, %v3482
    %v3487 = vand.u32 2147483647, %v3477
    %vm3488 = vcmp.eq.f32.partialorder %v3487, 8.507059e+37
    %v3489 = vand.u32 %v3477, 2147483648
    %v3490 = vor.u32 1.1754944e-38, %v3489
    %v3491 = vsel %vm3488, %v3490, %v3486
    %v3492 = vmul.f32 1.0, %v3491
    %3493 = vst [vmem:[#allocation5] sm:$0x1] %v3492
    // Predicated region
    $region18: #{tpu_custom_call.1} parent=1 // pred_check
      _
    $region19: #{tpu_custom_call.1} parent=1 // pred_check_branch
      %3495 = sbr.rel (0) target = $region21
    $region20: #{tpu_custom_call.1} parent=1 // pred_region
      %3497 = vsyncadd [#allocation4], 0
      %s3499 = sshll.u32 [#allocation5], 4
      %s3500 = int_to_ptr.vmem [resolvable:$true] %s3499
      %s3501 = sshll.u32 %s3, 4
      %s3502 = int_to_ptr.hbm [resolvable:$true] %s3501
      %3504 = dma.vmem_to_hbm [thread:$0]  %s3500, 16, %s3502, [#allocation4]
    $region21: #{tpu_custom_call.1} parent=1 // pred_fallthru
      _
    // Predicated region
    $region22: #{tpu_custom_call.1} parent=1 // pred_check
      _
    $region23: #{tpu_custom_call.1} parent=1 // pred_check_branch
      %3506 = sbr.rel (0) target = $region25
    $region24: #{tpu_custom_call.1} parent=1 // pred_region
      %3508 = dma.done [#allocation4], 16
    $region25: #{tpu_custom_call.1} parent=1 // pred_fallthru
      _
    %3509 = vsyncpa [#allocation3], 1
    %3510 = vsyncpa [#allocation4], 1

</llo_original>
